<compile_context>
chip_gen: v7x
topology: tpu7x:2x2x1
jax: 0.10.0
libtpu: 0.0.40
codegen_flags: <defaults>
</compile_context>

<pallas_src>
import functools
import math

import jax
import jax.numpy as jnp
import numpy as np
from jax.experimental import pallas as pl
from jax.experimental.pallas import tpu as pltpu

SQRT2 = math.sqrt(2.0)
INV_SQRT2 = 1.0 / math.sqrt(2.0)
NEG_SLOPE = 0.2

# Normalized separable blur taps from [1, 3, 3, 1]  (1D sum = 8; 2D kernel = outer/64).
BLUR_TAPS = (1.0 / 8.0, 3.0 / 8.0, 3.0 / 8.0, 1.0 / 8.0)
BLUR_K2D = tuple(tuple(a * b for b in BLUR_TAPS) for a in BLUR_TAPS)

# Matmul inputs are cast to this dtype (f32 accumulation/epilogue is kept regardless).
COMPUTE_DTYPE = jnp.bfloat16

# Tile caps. Output tile (512,256) is >= the 256x256 MXU native tile (v6e/v7x), a multiple
# of 128 everywhere (v5e MXU / lane-dense stores), and small enough for every generation's
# scoped VMEM budget with double buffering.
TM, TN, TK = 512, 256, 512


def _round_up(x, m):
    return (x + m - 1) // m * m


def _pad2d(x, rows, cols):
    r, c = x.shape
    if r == rows and c == cols:
        return x
    return jnp.pad(x, ((0, rows - r), (0, cols - c)))


# ----------------------------- Pallas kernels -----------------------------

def _mm_bias_act_kernel(a_ref, w_ref, b_ref, o_ref, acc_ref, *, act_scale, neg_slope):
    """o = act_scale * leaky_relu(A @ W + b);  grid = (M, N, K) with K innermost."""
    k = pl.program_id(2)

    @pl.when(k == 0)
    def _init():
        acc_ref[...] = jnp.zeros_like(acc_ref)

    acc_ref[...] += jnp.dot(a_ref[...], w_ref[...], preferred_element_type=jnp.float32)

    @pl.when(k == pl.num_programs(2) - 1)
    def _finalize():
        z = acc_ref[...] + b_ref[...]                       # bias broadcast, f32, once
        z = jnp.where(z >= 0.0, z, neg_slope * z) * act_scale
        o_ref[...] = z.astype(o_ref.dtype)


def _mm_bias_act_skip_kernel(a_ref, w_ref, b_ref, s_ref, ws_ref, o_ref, acc_ref, *, neg_slope):
    """Fused conv2 + skip + residual combine:
         o = leaky_relu(A @ W2 + b2) + S @ Wskip'
       where Wskip' is pre-scaled by 1/sqrt(2) in the wrapper and the FusedLeakyReLU *sqrt(2)
       cancels against the final /sqrt(2).  One output write, no HBM round trip of conv2."""
    k = pl.program_id(2)

    @pl.when(k == 0)
    def _init():
        acc_ref[...] = jnp.zeros_like(acc_ref)

    acc_ref[...] += jnp.dot(a_ref[...], w_ref[...], preferred_element_type=jnp.float32)

    @pl.when(k == pl.num_programs(2) - 1)
    def _finalize():
        z = acc_ref[...] + b_ref[...]
        z = jnp.where(z >= 0.0, z, neg_slope * z)
        skip = jnp.dot(s_ref[...], ws_ref[...], preferred_element_type=jnp.float32)
        o_ref[...] = (z + skip).astype(o_ref.dtype)


def _blur_kernel(x_ref, o_ref):
    """Separable depthwise [1,3,3,1] blur on a (1, Hp, Wp, tc) padded block (f32 accumulation)."""
    x = x_ref[...][0].astype(jnp.float32)                   # (Hp, Wp, tc)
    ho = o_ref.shape[1]
    wo = o_ref.shape[2]
    t0, t1, t2, t3 = BLUR_TAPS
    v = (t0 * x[0:ho] + t1 * x[1:ho + 1] + t2 * x[2:ho + 2] + t3 * x[3:ho + 3])
    out = (t0 * v[:, 0:wo] + t1 * v[:, 1:wo + 1]
           + t2 * v[:, 2:wo + 2] + t3 * v[:, 3:wo + 3])
    o_ref[...] = out[jnp.newaxis].astype(o_ref.dtype)


# ----------------------------- pallas_call wrappers -----------------------------

def _matmul_bias_act(a, w, bias, *, act_scale, out_dtype):
    M, K = a.shape
    _, N = w.shape
    tm = min(TM, _round_up(M, 8))
    tk = min(TK, _round_up(K, 128))
    tn = min(TN, _round_up(N, 128))
    Mp, Kp, Np = _round_up(M, tm), _round_up(K, tk), _round_up(N, tn)

    a_p = _pad2d(a.astype(COMPUTE_DTYPE), Mp, Kp)
    w_p = _pad2d(w.astype(COMPUTE_DTYPE), Kp, Np)
    b_p = _pad2d(bias.astype(jnp.float32).reshape(1, N), 1, Np)

    grid = (Mp // tm, Np // tn, Kp // tk)
    itemsize = jnp.dtype(COMPUTE_DTYPE).itemsize
    kern = functools.partial(_mm_bias_act_kernel, act_scale=act_scale, neg_slope=NEG_SLOPE)

    out = pl.pallas_call(
        kern,
        out_shape=jax.ShapeDtypeStruct((Mp, Np), out_dtype),
        grid_spec=pltpu.PrefetchScalarGridSpec(
            num_scalar_prefetch=0,
            grid=grid,
            in_specs=[
                pl.BlockSpec((tm, tk), lambda i, j, k: (i, k)),
                pl.BlockSpec((tk, tn), lambda i, j, k: (k, j)),
                pl.BlockSpec((1, tn), lambda i, j, k: (0, j)),
            ],
            out_specs=pl.BlockSpec((tm, tn), lambda i, j, k: (i, j)),
            scratch_shapes=[pltpu.VMEM((tm, tn), jnp.float32)],
        ),
        compiler_params=pltpu.CompilerParams(
            dimension_semantics=("parallel", "parallel", "arbitrary")),
        cost_estimate=pl.CostEstimate(
            flops=2 * Mp * Kp * Np,
            transcendentals=0,
            bytes_accessed=(Mp * Kp + Kp * Np) * itemsize
                           + Mp * Np * jnp.dtype(out_dtype).itemsize),
    )(a_p, w_p, b_p)

    if (Mp, Np) != (M, N):
        out = out[:M, :N]
    return out


def _matmul_conv2_plus_skip(a, w, bias, s, ws, *, out_dtype):
    M, K = a.shape
    _, N = w.shape
    Ks = s.shape[1]
    tm = min(TM, _round_up(M, 8))
    tk = min(TK, _round_up(K, 128))
    tn = min(TN, _round_up(N, 128))
    Mp, Kp, Np = _round_up(M, tm), _round_up(K, tk), _round_up(N, tn)
    Ksp = _round_up(Ks, 128)                 # skip K (= Cin) handled as a single block

    a_p = _pad2d(a.astype(COMPUTE_DTYPE), Mp, Kp)
    w_p = _pad2d(w.astype(COMPUTE_DTYPE), Kp, Np)
    b_p = _pad2d(bias.astype(jnp.float32).reshape(1, N), 1, Np)
    s_p = _pad2d(s.astype(COMPUTE_DTYPE), Mp, Ksp)
    ws_p = _pad2d(ws.astype(COMPUTE_DTYPE), Ksp, Np)

    grid = (Mp // tm, Np // tn, Kp // tk)
    itemsize = jnp.dtype(COMPUTE_DTYPE).itemsize
    kern = functools.partial(_mm_bias_act_skip_kernel, neg_slope=NEG_SLOPE)

    out = pl.pallas_call(
        kern,
        out_shape=jax.ShapeDtypeStruct((Mp, Np), out_dtype),
        grid_spec=pltpu.PrefetchScalarGridSpec(
            num_scalar_prefetch=0,
            grid=grid,
            in_specs=[
                pl.BlockSpec((tm, tk), lambda i, j, k: (i, k)),
                pl.BlockSpec((tk, tn), lambda i, j, k: (k, j)),
                pl.BlockSpec((1, tn), lambda i, j, k: (0, j)),
                pl.BlockSpec((tm, Ksp), lambda i, j, k: (i, 0)),   # skip rows: fetched once per i
                pl.BlockSpec((Ksp, tn), lambda i, j, k: (0, j)),
            ],
            out_specs=pl.BlockSpec((tm, tn), lambda i, j, k: (i, j)),
            scratch_shapes=[pltpu.VMEM((tm, tn), jnp.float32)],
        ),
        compiler_params=pltpu.CompilerParams(
            dimension_semantics=("parallel", "parallel", "arbitrary")),
        cost_estimate=pl.CostEstimate(
            flops=2 * Mp * Np * (Kp + Ksp),
            transcendentals=0,
            bytes_accessed=(Mp * Kp + Kp * Np + Mp * Ksp + Ksp * Np) * itemsize
                           + Mp * Np * jnp.dtype(out_dtype).itemsize),
    )(a_p, w_p, b_p, s_p, ws_p)

    if (Mp, Np) != (M, N):
        out = out[:M, :N]
    return out


def _pallas_blur(x_padded):
    """Depthwise [1,3,3,1]x[1,3,3,1] blur of an already-padded NHWC tensor."""
    N, Hp, Wp, C = x_padded.shape
    Ho, Wo = Hp - 3, Wp - 3
    tc = 128 if C % 128 == 0 else C          # channel tile = lane dim
    grid = (N, C // tc)
    itemsize = jnp.dtype(x_padded.dtype).itemsize
    return pl.pallas_call(
        _blur_kernel,
        out_shape=jax.ShapeDtypeStruct((N, Ho, Wo, C), x_padded.dtype),
        grid_spec=pltpu.PrefetchScalarGridSpec(
            num_scalar_prefetch=0,
            grid=grid,
            in_specs=[pl.BlockSpec((1, Hp, Wp, tc), lambda n, c: (n, 0, 0, c))],
            out_specs=pl.BlockSpec((1, Ho, Wo, tc), lambda n, c: (n, 0, 0, c)),
        ),
        compiler_params=pltpu.CompilerParams(
            dimension_semantics=("parallel", "parallel")),
        cost_estimate=pl.CostEstimate(
            flops=16 * N * Ho * Wo * C,
            transcendentals=0,
            bytes_accessed=(N * Hp * Wp * C + N * Ho * Wo * C) * itemsize),
    )(x_padded)


# ----------------------------- JAX glue -----------------------------

def _im2col(x, ksize, stride):
    """x: (N, Hp, Wp, C) already padded -> (N*Ho*Wo, ksize*ksize*C).
    Patch order (kh, kw, c) matches an HWIO weight reshaped to (k*k*Cin, Cout).
    TODO(synk): replace with in-kernel halo-DMA im2col to avoid the HBM materialization."""
    N, Hp, Wp, C = x.shape
    Ho = (Hp - ksize) // stride + 1
    Wo = (Wp - ksize) // stride + 1
    cols = []
    for kh in range(ksize):
        for kw in range(ksize):
            cols.append(
                x[:, kh:kh + stride * (Ho - 1) + 1:stride,
                     kw:kw + stride * (Wo - 1) + 1:stride, :])
    patches = jnp.stack(cols, axis=3)                  # (N, Ho, Wo, k*k, C)
    return patches.reshape(N * Ho * Wo, ksize * ksize * C), Ho, Wo


def init_style_block_params(key, in_channel, out_channel):
    k1, k2, k3 = jax.random.split(key, 3)
    return {
        # EqualConv2d weights in HWIO layout (kh, kw, Cin, Cout); FusedLeakyReLU biases zero-init.
        "w1": jax.random.normal(k1, (3, 3, in_channel, in_channel), jnp.float32),
        "b1": jnp.zeros((in_channel,), jnp.float32),
        "s1": 1.0 / math.sqrt(in_channel * 3 * 3),
        "w2": jax.random.normal(k2, (3, 3, in_channel, out_channel), jnp.float32),
        "b2": jnp.zeros((out_channel,), jnp.float32),
        "s2": 1.0 / math.sqrt(in_channel * 3 * 3),
        "w_skip": jax.random.normal(k3, (1, 1, in_channel, out_channel), jnp.float32),
        "s_skip": 1.0 / math.sqrt(in_channel * 1 * 1),
    }


@functools.partial(jax.jit, static_argnums=(2, 3))
def style_block_forward(x_nchw, params, in_channel, out_channel):
    x = jnp.transpose(x_nchw, (0, 2, 3, 1))                        # NCHW -> NHWC
    N, H, W, _ = x.shape
    cd = COMPUTE_DTYPE

    # --- conv1: EqualConv2d 3x3 s1 p1 (no conv bias) + FusedLeakyReLU(bias, 0.2, *sqrt2) ---
    xp = jnp.pad(x.astype(cd), ((0, 0), (1, 1), (1, 1), (0, 0)))
    cols1, H1, W1 = _im2col(xp, 3, 1)
    w1 = (params["w1"] * params["s1"]).reshape(9 * in_channel, in_channel)
    out1 = _matmul_bias_act(cols1, w1, params["b1"], act_scale=SQRT2, out_dtype=cd)
    out1 = out1.reshape(N, H1, W1, in_channel)

    # --- conv2 pre-blur (pad (2,2)) and skip pre-blur (pad (1,1)) ---
    o1p = jnp.pad(out1, ((0, 0), (2, 2), (2, 2), (0, 0)))
    blur1 = _pallas_blur(o1p)                                      # (N, H+1, W+1, Cin)
    cols2, H2, W2 = _im2col(blur1, 3, 2)                           # (N*H2*W2, 9*Cin)

    xsp = jnp.pad(x.astype(cd), ((0, 0), (1, 1), (1, 1), (0, 0)))
    blur_s = _pallas_blur(xsp)                                     # (N, H-1, W-1, Cin)
    skip_rows = blur_s[:, ::2, ::2, :].reshape(N * H2 * W2, in_channel)  # 1x1 s2 == subsample

    # --- fused: conv2 matmul + bias + leaky, plus skip matmul and the final /sqrt(2) ---
    w2 = (params["w2"] * params["s2"]).reshape(9 * in_channel, out_channel)
    w_skip = (params["w_skip"] * params["s_skip"] * INV_SQRT2).reshape(in_channel, out_channel)
    out = _matmul_conv2_plus_skip(cols2, w2, params["b2"], skip_rows, w_skip,
                                  out_dtype=jnp.float32)

    out = out.reshape(N, H2, W2, out_channel)
    return jnp.transpose(out, (0, 3, 1, 2))                        # NHWC -> NCHW


# ----------------------------- pure-JAX reference (for sanity check) -----------------------------

def _reference_forward(x_nchw, params):
    x = jnp.transpose(x_nchw, (0, 2, 3, 1)).astype(jnp.float32)
    dn = ("NHWC", "HWIO", "NHWC")
    k2d = jnp.asarray(BLUR_K2D, jnp.float32)

    def conv(inp, w, stride, pad):
        return jax.lax.conv_general_dilated(inp, w, (stride, stride), pad,
                                            dimension_numbers=dn)

    def blur(inp, pad):
        C = inp.shape[-1]
        wk = jnp.tile(k2d[:, :, None, None], (1, 1, 1, C))
        return jax.lax.conv_general_dilated(inp, wk, (1, 1), ((pad, pad), (pad, pad)),
                                            dimension_numbers=dn, feature_group_count=C)

    z = conv(x, params["w1"] * params["s1"], 1, ((1, 1), (1, 1))) + params["b1"]
    o = jnp.where(z >= 0, z, NEG_SLOPE * z) * SQRT2
    z = conv(blur(o, 2), params["w2"] * params["s2"], 2, ((0, 0), (0, 0))) + params["b2"]
    o = jnp.where(z >= 0, z, NEG_SLOPE * z) * SQRT2
    s = conv(blur(x, 1), params["w_skip"] * params["s_skip"], 2, ((0, 0), (0, 0)))
    out = (o + s) / SQRT2
    return jnp.transpose(out, (0, 3, 1, 2))


if __name__ == "__main__":
    key = jax.random.PRNGKey(0)
    k_x, k_p = jax.random.split(key)

    N, in_ch, out_ch, H, W = 2, 4, 8, 16, 16
    x = jax.random.normal(k_x, (N, in_ch, H, W), jnp.float32)
    params = init_style_block_params(k_p, in_ch, out_ch)

    out = style_block_forward(x, params, in_ch, out_ch)
    out = jax.block_until_ready(out)

    assert out.shape == (N, out_ch, H // 2, W // 2), out.shape
    assert bool(jnp.all(jnp.isfinite(out)))

    ref = _reference_forward(x, params)
    err = float(np.max(np.abs(np.asarray(out) - np.asarray(ref))))
    assert np.allclose(np.asarray(out), np.asarray(ref), atol=1e-1, rtol=1e-1), err

    print("KERNEL_OK")
</pallas_src>

<mosaic_0001>
module attributes {stable_mosaic.version = 11 : i64} {
  func.func @_mm_bias_act_kernel(%arg0: i32, %arg1: i32, %arg2: i32, %arg3: memref<512x128xbf16, #tpu.memory_space<vmem>>, %arg4: memref<128x128xbf16, #tpu.memory_space<vmem>>, %arg5: memref<1x128xf32, #tpu.memory_space<vmem>>, %arg6: memref<512x128xbf16, #tpu.memory_space<vmem>>, %arg7: memref<512x128xf32, #tpu.memory_space<vmem>>) attributes {dimension_semantics = [#tpu.dimension_semantics<parallel>, #tpu.dimension_semantics<parallel>, #tpu.dimension_semantics<arbitrary>], iteration_bounds = array<i64: 1, 1, 1>, scalar_prefetch = 0 : i64, scratch_operands = 1 : i64, tpu.core_type = #tpu.core_type<tc>, window_params = [{transform_indices = @transform_0, window_bounds = array<i64: 512, 128>}, {transform_indices = @transform_1, window_bounds = array<i64: 128, 128>}, {transform_indices = @transform_2, window_bounds = array<i64: 1, 128>}, {transform_indices = @transform_3, window_bounds = array<i64: 512, 128>}]} {
    %c0_i32 = arith.constant 0 : i32
    %0 = arith.cmpi eq, %arg2, %c0_i32 : i32
    %1 = arith.extui %0 : i1 to i32
    %c0_i32_0 = arith.constant 0 : i32
    %2 = arith.cmpi ne, %1, %c0_i32_0 : i32
    scf.if %2 {
      %cst_10 = arith.constant 0.000000e+00 : f32
      %12 = vector.broadcast %cst_10 : f32 to vector<512x128xf32>
      %c0_11 = arith.constant 0 : index
      %c0_12 = arith.constant 0 : index
      %13 = vector.load %arg7[%c0_11, %c0_12] : memref<512x128xf32, #tpu.memory_space<vmem>>, vector<512x128xf32>
      tpu.vector_store %arg7[%c0_11, %c0_12], %12 {strides = array<i32>} : memref<512x128xf32, #tpu.memory_space<vmem>>, vector<512x128xf32>,
    } else {
    }
    %c0 = arith.constant 0 : index
    %c0_1 = arith.constant 0 : index
    %3 = vector.load %arg7[%c0, %c0_1] : memref<512x128xf32, #tpu.memory_space<vmem>>, vector<512x128xf32>
    %c0_2 = arith.constant 0 : index
    %c0_3 = arith.constant 0 : index
    %4 = vector.load %arg3[%c0_2, %c0_3] : memref<512x128xbf16, #tpu.memory_space<vmem>>, vector<512x128xbf16>
    %c0_4 = arith.constant 0 : index
    %c0_5 = arith.constant 0 : index
    %5 = vector.load %arg4[%c0_4, %c0_5] : memref<128x128xbf16, #tpu.memory_space<vmem>>, vector<128x128xbf16>
    %cst = arith.constant dense<0.000000e+00> : vector<512x128xf32>
    %6 = tpu.matmul %4, %5, %cst {dimension_numbers = #tpu.dot_dimension_numbers<[1], [0], [0], [1], [0, 0, 1, 1], [], []>} : vector<512x128xbf16>, vector<128x128xbf16>, vector<512x128xf32> -> vector<512x128xf32>
    %7 = arith.addf %3, %6 : vector<512x128xf32>
    %c0_6 = arith.constant 0 : index
    %c0_7 = arith.constant 0 : index
    %8 = vector.load %arg7[%c0_6, %c0_7] : memref<512x128xf32, #tpu.memory_space<vmem>>, vector<512x128xf32>
    tpu.vector_store %arg7[%c0_6, %c0_7], %7 {strides = array<i32>} : memref<512x128xf32, #tpu.memory_space<vmem>>, vector<512x128xf32>,
    %c0_i32_8 = arith.constant 0 : i32
    %9 = arith.cmpi eq, %arg2, %c0_i32_8 : i32
    %10 = arith.extui %9 : i1 to i32
    %c0_i32_9 = arith.constant 0 : i32
    %11 = arith.cmpi ne, %10, %c0_i32_9 : i32
    scf.if %11 {
      %c0_10 = arith.constant 0 : index
      %c0_11 = arith.constant 0 : index
      %12 = vector.load %arg7[%c0_10, %c0_11] : memref<512x128xf32, #tpu.memory_space<vmem>>, vector<512x128xf32>
      %c0_12 = arith.constant 0 : index
      %c0_13 = arith.constant 0 : index
      %13 = vector.load %arg5[%c0_12, %c0_13] : memref<1x128xf32, #tpu.memory_space<vmem>>, vector<1x128xf32>
      %14 = vector.broadcast %13 : vector<1x128xf32> to vector<512x128xf32>
      %15 = arith.addf %12, %14 : vector<512x128xf32>
      %cst_14 = arith.constant 0.000000e+00 : f32
      %16 = vector.broadcast %cst_14 : f32 to vector<512x128xf32>
      %17 = arith.cmpf oge, %15, %16 : vector<512x128xf32>
      %cst_15 = arith.constant 2.000000e-01 : f32
      %18 = vector.broadcast %cst_15 : f32 to vector<512x128xf32>
      %19 = arith.mulf %18, %15 : vector<512x128xf32>
      %20 = arith.select %17, %15, %19 : vector<512x128xi1>, vector<512x128xf32>
      %cst_16 = arith.constant 1.41421354 : f32
      %21 = vector.broadcast %cst_16 : f32 to vector<512x128xf32>
      %22 = arith.mulf %20, %21 : vector<512x128xf32>
      %23 = arith.truncf %22 : vector<512x128xf32> to vector<512x128xbf16>
      %c0_17 = arith.constant 0 : index
      %c0_18 = arith.constant 0 : index
      %24 = vector.load %arg6[%c0_17, %c0_18] : memref<512x128xbf16, #tpu.memory_space<vmem>>, vector<512x128xbf16>
      tpu.vector_store %arg6[%c0_17, %c0_18], %23 {strides = array<i32>} : memref<512x128xbf16, #tpu.memory_space<vmem>>, vector<512x128xbf16>,
    } else {
    }
    return
  }
  func.func @transform_0(%arg0: i32, %arg1: i32, %arg2: i32) -> (i32, i32) {
    %c0_i32 = arith.constant 0 : i32
    return %arg0, %arg2 : i32, i32
  }
  func.func @transform_1(%arg0: i32, %arg1: i32, %arg2: i32) -> (i32, i32) {
    %c0_i32 = arith.constant 0 : i32
    return %arg2, %arg1 : i32, i32
  }
  func.func @transform_2(%arg0: i32, %arg1: i32, %arg2: i32) -> (i32, i32) {
    %c0_i32 = arith.constant 0 : i32
    %c0_i32_0 = arith.constant 0 : i32
    return %c0_i32, %arg1 : i32, i32
  }
  func.func @transform_3(%arg0: i32, %arg1: i32, %arg2: i32) -> (i32, i32) {
    %c0_i32 = arith.constant 0 : i32
    return %arg0, %arg1 : i32, i32
  }
}

module attributes {stable_mosaic.version = 11 : i64} {
  func.func @_blur_kernel(%arg0: i32, %arg1: i32, %arg2: memref<1x20x20x4xbf16, #tpu.memory_space<vmem>>, %arg3: memref<1x17x17x4xbf16, #tpu.memory_space<vmem>>) attributes {dimension_semantics = [#tpu.dimension_semantics<parallel>, #tpu.dimension_semantics<parallel>], iteration_bounds = array<i64: 2, 1>, scalar_prefetch = 0 : i64, scratch_operands = 0 : i64, tpu.core_type = #tpu.core_type<tc>, window_params = [{transform_indices = @transform_0, window_bounds = array<i64: 1, 20, 20, 4>}, {transform_indices = @transform_1, window_bounds = array<i64: 1, 17, 17, 4>}]} {
    %c0 = arith.constant 0 : index
    %c0_0 = arith.constant 0 : index
    %c0_1 = arith.constant 0 : index
    %c0_2 = arith.constant 0 : index
    %0 = vector.load %arg2[%c0, %c0_0, %c0_1, %c0_2] : memref<1x20x20x4xbf16, #tpu.memory_space<vmem>>, vector<1x20x20x4xbf16>
    %1 = vector.shape_cast %0 : vector<1x20x20x4xbf16> to vector<20x20x4xbf16>
    %2 = arith.extf %1 : vector<20x20x4xbf16> to vector<20x20x4xf32>
    %3 = vector.extract_strided_slice %2 {offsets = [0, 0, 0], sizes = [17, 20, 4], strides = [1, 1, 1]} : vector<20x20x4xf32> to vector<17x20x4xf32>
    %cst = arith.constant 1.250000e-01 : f32
    %4 = vector.broadcast %cst : f32 to vector<17x20x4xf32>
    %5 = arith.mulf %4, %3 : vector<17x20x4xf32>
    %6 = vector.extract_strided_slice %2 {offsets = [1, 0, 0], sizes = [17, 20, 4], strides = [1, 1, 1]} : vector<20x20x4xf32> to vector<17x20x4xf32>
    %cst_3 = arith.constant 3.750000e-01 : f32
    %7 = vector.broadcast %cst_3 : f32 to vector<17x20x4xf32>
    %8 = arith.mulf %7, %6 : vector<17x20x4xf32>
    %9 = arith.addf %5, %8 : vector<17x20x4xf32>
    %10 = vector.extract_strided_slice %2 {offsets = [2, 0, 0], sizes = [17, 20, 4], strides = [1, 1, 1]} : vector<20x20x4xf32> to vector<17x20x4xf32>
    %cst_4 = arith.constant 3.750000e-01 : f32
    %11 = vector.broadcast %cst_4 : f32 to vector<17x20x4xf32>
    %12 = arith.mulf %11, %10 : vector<17x20x4xf32>
    %13 = arith.addf %9, %12 : vector<17x20x4xf32>
    %14 = vector.extract_strided_slice %2 {offsets = [3, 0, 0], sizes = [17, 20, 4], strides = [1, 1, 1]} : vector<20x20x4xf32> to vector<17x20x4xf32>
    %cst_5 = arith.constant 1.250000e-01 : f32
    %15 = vector.broadcast %cst_5 : f32 to vector<17x20x4xf32>
    %16 = arith.mulf %15, %14 : vector<17x20x4xf32>
    %17 = arith.addf %13, %16 : vector<17x20x4xf32>
    %18 = vector.extract_strided_slice %17 {offsets = [0, 0, 0], sizes = [17, 17, 4], strides = [1, 1, 1]} : vector<17x20x4xf32> to vector<17x17x4xf32>
    %cst_6 = arith.constant 1.250000e-01 : f32
    %19 = vector.broadcast %cst_6 : f32 to vector<17x17x4xf32>
    %20 = arith.mulf %19, %18 : vector<17x17x4xf32>
    %21 = vector.extract_strided_slice %17 {offsets = [0, 1, 0], sizes = [17, 17, 4], strides = [1, 1, 1]} : vector<17x20x4xf32> to vector<17x17x4xf32>
    %cst_7 = arith.constant 3.750000e-01 : f32
    %22 = vector.broadcast %cst_7 : f32 to vector<17x17x4xf32>
    %23 = arith.mulf %22, %21 : vector<17x17x4xf32>
    %24 = arith.addf %20, %23 : vector<17x17x4xf32>
    %25 = vector.extract_strided_slice %17 {offsets = [0, 2, 0], sizes = [17, 17, 4], strides = [1, 1, 1]} : vector<17x20x4xf32> to vector<17x17x4xf32>
    %cst_8 = arith.constant 3.750000e-01 : f32
    %26 = vector.broadcast %cst_8 : f32 to vector<17x17x4xf32>
    %27 = arith.mulf %26, %25 : vector<17x17x4xf32>
    %28 = arith.addf %24, %27 : vector<17x17x4xf32>
    %29 = vector.extract_strided_slice %17 {offsets = [0, 3, 0], sizes = [17, 17, 4], strides = [1, 1, 1]} : vector<17x20x4xf32> to vector<17x17x4xf32>
    %cst_9 = arith.constant 1.250000e-01 : f32
    %30 = vector.broadcast %cst_9 : f32 to vector<17x17x4xf32>
    %31 = arith.mulf %30, %29 : vector<17x17x4xf32>
    %32 = arith.addf %28, %31 : vector<17x17x4xf32>
    %33 = vector.shape_cast %32 : vector<17x17x4xf32> to vector<1x17x17x4xf32>
    %34 = arith.truncf %33 : vector<1x17x17x4xf32> to vector<1x17x17x4xbf16>
    %c0_10 = arith.constant 0 : index
    %c0_11 = arith.constant 0 : index
    %c0_12 = arith.constant 0 : index
    %c0_13 = arith.constant 0 : index
    %35 = vector.load %arg3[%c0_10, %c0_11, %c0_12, %c0_13] : memref<1x17x17x4xbf16, #tpu.memory_space<vmem>>, vector<1x17x17x4xbf16>
    tpu.vector_store %arg3[%c0_10, %c0_11, %c0_12, %c0_13], %34 {strides = array<i32>} : memref<1x17x17x4xbf16, #tpu.memory_space<vmem>>, vector<1x17x17x4xbf16>,
    return
  }
  func.func @transform_0(%arg0: i32, %arg1: i32) -> (i32, i32, i32, i32) {
    %c0_i32 = arith.constant 0 : i32
    %c0_i32_0 = arith.constant 0 : i32
    %c0_i32_1 = arith.constant 0 : i32
    return %arg0, %c0_i32, %c0_i32_0, %arg1 : i32, i32, i32, i32
  }
  func.func @transform_1(%arg0: i32, %arg1: i32) -> (i32, i32, i32, i32) {
    %c0_i32 = arith.constant 0 : i32
    %c0_i32_0 = arith.constant 0 : i32
    %c0_i32_1 = arith.constant 0 : i32
    return %arg0, %c0_i32, %c0_i32_0, %arg1 : i32, i32, i32, i32
  }
}

module attributes {stable_mosaic.version = 11 : i64} {
  func.func @_blur_kernel(%arg0: i32, %arg1: i32, %arg2: memref<1x18x18x4xbf16, #tpu.memory_space<vmem>>, %arg3: memref<1x15x15x4xbf16, #tpu.memory_space<vmem>>) attributes {dimension_semantics = [#tpu.dimension_semantics<parallel>, #tpu.dimension_semantics<parallel>], iteration_bounds = array<i64: 2, 1>, scalar_prefetch = 0 : i64, scratch_operands = 0 : i64, tpu.core_type = #tpu.core_type<tc>, window_params = [{transform_indices = @transform_0, window_bounds = array<i64: 1, 18, 18, 4>}, {transform_indices = @transform_1, window_bounds = array<i64: 1, 15, 15, 4>}]} {
    %c0 = arith.constant 0 : index
    %c0_0 = arith.constant 0 : index
    %c0_1 = arith.constant 0 : index
    %c0_2 = arith.constant 0 : index
    %0 = vector.load %arg2[%c0, %c0_0, %c0_1, %c0_2] : memref<1x18x18x4xbf16, #tpu.memory_space<vmem>>, vector<1x18x18x4xbf16>
    %1 = vector.shape_cast %0 : vector<1x18x18x4xbf16> to vector<18x18x4xbf16>
    %2 = arith.extf %1 : vector<18x18x4xbf16> to vector<18x18x4xf32>
    %3 = vector.extract_strided_slice %2 {offsets = [0, 0, 0], sizes = [15, 18, 4], strides = [1, 1, 1]} : vector<18x18x4xf32> to vector<15x18x4xf32>
    %cst = arith.constant 1.250000e-01 : f32
    %4 = vector.broadcast %cst : f32 to vector<15x18x4xf32>
    %5 = arith.mulf %4, %3 : vector<15x18x4xf32>
    %6 = vector.extract_strided_slice %2 {offsets = [1, 0, 0], sizes = [15, 18, 4], strides = [1, 1, 1]} : vector<18x18x4xf32> to vector<15x18x4xf32>
    %cst_3 = arith.constant 3.750000e-01 : f32
    %7 = vector.broadcast %cst_3 : f32 to vector<15x18x4xf32>
    %8 = arith.mulf %7, %6 : vector<15x18x4xf32>
    %9 = arith.addf %5, %8 : vector<15x18x4xf32>
    %10 = vector.extract_strided_slice %2 {offsets = [2, 0, 0], sizes = [15, 18, 4], strides = [1, 1, 1]} : vector<18x18x4xf32> to vector<15x18x4xf32>
    %cst_4 = arith.constant 3.750000e-01 : f32
    %11 = vector.broadcast %cst_4 : f32 to vector<15x18x4xf32>
    %12 = arith.mulf %11, %10 : vector<15x18x4xf32>
    %13 = arith.addf %9, %12 : vector<15x18x4xf32>
    %14 = vector.extract_strided_slice %2 {offsets = [3, 0, 0], sizes = [15, 18, 4], strides = [1, 1, 1]} : vector<18x18x4xf32> to vector<15x18x4xf32>
    %cst_5 = arith.constant 1.250000e-01 : f32
    %15 = vector.broadcast %cst_5 : f32 to vector<15x18x4xf32>
    %16 = arith.mulf %15, %14 : vector<15x18x4xf32>
    %17 = arith.addf %13, %16 : vector<15x18x4xf32>
    %18 = vector.extract_strided_slice %17 {offsets = [0, 0, 0], sizes = [15, 15, 4], strides = [1, 1, 1]} : vector<15x18x4xf32> to vector<15x15x4xf32>
    %cst_6 = arith.constant 1.250000e-01 : f32
    %19 = vector.broadcast %cst_6 : f32 to vector<15x15x4xf32>
    %20 = arith.mulf %19, %18 : vector<15x15x4xf32>
    %21 = vector.extract_strided_slice %17 {offsets = [0, 1, 0], sizes = [15, 15, 4], strides = [1, 1, 1]} : vector<15x18x4xf32> to vector<15x15x4xf32>
    %cst_7 = arith.constant 3.750000e-01 : f32
    %22 = vector.broadcast %cst_7 : f32 to vector<15x15x4xf32>
    %23 = arith.mulf %22, %21 : vector<15x15x4xf32>
    %24 = arith.addf %20, %23 : vector<15x15x4xf32>
    %25 = vector.extract_strided_slice %17 {offsets = [0, 2, 0], sizes = [15, 15, 4], strides = [1, 1, 1]} : vector<15x18x4xf32> to vector<15x15x4xf32>
    %cst_8 = arith.constant 3.750000e-01 : f32
    %26 = vector.broadcast %cst_8 : f32 to vector<15x15x4xf32>
    %27 = arith.mulf %26, %25 : vector<15x15x4xf32>
    %28 = arith.addf %24, %27 : vector<15x15x4xf32>
    %29 = vector.extract_strided_slice %17 {offsets = [0, 3, 0], sizes = [15, 15, 4], strides = [1, 1, 1]} : vector<15x18x4xf32> to vector<15x15x4xf32>
    %cst_9 = arith.constant 1.250000e-01 : f32
    %30 = vector.broadcast %cst_9 : f32 to vector<15x15x4xf32>
    %31 = arith.mulf %30, %29 : vector<15x15x4xf32>
    %32 = arith.addf %28, %31 : vector<15x15x4xf32>
    %33 = vector.shape_cast %32 : vector<15x15x4xf32> to vector<1x15x15x4xf32>
    %34 = arith.truncf %33 : vector<1x15x15x4xf32> to vector<1x15x15x4xbf16>
    %c0_10 = arith.constant 0 : index
    %c0_11 = arith.constant 0 : index
    %c0_12 = arith.constant 0 : index
    %c0_13 = arith.constant 0 : index
    %35 = vector.load %arg3[%c0_10, %c0_11, %c0_12, %c0_13] : memref<1x15x15x4xbf16, #tpu.memory_space<vmem>>, vector<1x15x15x4xbf16>
    tpu.vector_store %arg3[%c0_10, %c0_11, %c0_12, %c0_13], %34 {strides = array<i32>} : memref<1x15x15x4xbf16, #tpu.memory_space<vmem>>, vector<1x15x15x4xbf16>,
    return
  }
  func.func @transform_0(%arg0: i32, %arg1: i32) -> (i32, i32, i32, i32) {
    %c0_i32 = arith.constant 0 : i32
    %c0_i32_0 = arith.constant 0 : i32
    %c0_i32_1 = arith.constant 0 : i32
    return %arg0, %c0_i32, %c0_i32_0, %arg1 : i32, i32, i32, i32
  }
  func.func @transform_1(%arg0: i32, %arg1: i32) -> (i32, i32, i32, i32) {
    %c0_i32 = arith.constant 0 : i32
    %c0_i32_0 = arith.constant 0 : i32
    %c0_i32_1 = arith.constant 0 : i32
    return %arg0, %c0_i32, %c0_i32_0, %arg1 : i32, i32, i32, i32
  }
}

module attributes {stable_mosaic.version = 11 : i64} {
  func.func @_mm_bias_act_skip_kernel(%arg0: i32, %arg1: i32, %arg2: i32, %arg3: memref<128x128xbf16, #tpu.memory_space<vmem>>, %arg4: memref<128x128xbf16, #tpu.memory_space<vmem>>, %arg5: memref<1x128xf32, #tpu.memory_space<vmem>>, %arg6: memref<128x128xbf16, #tpu.memory_space<vmem>>, %arg7: memref<128x128xbf16, #tpu.memory_space<vmem>>, %arg8: memref<128x128xf32, #tpu.memory_space<vmem>>, %arg9: memref<128x128xf32, #tpu.memory_space<vmem>>) attributes {dimension_semantics = [#tpu.dimension_semantics<parallel>, #tpu.dimension_semantics<parallel>, #tpu.dimension_semantics<arbitrary>], iteration_bounds = array<i64: 1, 1, 1>, scalar_prefetch = 0 : i64, scratch_operands = 1 : i64, tpu.core_type = #tpu.core_type<tc>, window_params = [{transform_indices = @transform_0, window_bounds = array<i64: 128, 128>}, {transform_indices = @transform_1, window_bounds = array<i64: 128, 128>}, {transform_indices = @transform_2, window_bounds = array<i64: 1, 128>}, {transform_indices = @transform_3, window_bounds = array<i64: 128, 128>}, {transform_indices = @transform_4, window_bounds = array<i64: 128, 128>}, {transform_indices = @transform_5, window_bounds = array<i64: 128, 128>}]} {
    %c0_i32 = arith.constant 0 : i32
    %0 = arith.cmpi eq, %arg2, %c0_i32 : i32
    %1 = arith.extui %0 : i1 to i32
    %c0_i32_0 = arith.constant 0 : i32
    %2 = arith.cmpi ne, %1, %c0_i32_0 : i32
    scf.if %2 {
      %cst_10 = arith.constant 0.000000e+00 : f32
      %12 = vector.broadcast %cst_10 : f32 to vector<128x128xf32>
      %c0_11 = arith.constant 0 : index
      %c0_12 = arith.constant 0 : index
      %13 = vector.load %arg9[%c0_11, %c0_12] : memref<128x128xf32, #tpu.memory_space<vmem>>, vector<128x128xf32>
      tpu.vector_store %arg9[%c0_11, %c0_12], %12 {strides = array<i32>} : memref<128x128xf32, #tpu.memory_space<vmem>>, vector<128x128xf32>,
    } else {
    }
    %c0 = arith.constant 0 : index
    %c0_1 = arith.constant 0 : index
    %3 = vector.load %arg9[%c0, %c0_1] : memref<128x128xf32, #tpu.memory_space<vmem>>, vector<128x128xf32>
    %c0_2 = arith.constant 0 : index
    %c0_3 = arith.constant 0 : index
    %4 = vector.load %arg3[%c0_2, %c0_3] : memref<128x128xbf16, #tpu.memory_space<vmem>>, vector<128x128xbf16>
    %c0_4 = arith.constant 0 : index
    %c0_5 = arith.constant 0 : index
    %5 = vector.load %arg4[%c0_4, %c0_5] : memref<128x128xbf16, #tpu.memory_space<vmem>>, vector<128x128xbf16>
    %cst = arith.constant dense<0.000000e+00> : vector<128x128xf32>
    %6 = tpu.matmul %4, %5, %cst {dimension_numbers = #tpu.dot_dimension_numbers<[1], [0], [0], [1], [0, 0, 1, 1], [], []>} : vector<128x128xbf16>, vector<128x128xbf16>, vector<128x128xf32> -> vector<128x128xf32>
    %7 = arith.addf %3, %6 : vector<128x128xf32>
    %c0_6 = arith.constant 0 : index
    %c0_7 = arith.constant 0 : index
    %8 = vector.load %arg9[%c0_6, %c0_7] : memref<128x128xf32, #tpu.memory_space<vmem>>, vector<128x128xf32>
    tpu.vector_store %arg9[%c0_6, %c0_7], %7 {strides = array<i32>} : memref<128x128xf32, #tpu.memory_space<vmem>>, vector<128x128xf32>,
    %c0_i32_8 = arith.constant 0 : i32
    %9 = arith.cmpi eq, %arg2, %c0_i32_8 : i32
    %10 = arith.extui %9 : i1 to i32
    %c0_i32_9 = arith.constant 0 : i32
    %11 = arith.cmpi ne, %10, %c0_i32_9 : i32
    scf.if %11 {
      %c0_10 = arith.constant 0 : index
      %c0_11 = arith.constant 0 : index
      %12 = vector.load %arg9[%c0_10, %c0_11] : memref<128x128xf32, #tpu.memory_space<vmem>>, vector<128x128xf32>
      %c0_12 = arith.constant 0 : index
      %c0_13 = arith.constant 0 : index
      %13 = vector.load %arg5[%c0_12, %c0_13] : memref<1x128xf32, #tpu.memory_space<vmem>>, vector<1x128xf32>
      %14 = vector.broadcast %13 : vector<1x128xf32> to vector<128x128xf32>
      %15 = arith.addf %12, %14 : vector<128x128xf32>
      %cst_14 = arith.constant 0.000000e+00 : f32
      %16 = vector.broadcast %cst_14 : f32 to vector<128x128xf32>
      %17 = arith.cmpf oge, %15, %16 : vector<128x128xf32>
      %cst_15 = arith.constant 2.000000e-01 : f32
      %18 = vector.broadcast %cst_15 : f32 to vector<128x128xf32>
      %19 = arith.mulf %18, %15 : vector<128x128xf32>
      %20 = arith.select %17, %15, %19 : vector<128x128xi1>, vector<128x128xf32>
      %c0_16 = arith.constant 0 : index
      %c0_17 = arith.constant 0 : index
      %21 = vector.load %arg6[%c0_16, %c0_17] : memref<128x128xbf16, #tpu.memory_space<vmem>>, vector<128x128xbf16>
      %c0_18 = arith.constant 0 : index
      %c0_19 = arith.constant 0 : index
      %22 = vector.load %arg7[%c0_18, %c0_19] : memref<128x128xbf16, #tpu.memory_space<vmem>>, vector<128x128xbf16>
      %cst_20 = arith.constant dense<0.000000e+00> : vector<128x128xf32>
      %23 = tpu.matmul %21, %22, %cst_20 {dimension_numbers = #tpu.dot_dimension_numbers<[1], [0], [0], [1], [0, 0, 1, 1], [], []>} : vector<128x128xbf16>, vector<128x128xbf16>, vector<128x128xf32> -> vector<128x128xf32>
      %24 = arith.addf %20, %23 : vector<128x128xf32>
      %c0_21 = arith.constant 0 : index
      %c0_22 = arith.constant 0 : index
      %25 = vector.load %arg8[%c0_21, %c0_22] : memref<128x128xf32, #tpu.memory_space<vmem>>, vector<128x128xf32>
      tpu.vector_store %arg8[%c0_21, %c0_22], %24 {strides = array<i32>} : memref<128x128xf32, #tpu.memory_space<vmem>>, vector<128x128xf32>,
    } else {
    }
    return
  }
  func.func @transform_0(%arg0: i32, %arg1: i32, %arg2: i32) -> (i32, i32) {
    %c0_i32 = arith.constant 0 : i32
    return %arg0, %arg2 : i32, i32
  }
  func.func @transform_1(%arg0: i32, %arg1: i32, %arg2: i32) -> (i32, i32) {
    %c0_i32 = arith.constant 0 : i32
    return %arg2, %arg1 : i32, i32
  }
  func.func @transform_2(%arg0: i32, %arg1: i32, %arg2: i32) -> (i32, i32) {
    %c0_i32 = arith.constant 0 : i32
    %c0_i32_0 = arith.constant 0 : i32
    return %c0_i32, %arg1 : i32, i32
  }
  func.func @transform_3(%arg0: i32, %arg1: i32, %arg2: i32) -> (i32, i32) {
    %c0_i32 = arith.constant 0 : i32
    %c0_i32_0 = arith.constant 0 : i32
    return %arg0, %c0_i32 : i32, i32
  }
  func.func @transform_4(%arg0: i32, %arg1: i32, %arg2: i32) -> (i32, i32) {
    %c0_i32 = arith.constant 0 : i32
    %c0_i32_0 = arith.constant 0 : i32
    return %c0_i32, %arg1 : i32, i32
  }
  func.func @transform_5(%arg0: i32, %arg1: i32, %arg2: i32) -> (i32, i32) {
    %c0_i32 = arith.constant 0 : i32
    return %arg0, %arg1 : i32, i32
  }
}

</mosaic_0001>

<llo_original>
// kernel: style_block_forward.4
$region0: #{style_block_forward.4}
  #allocation0 [shape = 'u32[]', space=smem, size = 0x4, offset = 0x4, fixed_abs, tag = 'smem constant byte address 0x4 - core index']
  #allocation1 [shape = 'u32[144,128]{1,0:T(1,128)}', space=vmem, size = 0x12000, scoped, tag = 'internal scratch']
  #allocation2 [shape = 'f32[512,128]{1,0:T(8,128)}', space=vmem, size = 0x40000, scoped, tag = 'scratch operand']
  %s0 = inlined_call_operand.vmem [shape: bf16[512,128], index: 0, kind: input, shape index: {}]
  %s1 = inlined_call_operand.vmem [shape: bf16[128,128], index: 1, kind: input, shape index: {}]
  %s2 = inlined_call_operand.vmem [shape: f32[1,128], index: 2, kind: input, shape index: {}]
  %s3 = inlined_call_operand.vmem [shape: bf16[512,128], index: 3, kind: output, shape index: {}]
  %s4 = sld [smem:[#allocation0]]
  $region30: #{style_block_forward.4} parent=0
    _
  %s6 = ssub.s32 1, %s4
  %s7 = scalar_select 0, %s6, %s4
  // Predicated region
  $region2: #{style_block_forward.4} parent=0 // pred_check
    _
  $region3: #{style_block_forward.4} parent=0 // pred_check_branch
    %9 = sbr.rel (0) target = $region5
  $region4: #{style_block_forward.4} parent=0 // pred_region
    _
  $region5: #{style_block_forward.4} parent=0 // pred_fallthru
    _
  // Predicated region
  $region6: #{style_block_forward.4} parent=0 // pred_check
    _
  $region7: #{style_block_forward.4} parent=0 // pred_check_branch
    %11 = sbr.rel (0) target = $region9
  $region8: #{style_block_forward.4} parent=0 // pred_region
    _
  $region9: #{style_block_forward.4} parent=0 // pred_fallthru
    _
  // Predicated region
  $region10: #{style_block_forward.4} parent=0 // pred_check
    _
  $region11: #{style_block_forward.4} parent=0 // pred_check_branch
    %13 = sbr.rel (0) target = $region13
  $region12: #{style_block_forward.4} parent=0 // pred_region
    _
  $region13: #{style_block_forward.4} parent=0 // pred_fallthru
    _
  %p15 = scmp.eq.s32.totalorder 0, 0
  // Predicated region
  $region14: #{style_block_forward.4} parent=0 // pred_check
    %p16 = pneg %p15
  $region15: #{style_block_forward.4} parent=0 // pred_check_branch
    %18 = sbr.rel (%p16) target = $region17
  $region16: #{style_block_forward.4} parent=0 // pred_region
    %19 = vst [vmem:[#allocation2] sm:$0xff] 0.0
    %20 = vst [vmem:[#allocation2 + $0x8] sm:$0xff] 0.0
    %21 = vst [vmem:[#allocation2 + $0x10] sm:$0xff] 0.0
    %22 = vst [vmem:[#allocation2 + $0x18] sm:$0xff] 0.0
    %23 = vst [vmem:[#allocation2 + $0x20] sm:$0xff] 0.0
    %24 = vst [vmem:[#allocation2 + $0x28] sm:$0xff] 0.0
    %25 = vst [vmem:[#allocation2 + $0x30] sm:$0xff] 0.0
    %26 = vst [vmem:[#allocation2 + $0x38] sm:$0xff] 0.0
    %27 = vst [vmem:[#allocation2 + $0x40] sm:$0xff] 0.0
    %28 = vst [vmem:[#allocation2 + $0x48] sm:$0xff] 0.0
    %29 = vst [vmem:[#allocation2 + $0x50] sm:$0xff] 0.0
    %30 = vst [vmem:[#allocation2 + $0x58] sm:$0xff] 0.0
    %31 = vst [vmem:[#allocation2 + $0x60] sm:$0xff] 0.0
    %32 = vst [vmem:[#allocation2 + $0x68] sm:$0xff] 0.0
    %33 = vst [vmem:[#allocation2 + $0x70] sm:$0xff] 0.0
    %34 = vst [vmem:[#allocation2 + $0x78] sm:$0xff] 0.0
    %35 = vst [vmem:[#allocation2 + $0x80] sm:$0xff] 0.0
    %36 = vst [vmem:[#allocation2 + $0x88] sm:$0xff] 0.0
    %37 = vst [vmem:[#allocation2 + $0x90] sm:$0xff] 0.0
    %38 = vst [vmem:[#allocation2 + $0x98] sm:$0xff] 0.0
    %39 = vst [vmem:[#allocation2 + $0xa0] sm:$0xff] 0.0
    %40 = vst [vmem:[#allocation2 + $0xa8] sm:$0xff] 0.0
    %41 = vst [vmem:[#allocation2 + $0xb0] sm:$0xff] 0.0
    %42 = vst [vmem:[#allocation2 + $0xb8] sm:$0xff] 0.0
    %43 = vst [vmem:[#allocation2 + $0xc0] sm:$0xff] 0.0
    %44 = vst [vmem:[#allocation2 + $0xc8] sm:$0xff] 0.0
    %45 = vst [vmem:[#allocation2 + $0xd0] sm:$0xff] 0.0
    %46 = vst [vmem:[#allocation2 + $0xd8] sm:$0xff] 0.0
    %47 = vst [vmem:[#allocation2 + $0xe0] sm:$0xff] 0.0
    %48 = vst [vmem:[#allocation2 + $0xe8] sm:$0xff] 0.0
    %49 = vst [vmem:[#allocation2 + $0xf0] sm:$0xff] 0.0
    %50 = vst [vmem:[#allocation2 + $0xf8] sm:$0xff] 0.0
    %51 = vst [vmem:[#allocation2 + $0x100] sm:$0xff] 0.0
    %52 = vst [vmem:[#allocation2 + $0x108] sm:$0xff] 0.0
    %53 = vst [vmem:[#allocation2 + $0x110] sm:$0xff] 0.0
    %54 = vst [vmem:[#allocation2 + $0x118] sm:$0xff] 0.0
    %55 = vst [vmem:[#allocation2 + $0x120] sm:$0xff] 0.0
    %56 = vst [vmem:[#allocation2 + $0x128] sm:$0xff] 0.0
    %57 = vst [vmem:[#allocation2 + $0x130] sm:$0xff] 0.0
    %58 = vst [vmem:[#allocation2 + $0x138] sm:$0xff] 0.0
    %59 = vst [vmem:[#allocation2 + $0x140] sm:$0xff] 0.0
    %60 = vst [vmem:[#allocation2 + $0x148] sm:$0xff] 0.0
    %61 = vst [vmem:[#allocation2 + $0x150] sm:$0xff] 0.0
    %62 = vst [vmem:[#allocation2 + $0x158] sm:$0xff] 0.0
    %63 = vst [vmem:[#allocation2 + $0x160] sm:$0xff] 0.0
    %64 = vst [vmem:[#allocation2 + $0x168] sm:$0xff] 0.0
    %65 = vst [vmem:[#allocation2 + $0x170] sm:$0xff] 0.0
    %66 = vst [vmem:[#allocation2 + $0x178] sm:$0xff] 0.0
    %67 = vst [vmem:[#allocation2 + $0x180] sm:$0xff] 0.0
    %68 = vst [vmem:[#allocation2 + $0x188] sm:$0xff] 0.0
    %69 = vst [vmem:[#allocation2 + $0x190] sm:$0xff] 0.0
    %70 = vst [vmem:[#allocation2 + $0x198] sm:$0xff] 0.0
    %71 = vst [vmem:[#allocation2 + $0x1a0] sm:$0xff] 0.0
    %72 = vst [vmem:[#allocation2 + $0x1a8] sm:$0xff] 0.0
    %73 = vst [vmem:[#allocation2 + $0x1b0] sm:$0xff] 0.0
    %74 = vst [vmem:[#allocation2 + $0x1b8] sm:$0xff] 0.0
    %75 = vst [vmem:[#allocation2 + $0x1c0] sm:$0xff] 0.0
    %76 = vst [vmem:[#allocation2 + $0x1c8] sm:$0xff] 0.0
    %77 = vst [vmem:[#allocation2 + $0x1d0] sm:$0xff] 0.0
    %78 = vst [vmem:[#allocation2 + $0x1d8] sm:$0xff] 0.0
    %79 = vst [vmem:[#allocation2 + $0x1e0] sm:$0xff] 0.0
    %80 = vst [vmem:[#allocation2 + $0x1e8] sm:$0xff] 0.0
    %81 = vst [vmem:[#allocation2 + $0x1f0] sm:$0xff] 0.0
    %82 = vst [vmem:[#allocation2 + $0x1f8] sm:$0xff] 0.0
  $region17: #{style_block_forward.4} parent=0 // pred_fallthru
    _
  %v83 = vld [vmem:[#allocation2] sm:$0xff]
  %v84 = vld [vmem:[#allocation2 + $0x8] sm:$0xff]
  %v85 = vld [vmem:[#allocation2 + $0x10] sm:$0xff]
  %v86 = vld [vmem:[#allocation2 + $0x18] sm:$0xff]
  %v87 = vld [vmem:[#allocation2 + $0x20] sm:$0xff]
  %v88 = vld [vmem:[#allocation2 + $0x28] sm:$0xff]
  %v89 = vld [vmem:[#allocation2 + $0x30] sm:$0xff]
  %v90 = vld [vmem:[#allocation2 + $0x38] sm:$0xff]
  %v91 = vld [vmem:[#allocation2 + $0x40] sm:$0xff]
  %v92 = vld [vmem:[#allocation2 + $0x48] sm:$0xff]
  %v93 = vld [vmem:[#allocation2 + $0x50] sm:$0xff]
  %v94 = vld [vmem:[#allocation2 + $0x58] sm:$0xff]
  %v95 = vld [vmem:[#allocation2 + $0x60] sm:$0xff]
  %v96 = vld [vmem:[#allocation2 + $0x68] sm:$0xff]
  %v97 = vld [vmem:[#allocation2 + $0x70] sm:$0xff]
  %v98 = vld [vmem:[#allocation2 + $0x78] sm:$0xff]
  %v99 = vld [vmem:[#allocation2 + $0x80] sm:$0xff]
  %v100 = vld [vmem:[#allocation2 + $0x88] sm:$0xff]
  %v101 = vld [vmem:[#allocation2 + $0x90] sm:$0xff]
  %v102 = vld [vmem:[#allocation2 + $0x98] sm:$0xff]
  %v103 = vld [vmem:[#allocation2 + $0xa0] sm:$0xff]
  %v104 = vld [vmem:[#allocation2 + $0xa8] sm:$0xff]
  %v105 = vld [vmem:[#allocation2 + $0xb0] sm:$0xff]
  %v106 = vld [vmem:[#allocation2 + $0xb8] sm:$0xff]
  %v107 = vld [vmem:[#allocation2 + $0xc0] sm:$0xff]
  %v108 = vld [vmem:[#allocation2 + $0xc8] sm:$0xff]
  %v109 = vld [vmem:[#allocation2 + $0xd0] sm:$0xff]
  %v110 = vld [vmem:[#allocation2 + $0xd8] sm:$0xff]
  %v111 = vld [vmem:[#allocation2 + $0xe0] sm:$0xff]
  %v112 = vld [vmem:[#allocation2 + $0xe8] sm:$0xff]
  %v113 = vld [vmem:[#allocation2 + $0xf0] sm:$0xff]
  %v114 = vld [vmem:[#allocation2 + $0xf8] sm:$0xff]
  %v115 = vld [vmem:[#allocation2 + $0x100] sm:$0xff]
  %v116 = vld [vmem:[#allocation2 + $0x108] sm:$0xff]
  %v117 = vld [vmem:[#allocation2 + $0x110] sm:$0xff]
  %v118 = vld [vmem:[#allocation2 + $0x118] sm:$0xff]
  %v119 = vld [vmem:[#allocation2 + $0x120] sm:$0xff]
  %v120 = vld [vmem:[#allocation2 + $0x128] sm:$0xff]
  %v121 = vld [vmem:[#allocation2 + $0x130] sm:$0xff]
  %v122 = vld [vmem:[#allocation2 + $0x138] sm:$0xff]
  %v123 = vld [vmem:[#allocation2 + $0x140] sm:$0xff]
  %v124 = vld [vmem:[#allocation2 + $0x148] sm:$0xff]
  %v125 = vld [vmem:[#allocation2 + $0x150] sm:$0xff]
  %v126 = vld [vmem:[#allocation2 + $0x158] sm:$0xff]
  %v127 = vld [vmem:[#allocation2 + $0x160] sm:$0xff]
  %v128 = vld [vmem:[#allocation2 + $0x168] sm:$0xff]
  %v129 = vld [vmem:[#allocation2 + $0x170] sm:$0xff]
  %v130 = vld [vmem:[#allocation2 + $0x178] sm:$0xff]
  %v131 = vld [vmem:[#allocation2 + $0x180] sm:$0xff]
  %v132 = vld [vmem:[#allocation2 + $0x188] sm:$0xff]
  %v133 = vld [vmem:[#allocation2 + $0x190] sm:$0xff]
  %v134 = vld [vmem:[#allocation2 + $0x198] sm:$0xff]
  %v135 = vld [vmem:[#allocation2 + $0x1a0] sm:$0xff]
  %v136 = vld [vmem:[#allocation2 + $0x1a8] sm:$0xff]
  %v137 = vld [vmem:[#allocation2 + $0x1b0] sm:$0xff]
  %v138 = vld [vmem:[#allocation2 + $0x1b8] sm:$0xff]
  %v139 = vld [vmem:[#allocation2 + $0x1c0] sm:$0xff]
  %v140 = vld [vmem:[#allocation2 + $0x1c8] sm:$0xff]
  %v141 = vld [vmem:[#allocation2 + $0x1d0] sm:$0xff]
  %v142 = vld [vmem:[#allocation2 + $0x1d8] sm:$0xff]
  %v143 = vld [vmem:[#allocation2 + $0x1e0] sm:$0xff]
  %v144 = vld [vmem:[#allocation2 + $0x1e8] sm:$0xff]
  %v145 = vld [vmem:[#allocation2 + $0x1f0] sm:$0xff]
  %v146 = vld [vmem:[#allocation2 + $0x1f8] sm:$0xff]
  %v147 = vld [vmem:[%s0] sm:$0xf]
  %v148 = vld [vmem:[%s0 + $0x4] sm:$0xf]
  %v149 = vld [vmem:[%s0 + $0x8] sm:$0xf]
  %v150 = vld [vmem:[%s0 + $0xc] sm:$0xf]
  %v151 = vld [vmem:[%s0 + $0x10] sm:$0xf]
  %v152 = vld [vmem:[%s0 + $0x14] sm:$0xf]
  %v153 = vld [vmem:[%s0 + $0x18] sm:$0xf]
  %v154 = vld [vmem:[%s0 + $0x1c] sm:$0xf]
  %v155 = vld [vmem:[%s0 + $0x20] sm:$0xf]
  %v156 = vld [vmem:[%s0 + $0x24] sm:$0xf]
  %v157 = vld [vmem:[%s0 + $0x28] sm:$0xf]
  %v158 = vld [vmem:[%s0 + $0x2c] sm:$0xf]
  %v159 = vld [vmem:[%s0 + $0x30] sm:$0xf]
  %v160 = vld [vmem:[%s0 + $0x34] sm:$0xf]
  %v161 = vld [vmem:[%s0 + $0x38] sm:$0xf]
  %v162 = vld [vmem:[%s0 + $0x3c] sm:$0xf]
  %v163 = vld [vmem:[%s0 + $0x40] sm:$0xf]
  %v164 = vld [vmem:[%s0 + $0x44] sm:$0xf]
  %v165 = vld [vmem:[%s0 + $0x48] sm:$0xf]
  %v166 = vld [vmem:[%s0 + $0x4c] sm:$0xf]
  %v167 = vld [vmem:[%s0 + $0x50] sm:$0xf]
  %v168 = vld [vmem:[%s0 + $0x54] sm:$0xf]
  %v169 = vld [vmem:[%s0 + $0x58] sm:$0xf]
  %v170 = vld [vmem:[%s0 + $0x5c] sm:$0xf]
  %v171 = vld [vmem:[%s0 + $0x60] sm:$0xf]
  %v172 = vld [vmem:[%s0 + $0x64] sm:$0xf]
  %v173 = vld [vmem:[%s0 + $0x68] sm:$0xf]
  %v174 = vld [vmem:[%s0 + $0x6c] sm:$0xf]
  %v175 = vld [vmem:[%s0 + $0x70] sm:$0xf]
  %v176 = vld [vmem:[%s0 + $0x74] sm:$0xf]
  %v177 = vld [vmem:[%s0 + $0x78] sm:$0xf]
  %v178 = vld [vmem:[%s0 + $0x7c] sm:$0xf]
  %v179 = vld [vmem:[%s0 + $0x80] sm:$0xf]
  %v180 = vld [vmem:[%s0 + $0x84] sm:$0xf]
  %v181 = vld [vmem:[%s0 + $0x88] sm:$0xf]
  %v182 = vld [vmem:[%s0 + $0x8c] sm:$0xf]
  %v183 = vld [vmem:[%s0 + $0x90] sm:$0xf]
  %v184 = vld [vmem:[%s0 + $0x94] sm:$0xf]
  %v185 = vld [vmem:[%s0 + $0x98] sm:$0xf]
  %v186 = vld [vmem:[%s0 + $0x9c] sm:$0xf]
  %v187 = vld [vmem:[%s0 + $0xa0] sm:$0xf]
  %v188 = vld [vmem:[%s0 + $0xa4] sm:$0xf]
  %v189 = vld [vmem:[%s0 + $0xa8] sm:$0xf]
  %v190 = vld [vmem:[%s0 + $0xac] sm:$0xf]
  %v191 = vld [vmem:[%s0 + $0xb0] sm:$0xf]
  %v192 = vld [vmem:[%s0 + $0xb4] sm:$0xf]
  %v193 = vld [vmem:[%s0 + $0xb8] sm:$0xf]
  %v194 = vld [vmem:[%s0 + $0xbc] sm:$0xf]
  %v195 = vld [vmem:[%s0 + $0xc0] sm:$0xf]
  %v196 = vld [vmem:[%s0 + $0xc4] sm:$0xf]
  %v197 = vld [vmem:[%s0 + $0xc8] sm:$0xf]
  %v198 = vld [vmem:[%s0 + $0xcc] sm:$0xf]
  %v199 = vld [vmem:[%s0 + $0xd0] sm:$0xf]
  %v200 = vld [vmem:[%s0 + $0xd4] sm:$0xf]
  %v201 = vld [vmem:[%s0 + $0xd8] sm:$0xf]
  %v202 = vld [vmem:[%s0 + $0xdc] sm:$0xf]
  %v203 = vld [vmem:[%s0 + $0xe0] sm:$0xf]
  %v204 = vld [vmem:[%s0 + $0xe4] sm:$0xf]
  %v205 = vld [vmem:[%s0 + $0xe8] sm:$0xf]
  %v206 = vld [vmem:[%s0 + $0xec] sm:$0xf]
  %v207 = vld [vmem:[%s0 + $0xf0] sm:$0xf]
  %v208 = vld [vmem:[%s0 + $0xf4] sm:$0xf]
  %v209 = vld [vmem:[%s0 + $0xf8] sm:$0xf]
  %v210 = vld [vmem:[%s0 + $0xfc] sm:$0xf]
  %v211 = vld [vmem:[%s1] sm:$0xf]
  %v212 = vld [vmem:[%s1 + $0x4] sm:$0xf]
  %v213 = vld [vmem:[%s1 + $0x8] sm:$0xf]
  %v214 = vld [vmem:[%s1 + $0xc] sm:$0xf]
  %v215 = vld [vmem:[%s1 + $0x10] sm:$0xf]
  %v216 = vld [vmem:[%s1 + $0x14] sm:$0xf]
  %v217 = vld [vmem:[%s1 + $0x18] sm:$0xf]
  %v218 = vld [vmem:[%s1 + $0x1c] sm:$0xf]
  %v219 = vld [vmem:[%s1 + $0x20] sm:$0xf]
  %v220 = vld [vmem:[%s1 + $0x24] sm:$0xf]
  %v221 = vld [vmem:[%s1 + $0x28] sm:$0xf]
  %v222 = vld [vmem:[%s1 + $0x2c] sm:$0xf]
  %v223 = vld [vmem:[%s1 + $0x30] sm:$0xf]
  %v224 = vld [vmem:[%s1 + $0x34] sm:$0xf]
  %v225 = vld [vmem:[%s1 + $0x38] sm:$0xf]
  %v226 = vld [vmem:[%s1 + $0x3c] sm:$0xf]
  %v291 = vunpack.c.l.b16 %v147
  %v292 = vunpack.c.l.b16 %v148
  %v293 = vunpack.c.l.b16 %v149
  %v294 = vunpack.c.l.b16 %v150
  %v295 = vunpack.c.l.b16 %v151
  %v296 = vunpack.c.l.b16 %v152
  %v297 = vunpack.c.l.b16 %v153
  %v298 = vunpack.c.l.b16 %v154
  %v299 = vunpack.c.l.b16 %v155
  %v300 = vunpack.c.l.b16 %v156
  %v301 = vunpack.c.l.b16 %v157
  %v302 = vunpack.c.l.b16 %v158
  %v303 = vunpack.c.l.b16 %v159
  %v304 = vunpack.c.l.b16 %v160
  %v305 = vunpack.c.l.b16 %v161
  %v306 = vunpack.c.l.b16 %v162
  %v307 = vunpack.c.l.b16 %v163
  %v308 = vunpack.c.l.b16 %v164
  %v309 = vunpack.c.l.b16 %v165
  %v310 = vunpack.c.l.b16 %v166
  %v311 = vunpack.c.l.b16 %v167
  %v312 = vunpack.c.l.b16 %v168
  %v313 = vunpack.c.l.b16 %v169
  %v314 = vunpack.c.l.b16 %v170
  %v315 = vunpack.c.l.b16 %v171
  %v316 = vunpack.c.l.b16 %v172
  %v317 = vunpack.c.l.b16 %v173
  %v318 = vunpack.c.l.b16 %v174
  %v319 = vunpack.c.l.b16 %v175
  %v320 = vunpack.c.l.b16 %v176
  %v321 = vunpack.c.l.b16 %v177
  %v322 = vunpack.c.l.b16 %v178
  %v323 = vunpack.c.l.b16 %v179
  %v324 = vunpack.c.l.b16 %v180
  %v325 = vunpack.c.l.b16 %v181
  %v326 = vunpack.c.l.b16 %v182
  %v327 = vunpack.c.l.b16 %v183
  %v328 = vunpack.c.l.b16 %v184
  %v329 = vunpack.c.l.b16 %v185
  %v330 = vunpack.c.l.b16 %v186
  %v331 = vunpack.c.l.b16 %v187
  %v332 = vunpack.c.l.b16 %v188
  %v333 = vunpack.c.l.b16 %v189
  %v334 = vunpack.c.l.b16 %v190
  %v335 = vunpack.c.l.b16 %v191
  %v336 = vunpack.c.l.b16 %v192
  %v337 = vunpack.c.l.b16 %v193
  %v338 = vunpack.c.l.b16 %v194
  %v339 = vunpack.c.l.b16 %v195
  %v340 = vunpack.c.l.b16 %v196
  %v341 = vunpack.c.l.b16 %v197
  %v342 = vunpack.c.l.b16 %v198
  %v343 = vunpack.c.l.b16 %v199
  %v344 = vunpack.c.l.b16 %v200
  %v345 = vunpack.c.l.b16 %v201
  %v346 = vunpack.c.l.b16 %v202
  %v347 = vunpack.c.l.b16 %v203
  %v348 = vunpack.c.l.b16 %v204
  %v349 = vunpack.c.l.b16 %v205
  %v350 = vunpack.c.l.b16 %v206
  %v351 = vunpack.c.l.b16 %v207
  %v352 = vunpack.c.l.b16 %v208
  %v353 = vunpack.c.l.b16 %v209
  %v354 = vunpack.c.l.b16 %v210
  %v355 = vpack.c.b16 %v292, %v291
  %v356 = vpack.c.b16 %v294, %v293
  %v357 = vpack.c.b16 %v296, %v295
  %v358 = vpack.c.b16 %v298, %v297
  %v359 = vpack.c.b16 %v300, %v299
  %v360 = vpack.c.b16 %v302, %v301
  %v361 = vpack.c.b16 %v304, %v303
  %v362 = vpack.c.b16 %v306, %v305
  %v363 = vpack.c.b16 %v308, %v307
  %v364 = vpack.c.b16 %v310, %v309
  %v365 = vpack.c.b16 %v312, %v311
  %v366 = vpack.c.b16 %v314, %v313
  %v367 = vpack.c.b16 %v316, %v315
  %v368 = vpack.c.b16 %v318, %v317
  %v369 = vpack.c.b16 %v320, %v319
  %v370 = vpack.c.b16 %v322, %v321
  %v371 = vpack.c.b16 %v324, %v323
  %v372 = vpack.c.b16 %v326, %v325
  %v373 = vpack.c.b16 %v328, %v327
  %v374 = vpack.c.b16 %v330, %v329
  %v375 = vpack.c.b16 %v332, %v331
  %v376 = vpack.c.b16 %v334, %v333
  %v377 = vpack.c.b16 %v336, %v335
  %v378 = vpack.c.b16 %v338, %v337
  %v379 = vpack.c.b16 %v340, %v339
  %v380 = vpack.c.b16 %v342, %v341
  %v381 = vpack.c.b16 %v344, %v343
  %v382 = vpack.c.b16 %v346, %v345
  %v383 = vpack.c.b16 %v348, %v347
  %v384 = vpack.c.b16 %v350, %v349
  %v385 = vpack.c.b16 %v352, %v351
  %v386 = vpack.c.b16 %v354, %v353
  %v435 = vunpack.c.l.b16 %v211
  %v436 = vunpack.c.l.b16 %v212
  %v437 = vunpack.c.l.b16 %v213
  %v438 = vunpack.c.l.b16 %v214
  %v439 = vunpack.c.l.b16 %v215
  %v440 = vunpack.c.l.b16 %v216
  %v441 = vunpack.c.l.b16 %v217
  %v442 = vunpack.c.l.b16 %v218
  %v443 = vunpack.c.l.b16 %v219
  %v444 = vunpack.c.l.b16 %v220
  %v445 = vunpack.c.l.b16 %v221
  %v446 = vunpack.c.l.b16 %v222
  %v447 = vunpack.c.l.b16 %v223
  %v448 = vunpack.c.l.b16 %v224
  %v449 = vunpack.c.l.b16 %v225
  %v450 = vunpack.c.l.b16 %v226
  %v451 = vpack.c.b16 %v436, %v435
  %v452 = vpack.c.b16 %v438, %v437
  %v453 = vpack.c.b16 %v440, %v439
  %v454 = vpack.c.b16 %v442, %v441
  %v455 = vpack.c.b16 %v444, %v443
  %v456 = vpack.c.b16 %v446, %v445
  %v457 = vpack.c.b16 %v448, %v447
  %v458 = vpack.c.b16 %v450, %v449
  %467 = vmatprep.subr.bf16.mxu0 0
  %468 = vmatpush1.bf16.msra.mxu0 %v451
  %469 = vmatprep.subr.bf16.mxu0 0
  %470 = vmatpush1.bf16.msra.mxu0 %v452
  %471 = vmatprep.subr.bf16.mxu0 0
  %472 = vmatpush1.bf16.msra.mxu0 %v453
  %473 = vmatprep.subr.bf16.mxu0 0
  %474 = vmatpush1.bf16.msra.mxu0 %v454
  %475 = vmatprep.subr.bf16.mxu0 0
  %476 = vmatpush1.bf16.msra.mxu0 %v455
  %477 = vmatprep.subr.bf16.mxu0 0
  %478 = vmatpush1.bf16.msra.mxu0 %v456
  %479 = vmatprep.subr.bf16.mxu0 0
  %480 = vmatpush1.bf16.msra.mxu0 %v457
  %481 = vmatprep.subr.bf16.mxu0 0
  %482 = vmatpush1.bf16.msra.mxu0 %v458
  %483 = vmatprep.subr.bf16.mxu0 0
  %484 = vmatpush1.bf16.msra.mxu0 0
  %485 = vmatprep.subr.bf16.mxu0 0
  %486 = vmatpush1.bf16.msra.mxu0 0
  %487 = vmatprep.subr.bf16.mxu0 0
  %488 = vmatpush1.bf16.msra.mxu0 0
  %489 = vmatprep.subr.bf16.mxu0 0
  %490 = vmatpush1.bf16.msra.mxu0 0
  %491 = vmatprep.subr.bf16.mxu0 0
  %492 = vmatpush1.bf16.msra.mxu0 0
  %493 = vmatprep.subr.bf16.mxu0 0
  %494 = vmatpush1.bf16.msra.mxu0 0
  %495 = vmatprep.subr.bf16.mxu0 0
  %496 = vmatpush1.bf16.msra.mxu0 0
  %497 = vmatprep.subr.bf16.mxu0 0
  %498 = vmatpush1.bf16.msra.mxu0 0
  %499 = vmatprep.mubr.bf16.mxu0 0
  %500 = vmatmul.mubr.bf16.gmra.mrb[0].mxu0 %v355
  %v501 = vpop.f32.mrb[0].mxu0
  %v502 = vadd.f32 0.0, %v501
  %v503 = vpop.f32.mrb[0].mxu0
  %v504 = vpop.f32.mrb[0].mxu0
  %v505 = vadd.f32 0.0, %v504
  %v506 = vpop.f32.mrb[0].mxu0
  %507 = vmatprep.mubr.bf16.mxu0 0
  %508 = vmatmul.mubr.bf16.gmra.mrb[0].mxu0 %v356
  %v509 = vpop.f32.mrb[0].mxu0
  %v510 = vadd.f32 0.0, %v509
  %v511 = vpop.f32.mrb[0].mxu0
  %v512 = vpop.f32.mrb[0].mxu0
  %v513 = vadd.f32 0.0, %v512
  %v514 = vpop.f32.mrb[0].mxu0
  %515 = vmatprep.mubr.bf16.mxu0 0
  %516 = vmatmul.mubr.bf16.gmra.mrb[0].mxu0 %v357
  %v517 = vpop.f32.mrb[0].mxu0
  %v518 = vadd.f32 0.0, %v517
  %v519 = vpop.f32.mrb[0].mxu0
  %v520 = vpop.f32.mrb[0].mxu0
  %v521 = vadd.f32 0.0, %v520
  %v522 = vpop.f32.mrb[0].mxu0
  %523 = vmatprep.mubr.bf16.mxu0 0
  %524 = vmatmul.mubr.bf16.gmra.mrb[0].mxu0 %v358
  %v525 = vpop.f32.mrb[0].mxu0
  %v526 = vadd.f32 0.0, %v525
  %v527 = vpop.f32.mrb[0].mxu0
  %v528 = vpop.f32.mrb[0].mxu0
  %v529 = vadd.f32 0.0, %v528
  %v530 = vpop.f32.mrb[0].mxu0
  %531 = vmatprep.mubr.bf16.mxu0 0
  %532 = vmatmul.mubr.bf16.gmra.mrb[0].mxu0 %v359
  %v533 = vpop.f32.mrb[0].mxu0
  %v534 = vadd.f32 0.0, %v533
  %v535 = vpop.f32.mrb[0].mxu0
  %v536 = vpop.f32.mrb[0].mxu0
  %v537 = vadd.f32 0.0, %v536
  %v538 = vpop.f32.mrb[0].mxu0
  %539 = vmatprep.mubr.bf16.mxu0 0
  %540 = vmatmul.mubr.bf16.gmra.mrb[0].mxu0 %v360
  %v541 = vpop.f32.mrb[0].mxu0
  %v542 = vadd.f32 0.0, %v541
  %v543 = vpop.f32.mrb[0].mxu0
  %v544 = vpop.f32.mrb[0].mxu0
  %v545 = vadd.f32 0.0, %v544
  %v546 = vpop.f32.mrb[0].mxu0
  %547 = vmatprep.mubr.bf16.mxu0 0
  %548 = vmatmul.mubr.bf16.gmra.mrb[0].mxu0 %v361
  %v549 = vpop.f32.mrb[0].mxu0
  %v550 = vadd.f32 0.0, %v549
  %v551 = vpop.f32.mrb[0].mxu0
  %v552 = vpop.f32.mrb[0].mxu0
  %v553 = vadd.f32 0.0, %v552
  %v554 = vpop.f32.mrb[0].mxu0
  %555 = vmatprep.mubr.bf16.mxu0 0
  %556 = vmatmul.mubr.bf16.gmra.mrb[0].mxu0 %v362
  %v557 = vpop.f32.mrb[0].mxu0
  %v558 = vadd.f32 0.0, %v557
  %v559 = vpop.f32.mrb[0].mxu0
  %v560 = vpop.f32.mrb[0].mxu0
  %v561 = vadd.f32 0.0, %v560
  %v562 = vpop.f32.mrb[0].mxu0
  %563 = vmatprep.mubr.bf16.mxu0 0
  %564 = vmatmul.mubr.bf16.gmra.mrb[0].mxu0 %v363
  %v565 = vpop.f32.mrb[0].mxu0
  %v566 = vadd.f32 0.0, %v565
  %v567 = vpop.f32.mrb[0].mxu0
  %v568 = vpop.f32.mrb[0].mxu0
  %v569 = vadd.f32 0.0, %v568
  %v570 = vpop.f32.mrb[0].mxu0
  %571 = vmatprep.mubr.bf16.mxu0 0
  %572 = vmatmul.mubr.bf16.gmra.mrb[0].mxu0 %v364
  %v573 = vpop.f32.mrb[0].mxu0
  %v574 = vadd.f32 0.0, %v573
  %v575 = vpop.f32.mrb[0].mxu0
  %v576 = vpop.f32.mrb[0].mxu0
  %v577 = vadd.f32 0.0, %v576
  %v578 = vpop.f32.mrb[0].mxu0
  %579 = vmatprep.mubr.bf16.mxu0 0
  %580 = vmatmul.mubr.bf16.gmra.mrb[0].mxu0 %v365
  %v581 = vpop.f32.mrb[0].mxu0
  %v582 = vadd.f32 0.0, %v581
  %v583 = vpop.f32.mrb[0].mxu0
  %v584 = vpop.f32.mrb[0].mxu0
  %v585 = vadd.f32 0.0, %v584
  %v586 = vpop.f32.mrb[0].mxu0
  %587 = vmatprep.mubr.bf16.mxu0 0
  %588 = vmatmul.mubr.bf16.gmra.mrb[0].mxu0 %v366
  %v589 = vpop.f32.mrb[0].mxu0
  %v590 = vadd.f32 0.0, %v589
  %v591 = vpop.f32.mrb[0].mxu0
  %v592 = vpop.f32.mrb[0].mxu0
  %v593 = vadd.f32 0.0, %v592
  %v594 = vpop.f32.mrb[0].mxu0
  %595 = vmatprep.mubr.bf16.mxu0 0
  %596 = vmatmul.mubr.bf16.gmra.mrb[0].mxu0 %v367
  %v597 = vpop.f32.mrb[0].mxu0
  %v598 = vadd.f32 0.0, %v597
  %v599 = vpop.f32.mrb[0].mxu0
  %v600 = vpop.f32.mrb[0].mxu0
  %v601 = vadd.f32 0.0, %v600
  %v602 = vpop.f32.mrb[0].mxu0
  %603 = vmatprep.mubr.bf16.mxu0 0
  %604 = vmatmul.mubr.bf16.gmra.mrb[0].mxu0 %v368
  %v605 = vpop.f32.mrb[0].mxu0
  %v606 = vadd.f32 0.0, %v605
  %v607 = vpop.f32.mrb[0].mxu0
  %v608 = vpop.f32.mrb[0].mxu0
  %v609 = vadd.f32 0.0, %v608
  %v610 = vpop.f32.mrb[0].mxu0
  %611 = vmatprep.mubr.bf16.mxu0 0
  %612 = vmatmul.mubr.bf16.gmra.mrb[0].mxu0 %v369
  %v613 = vpop.f32.mrb[0].mxu0
  %v614 = vadd.f32 0.0, %v613
  %v615 = vpop.f32.mrb[0].mxu0
  %v616 = vpop.f32.mrb[0].mxu0
  %v617 = vadd.f32 0.0, %v616
  %v618 = vpop.f32.mrb[0].mxu0
  %619 = vmatprep.mubr.bf16.mxu0 0
  %620 = vmatmul.mubr.bf16.gmra.mrb[0].mxu0 %v370
  %v621 = vpop.f32.mrb[0].mxu0
  %v622 = vadd.f32 0.0, %v621
  %v623 = vpop.f32.mrb[0].mxu0
  %v624 = vpop.f32.mrb[0].mxu0
  %v625 = vadd.f32 0.0, %v624
  %v626 = vpop.f32.mrb[0].mxu0
  %627 = vmatprep.mubr.bf16.mxu0 0
  %628 = vmatmul.mubr.bf16.gmra.mrb[0].mxu0 %v371
  %v629 = vpop.f32.mrb[0].mxu0
  %v630 = vadd.f32 0.0, %v629
  %v631 = vpop.f32.mrb[0].mxu0
  %v632 = vpop.f32.mrb[0].mxu0
  %v633 = vadd.f32 0.0, %v632
  %v634 = vpop.f32.mrb[0].mxu0
  %635 = vmatprep.mubr.bf16.mxu0 0
  %636 = vmatmul.mubr.bf16.gmra.mrb[0].mxu0 %v372
  %v637 = vpop.f32.mrb[0].mxu0
  %v638 = vadd.f32 0.0, %v637
  %v639 = vpop.f32.mrb[0].mxu0
  %v640 = vpop.f32.mrb[0].mxu0
  %v641 = vadd.f32 0.0, %v640
  %v642 = vpop.f32.mrb[0].mxu0
  %643 = vmatprep.mubr.bf16.mxu0 0
  %644 = vmatmul.mubr.bf16.gmra.mrb[0].mxu0 %v373
  %v645 = vpop.f32.mrb[0].mxu0
  %v646 = vadd.f32 0.0, %v645
  %v647 = vpop.f32.mrb[0].mxu0
  %v648 = vpop.f32.mrb[0].mxu0
  %v649 = vadd.f32 0.0, %v648
  %v650 = vpop.f32.mrb[0].mxu0
  %651 = vmatprep.mubr.bf16.mxu0 0
  %652 = vmatmul.mubr.bf16.gmra.mrb[0].mxu0 %v374
  %v653 = vpop.f32.mrb[0].mxu0
  %v654 = vadd.f32 0.0, %v653
  %v655 = vpop.f32.mrb[0].mxu0
  %v656 = vpop.f32.mrb[0].mxu0
  %v657 = vadd.f32 0.0, %v656
  %v658 = vpop.f32.mrb[0].mxu0
  %659 = vmatprep.mubr.bf16.mxu0 0
  %660 = vmatmul.mubr.bf16.gmra.mrb[0].mxu0 %v375
  %v661 = vpop.f32.mrb[0].mxu0
  %v662 = vadd.f32 0.0, %v661
  %v663 = vpop.f32.mrb[0].mxu0
  %v664 = vpop.f32.mrb[0].mxu0
  %v665 = vadd.f32 0.0, %v664
  %v666 = vpop.f32.mrb[0].mxu0
  %667 = vmatprep.mubr.bf16.mxu0 0
  %668 = vmatmul.mubr.bf16.gmra.mrb[0].mxu0 %v376
  %v669 = vpop.f32.mrb[0].mxu0
  %v670 = vadd.f32 0.0, %v669
  %v671 = vpop.f32.mrb[0].mxu0
  %v672 = vpop.f32.mrb[0].mxu0
  %v673 = vadd.f32 0.0, %v672
  %v674 = vpop.f32.mrb[0].mxu0
  %675 = vmatprep.mubr.bf16.mxu0 0
  %676 = vmatmul.mubr.bf16.gmra.mrb[0].mxu0 %v377
  %v677 = vpop.f32.mrb[0].mxu0
  %v678 = vadd.f32 0.0, %v677
  %v679 = vpop.f32.mrb[0].mxu0
  %v680 = vpop.f32.mrb[0].mxu0
  %v681 = vadd.f32 0.0, %v680
  %v682 = vpop.f32.mrb[0].mxu0
  %683 = vmatprep.mubr.bf16.mxu0 0
  %684 = vmatmul.mubr.bf16.gmra.mrb[0].mxu0 %v378
  %v685 = vpop.f32.mrb[0].mxu0
  %v686 = vadd.f32 0.0, %v685
  %v687 = vpop.f32.mrb[0].mxu0
  %v688 = vpop.f32.mrb[0].mxu0
  %v689 = vadd.f32 0.0, %v688
  %v690 = vpop.f32.mrb[0].mxu0
  %691 = vmatprep.mubr.bf16.mxu0 0
  %692 = vmatmul.mubr.bf16.gmra.mrb[0].mxu0 %v379
  %v693 = vpop.f32.mrb[0].mxu0
  %v694 = vadd.f32 0.0, %v693
  %v695 = vpop.f32.mrb[0].mxu0
  %v696 = vpop.f32.mrb[0].mxu0
  %v697 = vadd.f32 0.0, %v696
  %v698 = vpop.f32.mrb[0].mxu0
  %699 = vmatprep.mubr.bf16.mxu0 0
  %700 = vmatmul.mubr.bf16.gmra.mrb[0].mxu0 %v380
  %v701 = vpop.f32.mrb[0].mxu0
  %v702 = vadd.f32 0.0, %v701
  %v703 = vpop.f32.mrb[0].mxu0
  %v704 = vpop.f32.mrb[0].mxu0
  %v705 = vadd.f32 0.0, %v704
  %v706 = vpop.f32.mrb[0].mxu0
  %707 = vmatprep.mubr.bf16.mxu0 0
  %708 = vmatmul.mubr.bf16.gmra.mrb[0].mxu0 %v381
  %v709 = vpop.f32.mrb[0].mxu0
  %v710 = vadd.f32 0.0, %v709
  %v711 = vpop.f32.mrb[0].mxu0
  %v712 = vpop.f32.mrb[0].mxu0
  %v713 = vadd.f32 0.0, %v712
  %v714 = vpop.f32.mrb[0].mxu0
  %715 = vmatprep.mubr.bf16.mxu0 0
  %716 = vmatmul.mubr.bf16.gmra.mrb[0].mxu0 %v382
  %v717 = vpop.f32.mrb[0].mxu0
  %v718 = vadd.f32 0.0, %v717
  %v719 = vpop.f32.mrb[0].mxu0
  %v720 = vpop.f32.mrb[0].mxu0
  %v721 = vadd.f32 0.0, %v720
  %v722 = vpop.f32.mrb[0].mxu0
  %723 = vmatprep.mubr.bf16.mxu0 0
  %724 = vmatmul.mubr.bf16.gmra.mrb[0].mxu0 %v383
  %v725 = vpop.f32.mrb[0].mxu0
  %v726 = vadd.f32 0.0, %v725
  %v727 = vpop.f32.mrb[0].mxu0
  %v728 = vpop.f32.mrb[0].mxu0
  %v729 = vadd.f32 0.0, %v728
  %v730 = vpop.f32.mrb[0].mxu0
  %731 = vmatprep.mubr.bf16.mxu0 0
  %732 = vmatmul.mubr.bf16.gmra.mrb[0].mxu0 %v384
  %v733 = vpop.f32.mrb[0].mxu0
  %v734 = vadd.f32 0.0, %v733
  %v735 = vpop.f32.mrb[0].mxu0
  %v736 = vpop.f32.mrb[0].mxu0
  %v737 = vadd.f32 0.0, %v736
  %v738 = vpop.f32.mrb[0].mxu0
  %739 = vmatprep.mubr.bf16.mxu0 0
  %740 = vmatmul.mubr.bf16.gmra.mrb[0].mxu0 %v385
  %v741 = vpop.f32.mrb[0].mxu0
  %v742 = vadd.f32 0.0, %v741
  %v743 = vpop.f32.mrb[0].mxu0
  %v744 = vpop.f32.mrb[0].mxu0
  %v745 = vadd.f32 0.0, %v744
  %v746 = vpop.f32.mrb[0].mxu0
  %747 = vmatprep.mubr.bf16.mxu0 0
  %748 = vmatmul.mubr.bf16.gmra.mrb[0].mxu0 %v386
  %v749 = vpop.f32.mrb[0].mxu0
  %v750 = vadd.f32 0.0, %v749
  %v751 = vpop.f32.mrb[0].mxu0
  %v752 = vpop.f32.mrb[0].mxu0
  %v753 = vadd.f32 0.0, %v752
  %v754 = vpop.f32.mrb[0].mxu0
  %755 = vdwg.mxu0
  %v756 = vadd.f32 %v83, %v502
  %v757 = vadd.f32 %v84, %v505
  %v758 = vadd.f32 %v85, %v510
  %v759 = vadd.f32 %v86, %v513
  %v760 = vadd.f32 %v87, %v518
  %v761 = vadd.f32 %v88, %v521
  %v762 = vadd.f32 %v89, %v526
  %v763 = vadd.f32 %v90, %v529
  %v764 = vadd.f32 %v91, %v534
  %v765 = vadd.f32 %v92, %v537
  %v766 = vadd.f32 %v93, %v542
  %v767 = vadd.f32 %v94, %v545
  %v768 = vadd.f32 %v95, %v550
  %v769 = vadd.f32 %v96, %v553
  %v770 = vadd.f32 %v97, %v558
  %v771 = vadd.f32 %v98, %v561
  %v772 = vadd.f32 %v99, %v566
  %v773 = vadd.f32 %v100, %v569
  %v774 = vadd.f32 %v101, %v574
  %v775 = vadd.f32 %v102, %v577
  %v776 = vadd.f32 %v103, %v582
  %v777 = vadd.f32 %v104, %v585
  %v778 = vadd.f32 %v105, %v590
  %v779 = vadd.f32 %v106, %v593
  %v780 = vadd.f32 %v107, %v598
  %v781 = vadd.f32 %v108, %v601
  %v782 = vadd.f32 %v109, %v606
  %v783 = vadd.f32 %v110, %v609
  %v784 = vadd.f32 %v111, %v614
  %v785 = vadd.f32 %v112, %v617
  %v786 = vadd.f32 %v113, %v622
  %v787 = vadd.f32 %v114, %v625
  %v788 = vadd.f32 %v115, %v630
  %v789 = vadd.f32 %v116, %v633
  %v790 = vadd.f32 %v117, %v638
  %v791 = vadd.f32 %v118, %v641
  %v792 = vadd.f32 %v119, %v646
  %v793 = vadd.f32 %v120, %v649
  %v794 = vadd.f32 %v121, %v654
  %v795 = vadd.f32 %v122, %v657
  %v796 = vadd.f32 %v123, %v662
  %v797 = vadd.f32 %v124, %v665
  %v798 = vadd.f32 %v125, %v670
  %v799 = vadd.f32 %v126, %v673
  %v800 = vadd.f32 %v127, %v678
  %v801 = vadd.f32 %v128, %v681
  %v802 = vadd.f32 %v129, %v686
  %v803 = vadd.f32 %v130, %v689
  %v804 = vadd.f32 %v131, %v694
  %v805 = vadd.f32 %v132, %v697
  %v806 = vadd.f32 %v133, %v702
  %v807 = vadd.f32 %v134, %v705
  %v808 = vadd.f32 %v135, %v710
  %v809 = vadd.f32 %v136, %v713
  %v810 = vadd.f32 %v137, %v718
  %v811 = vadd.f32 %v138, %v721
  %v812 = vadd.f32 %v139, %v726
  %v813 = vadd.f32 %v140, %v729
  %v814 = vadd.f32 %v141, %v734
  %v815 = vadd.f32 %v142, %v737
  %v816 = vadd.f32 %v143, %v742
  %v817 = vadd.f32 %v144, %v745
  %v818 = vadd.f32 %v145, %v750
  %v819 = vadd.f32 %v146, %v753
  %820 = vst [vmem:[#allocation2] sm:$0xff] %v756
  %821 = vst [vmem:[#allocation2 + $0x8] sm:$0xff] %v757
  %822 = vst [vmem:[#allocation2 + $0x10] sm:$0xff] %v758
  %823 = vst [vmem:[#allocation2 + $0x18] sm:$0xff] %v759
  %824 = vst [vmem:[#allocation2 + $0x20] sm:$0xff] %v760
  %825 = vst [vmem:[#allocation2 + $0x28] sm:$0xff] %v761
  %826 = vst [vmem:[#allocation2 + $0x30] sm:$0xff] %v762
  %827 = vst [vmem:[#allocation2 + $0x38] sm:$0xff] %v763
  %828 = vst [vmem:[#allocation2 + $0x40] sm:$0xff] %v764
  %829 = vst [vmem:[#allocation2 + $0x48] sm:$0xff] %v765
  %830 = vst [vmem:[#allocation2 + $0x50] sm:$0xff] %v766
  %831 = vst [vmem:[#allocation2 + $0x58] sm:$0xff] %v767
  %832 = vst [vmem:[#allocation2 + $0x60] sm:$0xff] %v768
  %833 = vst [vmem:[#allocation2 + $0x68] sm:$0xff] %v769
  %834 = vst [vmem:[#allocation2 + $0x70] sm:$0xff] %v770
  %835 = vst [vmem:[#allocation2 + $0x78] sm:$0xff] %v771
  %836 = vst [vmem:[#allocation2 + $0x80] sm:$0xff] %v772
  %837 = vst [vmem:[#allocation2 + $0x88] sm:$0xff] %v773
  %838 = vst [vmem:[#allocation2 + $0x90] sm:$0xff] %v774
  %839 = vst [vmem:[#allocation2 + $0x98] sm:$0xff] %v775
  %840 = vst [vmem:[#allocation2 + $0xa0] sm:$0xff] %v776
  %841 = vst [vmem:[#allocation2 + $0xa8] sm:$0xff] %v777
  %842 = vst [vmem:[#allocation2 + $0xb0] sm:$0xff] %v778
  %843 = vst [vmem:[#allocation2 + $0xb8] sm:$0xff] %v779
  %844 = vst [vmem:[#allocation2 + $0xc0] sm:$0xff] %v780
  %845 = vst [vmem:[#allocation2 + $0xc8] sm:$0xff] %v781
  %846 = vst [vmem:[#allocation2 + $0xd0] sm:$0xff] %v782
  %847 = vst [vmem:[#allocation2 + $0xd8] sm:$0xff] %v783
  %848 = vst [vmem:[#allocation2 + $0xe0] sm:$0xff] %v784
  %849 = vst [vmem:[#allocation2 + $0xe8] sm:$0xff] %v785
  %850 = vst [vmem:[#allocation2 + $0xf0] sm:$0xff] %v786
  %851 = vst [vmem:[#allocation2 + $0xf8] sm:$0xff] %v787
  %852 = vst [vmem:[#allocation2 + $0x100] sm:$0xff] %v788
  %853 = vst [vmem:[#allocation2 + $0x108] sm:$0xff] %v789
  %854 = vst [vmem:[#allocation2 + $0x110] sm:$0xff] %v790
  %855 = vst [vmem:[#allocation2 + $0x118] sm:$0xff] %v791
  %856 = vst [vmem:[#allocation2 + $0x120] sm:$0xff] %v792
  %857 = vst [vmem:[#allocation2 + $0x128] sm:$0xff] %v793
  %858 = vst [vmem:[#allocation2 + $0x130] sm:$0xff] %v794
  %859 = vst [vmem:[#allocation2 + $0x138] sm:$0xff] %v795
  %860 = vst [vmem:[#allocation2 + $0x140] sm:$0xff] %v796
  %861 = vst [vmem:[#allocation2 + $0x148] sm:$0xff] %v797
  %862 = vst [vmem:[#allocation2 + $0x150] sm:$0xff] %v798
  %863 = vst [vmem:[#allocation2 + $0x158] sm:$0xff] %v799
  %864 = vst [vmem:[#allocation2 + $0x160] sm:$0xff] %v800
  %865 = vst [vmem:[#allocation2 + $0x168] sm:$0xff] %v801
  %866 = vst [vmem:[#allocation2 + $0x170] sm:$0xff] %v802
  %867 = vst [vmem:[#allocation2 + $0x178] sm:$0xff] %v803
  %868 = vst [vmem:[#allocation2 + $0x180] sm:$0xff] %v804
  %869 = vst [vmem:[#allocation2 + $0x188] sm:$0xff] %v805
  %870 = vst [vmem:[#allocation2 + $0x190] sm:$0xff] %v806
  %871 = vst [vmem:[#allocation2 + $0x198] sm:$0xff] %v807
  %872 = vst [vmem:[#allocation2 + $0x1a0] sm:$0xff] %v808
  %873 = vst [vmem:[#allocation2 + $0x1a8] sm:$0xff] %v809
  %874 = vst [vmem:[#allocation2 + $0x1b0] sm:$0xff] %v810
  %875 = vst [vmem:[#allocation2 + $0x1b8] sm:$0xff] %v811
  %876 = vst [vmem:[#allocation2 + $0x1c0] sm:$0xff] %v812
  %877 = vst [vmem:[#allocation2 + $0x1c8] sm:$0xff] %v813
  %878 = vst [vmem:[#allocation2 + $0x1d0] sm:$0xff] %v814
  %879 = vst [vmem:[#allocation2 + $0x1d8] sm:$0xff] %v815
  %880 = vst [vmem:[#allocation2 + $0x1e0] sm:$0xff] %v816
  %881 = vst [vmem:[#allocation2 + $0x1e8] sm:$0xff] %v817
  %882 = vst [vmem:[#allocation2 + $0x1f0] sm:$0xff] %v818
  %883 = vst [vmem:[#allocation2 + $0x1f8] sm:$0xff] %v819
  // Predicated region
  $region18: #{style_block_forward.4} parent=0 // pred_check
    %p884 = pneg %p15
  $region19: #{style_block_forward.4} parent=0 // pred_check_branch
    %886 = sbr.rel (%p884) target = $region21
  $region20: #{style_block_forward.4} parent=0 // pred_region
    %v887 = vld [vmem:[#allocation2] sm:$0xff]
    %v888 = vld [vmem:[#allocation2 + $0x8] sm:$0xff]
    %v889 = vld [vmem:[#allocation2 + $0x10] sm:$0xff]
    %v890 = vld [vmem:[#allocation2 + $0x18] sm:$0xff]
    %v891 = vld [vmem:[#allocation2 + $0x20] sm:$0xff]
    %v892 = vld [vmem:[#allocation2 + $0x28] sm:$0xff]
    %v893 = vld [vmem:[#allocation2 + $0x30] sm:$0xff]
    %v894 = vld [vmem:[#allocation2 + $0x38] sm:$0xff]
    %v895 = vld [vmem:[#allocation2 + $0x40] sm:$0xff]
    %v896 = vld [vmem:[#allocation2 + $0x48] sm:$0xff]
    %v897 = vld [vmem:[#allocation2 + $0x50] sm:$0xff]
    %v898 = vld [vmem:[#allocation2 + $0x58] sm:$0xff]
    %v899 = vld [vmem:[#allocation2 + $0x60] sm:$0xff]
    %v900 = vld [vmem:[#allocation2 + $0x68] sm:$0xff]
    %v901 = vld [vmem:[#allocation2 + $0x70] sm:$0xff]
    %v902 = vld [vmem:[#allocation2 + $0x78] sm:$0xff]
    %v903 = vld [vmem:[#allocation2 + $0x80] sm:$0xff]
    %v904 = vld [vmem:[#allocation2 + $0x88] sm:$0xff]
    %v905 = vld [vmem:[#allocation2 + $0x90] sm:$0xff]
    %v906 = vld [vmem:[#allocation2 + $0x98] sm:$0xff]
    %v907 = vld [vmem:[#allocation2 + $0xa0] sm:$0xff]
    %v908 = vld [vmem:[#allocation2 + $0xa8] sm:$0xff]
    %v909 = vld [vmem:[#allocation2 + $0xb0] sm:$0xff]
    %v910 = vld [vmem:[#allocation2 + $0xb8] sm:$0xff]
    %v911 = vld [vmem:[#allocation2 + $0xc0] sm:$0xff]
    %v912 = vld [vmem:[#allocation2 + $0xc8] sm:$0xff]
    %v913 = vld [vmem:[#allocation2 + $0xd0] sm:$0xff]
    %v914 = vld [vmem:[#allocation2 + $0xd8] sm:$0xff]
    %v915 = vld [vmem:[#allocation2 + $0xe0] sm:$0xff]
    %v916 = vld [vmem:[#allocation2 + $0xe8] sm:$0xff]
    %v917 = vld [vmem:[#allocation2 + $0xf0] sm:$0xff]
    %v918 = vld [vmem:[#allocation2 + $0xf8] sm:$0xff]
    %v919 = vld [vmem:[#allocation2 + $0x100] sm:$0xff]
    %v920 = vld [vmem:[#allocation2 + $0x108] sm:$0xff]
    %v921 = vld [vmem:[#allocation2 + $0x110] sm:$0xff]
    %v922 = vld [vmem:[#allocation2 + $0x118] sm:$0xff]
    %v923 = vld [vmem:[#allocation2 + $0x120] sm:$0xff]
    %v924 = vld [vmem:[#allocation2 + $0x128] sm:$0xff]
    %v925 = vld [vmem:[#allocation2 + $0x130] sm:$0xff]
    %v926 = vld [vmem:[#allocation2 + $0x138] sm:$0xff]
    %v927 = vld [vmem:[#allocation2 + $0x140] sm:$0xff]
    %v928 = vld [vmem:[#allocation2 + $0x148] sm:$0xff]
    %v929 = vld [vmem:[#allocation2 + $0x150] sm:$0xff]
    %v930 = vld [vmem:[#allocation2 + $0x158] sm:$0xff]
    %v931 = vld [vmem:[#allocation2 + $0x160] sm:$0xff]
    %v932 = vld [vmem:[#allocation2 + $0x168] sm:$0xff]
    %v933 = vld [vmem:[#allocation2 + $0x170] sm:$0xff]
    %v934 = vld [vmem:[#allocation2 + $0x178] sm:$0xff]
    %v935 = vld [vmem:[#allocation2 + $0x180] sm:$0xff]
    %v936 = vld [vmem:[#allocation2 + $0x188] sm:$0xff]
    %v937 = vld [vmem:[#allocation2 + $0x190] sm:$0xff]
    %v938 = vld [vmem:[#allocation2 + $0x198] sm:$0xff]
    %v939 = vld [vmem:[#allocation2 + $0x1a0] sm:$0xff]
    %v940 = vld [vmem:[#allocation2 + $0x1a8] sm:$0xff]
    %v941 = vld [vmem:[#allocation2 + $0x1b0] sm:$0xff]
    %v942 = vld [vmem:[#allocation2 + $0x1b8] sm:$0xff]
    %v943 = vld [vmem:[#allocation2 + $0x1c0] sm:$0xff]
    %v944 = vld [vmem:[#allocation2 + $0x1c8] sm:$0xff]
    %v945 = vld [vmem:[#allocation2 + $0x1d0] sm:$0xff]
    %v946 = vld [vmem:[#allocation2 + $0x1d8] sm:$0xff]
    %v947 = vld [vmem:[#allocation2 + $0x1e0] sm:$0xff]
    %v948 = vld [vmem:[#allocation2 + $0x1e8] sm:$0xff]
    %v949 = vld [vmem:[#allocation2 + $0x1f0] sm:$0xff]
    %v950 = vld [vmem:[#allocation2 + $0x1f8] sm:$0xff]
    %v951 = vld [vmem:[%s2] sm:$0x1]
    %v953 = vlaneseq
    %v954 = vshrl.u32 %v953, 7
    %v955 = vsub.s32 0, %v954
    %v956 = vrot.slane %v951, %v955
    %v958 = vadd.f32 %v887, %v956
    %v959 = vadd.f32 %v888, %v956
    %v960 = vadd.f32 %v889, %v956
    %v961 = vadd.f32 %v890, %v956
    %v962 = vadd.f32 %v891, %v956
    %v963 = vadd.f32 %v892, %v956
    %v964 = vadd.f32 %v893, %v956
    %v965 = vadd.f32 %v894, %v956
    %v966 = vadd.f32 %v895, %v956
    %v967 = vadd.f32 %v896, %v956
    %v968 = vadd.f32 %v897, %v956
    %v969 = vadd.f32 %v898, %v956
    %v970 = vadd.f32 %v899, %v956
    %v971 = vadd.f32 %v900, %v956
    %v972 = vadd.f32 %v901, %v956
    %v973 = vadd.f32 %v902, %v956
    %v974 = vadd.f32 %v903, %v956
    %v975 = vadd.f32 %v904, %v956
    %v976 = vadd.f32 %v905, %v956
    %v977 = vadd.f32 %v906, %v956
    %v978 = vadd.f32 %v907, %v956
    %v979 = vadd.f32 %v908, %v956
    %v980 = vadd.f32 %v909, %v956
    %v981 = vadd.f32 %v910, %v956
    %v982 = vadd.f32 %v911, %v956
    %v983 = vadd.f32 %v912, %v956
    %v984 = vadd.f32 %v913, %v956
    %v985 = vadd.f32 %v914, %v956
    %v986 = vadd.f32 %v915, %v956
    %v987 = vadd.f32 %v916, %v956
    %v988 = vadd.f32 %v917, %v956
    %v989 = vadd.f32 %v918, %v956
    %v990 = vadd.f32 %v919, %v956
    %v991 = vadd.f32 %v920, %v956
    %v992 = vadd.f32 %v921, %v956
    %v993 = vadd.f32 %v922, %v956
    %v994 = vadd.f32 %v923, %v956
    %v995 = vadd.f32 %v924, %v956
    %v996 = vadd.f32 %v925, %v956
    %v997 = vadd.f32 %v926, %v956
    %v998 = vadd.f32 %v927, %v956
    %v999 = vadd.f32 %v928, %v956
    %v1000 = vadd.f32 %v929, %v956
    %v1001 = vadd.f32 %v930, %v956
    %v1002 = vadd.f32 %v931, %v956
    %v1003 = vadd.f32 %v932, %v956
    %v1004 = vadd.f32 %v933, %v956
    %v1005 = vadd.f32 %v934, %v956
    %v1006 = vadd.f32 %v935, %v956
    %v1007 = vadd.f32 %v936, %v956
    %v1008 = vadd.f32 %v937, %v956
    %v1009 = vadd.f32 %v938, %v956
    %v1010 = vadd.f32 %v939, %v956
    %v1011 = vadd.f32 %v940, %v956
    %v1012 = vadd.f32 %v941, %v956
    %v1013 = vadd.f32 %v942, %v956
    %v1014 = vadd.f32 %v943, %v956
    %v1015 = vadd.f32 %v944, %v956
    %v1016 = vadd.f32 %v945, %v956
    %v1017 = vadd.f32 %v946, %v956
    %v1018 = vadd.f32 %v947, %v956
    %v1019 = vadd.f32 %v948, %v956
    %v1020 = vadd.f32 %v949, %v956
    %v1021 = vadd.f32 %v950, %v956
    %vm1022 = vcmp.ge.f32.partialorder %v958, 0.0
    %vm1023 = vcmp.ge.f32.partialorder %v959, 0.0
    %vm1024 = vcmp.ge.f32.partialorder %v960, 0.0
    %vm1025 = vcmp.ge.f32.partialorder %v961, 0.0
    %vm1026 = vcmp.ge.f32.partialorder %v962, 0.0
    %vm1027 = vcmp.ge.f32.partialorder %v963, 0.0
    %vm1028 = vcmp.ge.f32.partialorder %v964, 0.0
    %vm1029 = vcmp.ge.f32.partialorder %v965, 0.0
    %vm1030 = vcmp.ge.f32.partialorder %v966, 0.0
    %vm1031 = vcmp.ge.f32.partialorder %v967, 0.0
    %vm1032 = vcmp.ge.f32.partialorder %v968, 0.0
    %vm1033 = vcmp.ge.f32.partialorder %v969, 0.0
    %vm1034 = vcmp.ge.f32.partialorder %v970, 0.0
    %vm1035 = vcmp.ge.f32.partialorder %v971, 0.0
    %vm1036 = vcmp.ge.f32.partialorder %v972, 0.0
    %vm1037 = vcmp.ge.f32.partialorder %v973, 0.0
    %vm1038 = vcmp.ge.f32.partialorder %v974, 0.0
    %vm1039 = vcmp.ge.f32.partialorder %v975, 0.0
    %vm1040 = vcmp.ge.f32.partialorder %v976, 0.0
    %vm1041 = vcmp.ge.f32.partialorder %v977, 0.0
    %vm1042 = vcmp.ge.f32.partialorder %v978, 0.0
    %vm1043 = vcmp.ge.f32.partialorder %v979, 0.0
    %vm1044 = vcmp.ge.f32.partialorder %v980, 0.0
    %vm1045 = vcmp.ge.f32.partialorder %v981, 0.0
    %vm1046 = vcmp.ge.f32.partialorder %v982, 0.0
    %vm1047 = vcmp.ge.f32.partialorder %v983, 0.0
    %vm1048 = vcmp.ge.f32.partialorder %v984, 0.0
    %vm1049 = vcmp.ge.f32.partialorder %v985, 0.0
    %vm1050 = vcmp.ge.f32.partialorder %v986, 0.0
    %vm1051 = vcmp.ge.f32.partialorder %v987, 0.0
    %vm1052 = vcmp.ge.f32.partialorder %v988, 0.0
    %vm1053 = vcmp.ge.f32.partialorder %v989, 0.0
    %vm1054 = vcmp.ge.f32.partialorder %v990, 0.0
    %vm1055 = vcmp.ge.f32.partialorder %v991, 0.0
    %vm1056 = vcmp.ge.f32.partialorder %v992, 0.0
    %vm1057 = vcmp.ge.f32.partialorder %v993, 0.0
    %vm1058 = vcmp.ge.f32.partialorder %v994, 0.0
    %vm1059 = vcmp.ge.f32.partialorder %v995, 0.0
    %vm1060 = vcmp.ge.f32.partialorder %v996, 0.0
    %vm1061 = vcmp.ge.f32.partialorder %v997, 0.0
    %vm1062 = vcmp.ge.f32.partialorder %v998, 0.0
    %vm1063 = vcmp.ge.f32.partialorder %v999, 0.0
    %vm1064 = vcmp.ge.f32.partialorder %v1000, 0.0
    %vm1065 = vcmp.ge.f32.partialorder %v1001, 0.0
    %vm1066 = vcmp.ge.f32.partialorder %v1002, 0.0
    %vm1067 = vcmp.ge.f32.partialorder %v1003, 0.0
    %vm1068 = vcmp.ge.f32.partialorder %v1004, 0.0
    %vm1069 = vcmp.ge.f32.partialorder %v1005, 0.0
    %vm1070 = vcmp.ge.f32.partialorder %v1006, 0.0
    %vm1071 = vcmp.ge.f32.partialorder %v1007, 0.0
    %vm1072 = vcmp.ge.f32.partialorder %v1008, 0.0
    %vm1073 = vcmp.ge.f32.partialorder %v1009, 0.0
    %vm1074 = vcmp.ge.f32.partialorder %v1010, 0.0
    %vm1075 = vcmp.ge.f32.partialorder %v1011, 0.0
    %vm1076 = vcmp.ge.f32.partialorder %v1012, 0.0
    %vm1077 = vcmp.ge.f32.partialorder %v1013, 0.0
    %vm1078 = vcmp.ge.f32.partialorder %v1014, 0.0
    %vm1079 = vcmp.ge.f32.partialorder %v1015, 0.0
    %vm1080 = vcmp.ge.f32.partialorder %v1016, 0.0
    %vm1081 = vcmp.ge.f32.partialorder %v1017, 0.0
    %vm1082 = vcmp.ge.f32.partialorder %v1018, 0.0
    %vm1083 = vcmp.ge.f32.partialorder %v1019, 0.0
    %vm1084 = vcmp.ge.f32.partialorder %v1020, 0.0
    %vm1085 = vcmp.ge.f32.partialorder %v1021, 0.0
    %v1086 = vmul.f32 %v958, 0.2
    %v1087 = vmul.f32 %v959, 0.2
    %v1088 = vmul.f32 %v960, 0.2
    %v1089 = vmul.f32 %v961, 0.2
    %v1090 = vmul.f32 %v962, 0.2
    %v1091 = vmul.f32 %v963, 0.2
    %v1092 = vmul.f32 %v964, 0.2
    %v1093 = vmul.f32 %v965, 0.2
    %v1094 = vmul.f32 %v966, 0.2
    %v1095 = vmul.f32 %v967, 0.2
    %v1096 = vmul.f32 %v968, 0.2
    %v1097 = vmul.f32 %v969, 0.2
    %v1098 = vmul.f32 %v970, 0.2
    %v1099 = vmul.f32 %v971, 0.2
    %v1100 = vmul.f32 %v972, 0.2
    %v1101 = vmul.f32 %v973, 0.2
    %v1102 = vmul.f32 %v974, 0.2
    %v1103 = vmul.f32 %v975, 0.2
    %v1104 = vmul.f32 %v976, 0.2
    %v1105 = vmul.f32 %v977, 0.2
    %v1106 = vmul.f32 %v978, 0.2
    %v1107 = vmul.f32 %v979, 0.2
    %v1108 = vmul.f32 %v980, 0.2
    %v1109 = vmul.f32 %v981, 0.2
    %v1110 = vmul.f32 %v982, 0.2
    %v1111 = vmul.f32 %v983, 0.2
    %v1112 = vmul.f32 %v984, 0.2
    %v1113 = vmul.f32 %v985, 0.2
    %v1114 = vmul.f32 %v986, 0.2
    %v1115 = vmul.f32 %v987, 0.2
    %v1116 = vmul.f32 %v988, 0.2
    %v1117 = vmul.f32 %v989, 0.2
    %v1118 = vmul.f32 %v990, 0.2
    %v1119 = vmul.f32 %v991, 0.2
    %v1120 = vmul.f32 %v992, 0.2
    %v1121 = vmul.f32 %v993, 0.2
    %v1122 = vmul.f32 %v994, 0.2
    %v1123 = vmul.f32 %v995, 0.2
    %v1124 = vmul.f32 %v996, 0.2
    %v1125 = vmul.f32 %v997, 0.2
    %v1126 = vmul.f32 %v998, 0.2
    %v1127 = vmul.f32 %v999, 0.2
    %v1128 = vmul.f32 %v1000, 0.2
    %v1129 = vmul.f32 %v1001, 0.2
    %v1130 = vmul.f32 %v1002, 0.2
    %v1131 = vmul.f32 %v1003, 0.2
    %v1132 = vmul.f32 %v1004, 0.2
    %v1133 = vmul.f32 %v1005, 0.2
    %v1134 = vmul.f32 %v1006, 0.2
    %v1135 = vmul.f32 %v1007, 0.2
    %v1136 = vmul.f32 %v1008, 0.2
    %v1137 = vmul.f32 %v1009, 0.2
    %v1138 = vmul.f32 %v1010, 0.2
    %v1139 = vmul.f32 %v1011, 0.2
    %v1140 = vmul.f32 %v1012, 0.2
    %v1141 = vmul.f32 %v1013, 0.2
    %v1142 = vmul.f32 %v1014, 0.2
    %v1143 = vmul.f32 %v1015, 0.2
    %v1144 = vmul.f32 %v1016, 0.2
    %v1145 = vmul.f32 %v1017, 0.2
    %v1146 = vmul.f32 %v1018, 0.2
    %v1147 = vmul.f32 %v1019, 0.2
    %v1148 = vmul.f32 %v1020, 0.2
    %v1149 = vmul.f32 %v1021, 0.2
    %v1150 = vsel %vm1022, %v958, %v1086
    %v1151 = vsel %vm1023, %v959, %v1087
    %v1152 = vsel %vm1024, %v960, %v1088
    %v1153 = vsel %vm1025, %v961, %v1089
    %v1154 = vsel %vm1026, %v962, %v1090
    %v1155 = vsel %vm1027, %v963, %v1091
    %v1156 = vsel %vm1028, %v964, %v1092
    %v1157 = vsel %vm1029, %v965, %v1093
    %v1158 = vsel %vm1030, %v966, %v1094
    %v1159 = vsel %vm1031, %v967, %v1095
    %v1160 = vsel %vm1032, %v968, %v1096
    %v1161 = vsel %vm1033, %v969, %v1097
    %v1162 = vsel %vm1034, %v970, %v1098
    %v1163 = vsel %vm1035, %v971, %v1099
    %v1164 = vsel %vm1036, %v972, %v1100
    %v1165 = vsel %vm1037, %v973, %v1101
    %v1166 = vsel %vm1038, %v974, %v1102
    %v1167 = vsel %vm1039, %v975, %v1103
    %v1168 = vsel %vm1040, %v976, %v1104
    %v1169 = vsel %vm1041, %v977, %v1105
    %v1170 = vsel %vm1042, %v978, %v1106
    %v1171 = vsel %vm1043, %v979, %v1107
    %v1172 = vsel %vm1044, %v980, %v1108
    %v1173 = vsel %vm1045, %v981, %v1109
    %v1174 = vsel %vm1046, %v982, %v1110
    %v1175 = vsel %vm1047, %v983, %v1111
    %v1176 = vsel %vm1048, %v984, %v1112
    %v1177 = vsel %vm1049, %v985, %v1113
    %v1178 = vsel %vm1050, %v986, %v1114
    %v1179 = vsel %vm1051, %v987, %v1115
    %v1180 = vsel %vm1052, %v988, %v1116
    %v1181 = vsel %vm1053, %v989, %v1117
    %v1182 = vsel %vm1054, %v990, %v1118
    %v1183 = vsel %vm1055, %v991, %v1119
    %v1184 = vsel %vm1056, %v992, %v1120
    %v1185 = vsel %vm1057, %v993, %v1121
    %v1186 = vsel %vm1058, %v994, %v1122
    %v1187 = vsel %vm1059, %v995, %v1123
    %v1188 = vsel %vm1060, %v996, %v1124
    %v1189 = vsel %vm1061, %v997, %v1125
    %v1190 = vsel %vm1062, %v998, %v1126
    %v1191 = vsel %vm1063, %v999, %v1127
    %v1192 = vsel %vm1064, %v1000, %v1128
    %v1193 = vsel %vm1065, %v1001, %v1129
    %v1194 = vsel %vm1066, %v1002, %v1130
    %v1195 = vsel %vm1067, %v1003, %v1131
    %v1196 = vsel %vm1068, %v1004, %v1132
    %v1197 = vsel %vm1069, %v1005, %v1133
    %v1198 = vsel %vm1070, %v1006, %v1134
    %v1199 = vsel %vm1071, %v1007, %v1135
    %v1200 = vsel %vm1072, %v1008, %v1136
    %v1201 = vsel %vm1073, %v1009, %v1137
    %v1202 = vsel %vm1074, %v1010, %v1138
    %v1203 = vsel %vm1075, %v1011, %v1139
    %v1204 = vsel %vm1076, %v1012, %v1140
    %v1205 = vsel %vm1077, %v1013, %v1141
    %v1206 = vsel %vm1078, %v1014, %v1142
    %v1207 = vsel %vm1079, %v1015, %v1143
    %v1208 = vsel %vm1080, %v1016, %v1144
    %v1209 = vsel %vm1081, %v1017, %v1145
    %v1210 = vsel %vm1082, %v1018, %v1146
    %v1211 = vsel %vm1083, %v1019, %v1147
    %v1212 = vsel %vm1084, %v1020, %v1148
    %v1213 = vsel %vm1085, %v1021, %v1149
    %v1214 = vmul.f32 %v1150, 1.4142135
    %v1215 = vmul.f32 %v1151, 1.4142135
    %v1216 = vmul.f32 %v1152, 1.4142135
    %v1217 = vmul.f32 %v1153, 1.4142135
    %v1218 = vmul.f32 %v1154, 1.4142135
    %v1219 = vmul.f32 %v1155, 1.4142135
    %v1220 = vmul.f32 %v1156, 1.4142135
    %v1221 = vmul.f32 %v1157, 1.4142135
    %v1222 = vmul.f32 %v1158, 1.4142135
    %v1223 = vmul.f32 %v1159, 1.4142135
    %v1224 = vmul.f32 %v1160, 1.4142135
    %v1225 = vmul.f32 %v1161, 1.4142135
    %v1226 = vmul.f32 %v1162, 1.4142135
    %v1227 = vmul.f32 %v1163, 1.4142135
    %v1228 = vmul.f32 %v1164, 1.4142135
    %v1229 = vmul.f32 %v1165, 1.4142135
    %v1230 = vmul.f32 %v1166, 1.4142135
    %v1231 = vmul.f32 %v1167, 1.4142135
    %v1232 = vmul.f32 %v1168, 1.4142135
    %v1233 = vmul.f32 %v1169, 1.4142135
    %v1234 = vmul.f32 %v1170, 1.4142135
    %v1235 = vmul.f32 %v1171, 1.4142135
    %v1236 = vmul.f32 %v1172, 1.4142135
    %v1237 = vmul.f32 %v1173, 1.4142135
    %v1238 = vmul.f32 %v1174, 1.4142135
    %v1239 = vmul.f32 %v1175, 1.4142135
    %v1240 = vmul.f32 %v1176, 1.4142135
    %v1241 = vmul.f32 %v1177, 1.4142135
    %v1242 = vmul.f32 %v1178, 1.4142135
    %v1243 = vmul.f32 %v1179, 1.4142135
    %v1244 = vmul.f32 %v1180, 1.4142135
    %v1245 = vmul.f32 %v1181, 1.4142135
    %v1246 = vmul.f32 %v1182, 1.4142135
    %v1247 = vmul.f32 %v1183, 1.4142135
    %v1248 = vmul.f32 %v1184, 1.4142135
    %v1249 = vmul.f32 %v1185, 1.4142135
    %v1250 = vmul.f32 %v1186, 1.4142135
    %v1251 = vmul.f32 %v1187, 1.4142135
    %v1252 = vmul.f32 %v1188, 1.4142135
    %v1253 = vmul.f32 %v1189, 1.4142135
    %v1254 = vmul.f32 %v1190, 1.4142135
    %v1255 = vmul.f32 %v1191, 1.4142135
    %v1256 = vmul.f32 %v1192, 1.4142135
    %v1257 = vmul.f32 %v1193, 1.4142135
    %v1258 = vmul.f32 %v1194, 1.4142135
    %v1259 = vmul.f32 %v1195, 1.4142135
    %v1260 = vmul.f32 %v1196, 1.4142135
    %v1261 = vmul.f32 %v1197, 1.4142135
    %v1262 = vmul.f32 %v1198, 1.4142135
    %v1263 = vmul.f32 %v1199, 1.4142135
    %v1264 = vmul.f32 %v1200, 1.4142135
    %v1265 = vmul.f32 %v1201, 1.4142135
    %v1266 = vmul.f32 %v1202, 1.4142135
    %v1267 = vmul.f32 %v1203, 1.4142135
    %v1268 = vmul.f32 %v1204, 1.4142135
    %v1269 = vmul.f32 %v1205, 1.4142135
    %v1270 = vmul.f32 %v1206, 1.4142135
    %v1271 = vmul.f32 %v1207, 1.4142135
    %v1272 = vmul.f32 %v1208, 1.4142135
    %v1273 = vmul.f32 %v1209, 1.4142135
    %v1274 = vmul.f32 %v1210, 1.4142135
    %v1275 = vmul.f32 %v1211, 1.4142135
    %v1276 = vmul.f32 %v1212, 1.4142135
    %v1277 = vmul.f32 %v1213, 1.4142135
    %v1278 = vpack.c.bf16 %v1215, %v1214
    %v1279 = vpack.c.bf16 %v1217, %v1216
    %v1280 = vpack.c.bf16 %v1219, %v1218
    %v1281 = vpack.c.bf16 %v1221, %v1220
    %v1282 = vpack.c.bf16 %v1223, %v1222
    %v1283 = vpack.c.bf16 %v1225, %v1224
    %v1284 = vpack.c.bf16 %v1227, %v1226
    %v1285 = vpack.c.bf16 %v1229, %v1228
    %v1286 = vpack.c.bf16 %v1231, %v1230
    %v1287 = vpack.c.bf16 %v1233, %v1232
    %v1288 = vpack.c.bf16 %v1235, %v1234
    %v1289 = vpack.c.bf16 %v1237, %v1236
    %v1290 = vpack.c.bf16 %v1239, %v1238
    %v1291 = vpack.c.bf16 %v1241, %v1240
    %v1292 = vpack.c.bf16 %v1243, %v1242
    %v1293 = vpack.c.bf16 %v1245, %v1244
    %v1294 = vpack.c.bf16 %v1247, %v1246
    %v1295 = vpack.c.bf16 %v1249, %v1248
    %v1296 = vpack.c.bf16 %v1251, %v1250
    %v1297 = vpack.c.bf16 %v1253, %v1252
    %v1298 = vpack.c.bf16 %v1255, %v1254
    %v1299 = vpack.c.bf16 %v1257, %v1256
    %v1300 = vpack.c.bf16 %v1259, %v1258
    %v1301 = vpack.c.bf16 %v1261, %v1260
    %v1302 = vpack.c.bf16 %v1263, %v1262
    %v1303 = vpack.c.bf16 %v1265, %v1264
    %v1304 = vpack.c.bf16 %v1267, %v1266
    %v1305 = vpack.c.bf16 %v1269, %v1268
    %v1306 = vpack.c.bf16 %v1271, %v1270
    %v1307 = vpack.c.bf16 %v1273, %v1272
    %v1308 = vpack.c.bf16 %v1275, %v1274
    %v1309 = vpack.c.bf16 %v1277, %v1276
    %v1342 = vunpack.c.l.b16 %v1278
    %v1343 = vunpack.c.h.b16 %v1278
    %v1344 = vunpack.c.l.b16 %v1279
    %v1345 = vunpack.c.h.b16 %v1279
    %v1346 = vunpack.c.l.b16 %v1280
    %v1347 = vunpack.c.h.b16 %v1280
    %v1348 = vunpack.c.l.b16 %v1281
    %v1349 = vunpack.c.h.b16 %v1281
    %v1350 = vunpack.c.l.b16 %v1282
    %v1351 = vunpack.c.h.b16 %v1282
    %v1352 = vunpack.c.l.b16 %v1283
    %v1353 = vunpack.c.h.b16 %v1283
    %v1354 = vunpack.c.l.b16 %v1284
    %v1355 = vunpack.c.h.b16 %v1284
    %v1356 = vunpack.c.l.b16 %v1285
    %v1357 = vunpack.c.h.b16 %v1285
    %v1358 = vunpack.c.l.b16 %v1286
    %v1359 = vunpack.c.h.b16 %v1286
    %v1360 = vunpack.c.l.b16 %v1287
    %v1361 = vunpack.c.h.b16 %v1287
    %v1362 = vunpack.c.l.b16 %v1288
    %v1363 = vunpack.c.h.b16 %v1288
    %v1364 = vunpack.c.l.b16 %v1289
    %v1365 = vunpack.c.h.b16 %v1289
    %v1366 = vunpack.c.l.b16 %v1290
    %v1367 = vunpack.c.h.b16 %v1290
    %v1368 = vunpack.c.l.b16 %v1291
    %v1369 = vunpack.c.h.b16 %v1291
    %v1370 = vunpack.c.l.b16 %v1292
    %v1371 = vunpack.c.h.b16 %v1292
    %v1372 = vunpack.c.l.b16 %v1293
    %v1373 = vunpack.c.h.b16 %v1293
    %v1374 = vunpack.c.l.b16 %v1294
    %v1375 = vunpack.c.h.b16 %v1294
    %v1376 = vunpack.c.l.b16 %v1295
    %v1377 = vunpack.c.h.b16 %v1295
    %v1378 = vunpack.c.l.b16 %v1296
    %v1379 = vunpack.c.h.b16 %v1296
    %v1380 = vunpack.c.l.b16 %v1297
    %v1381 = vunpack.c.h.b16 %v1297
    %v1382 = vunpack.c.l.b16 %v1298
    %v1383 = vunpack.c.h.b16 %v1298
    %v1384 = vunpack.c.l.b16 %v1299
    %v1385 = vunpack.c.h.b16 %v1299
    %v1386 = vunpack.c.l.b16 %v1300
    %v1387 = vunpack.c.h.b16 %v1300
    %v1388 = vunpack.c.l.b16 %v1301
    %v1389 = vunpack.c.h.b16 %v1301
    %v1390 = vunpack.c.l.b16 %v1302
    %v1391 = vunpack.c.h.b16 %v1302
    %v1392 = vunpack.c.l.b16 %v1303
    %v1393 = vunpack.c.h.b16 %v1303
    %v1394 = vunpack.c.l.b16 %v1304
    %v1395 = vunpack.c.h.b16 %v1304
    %v1396 = vunpack.c.l.b16 %v1305
    %v1397 = vunpack.c.h.b16 %v1305
    %v1398 = vunpack.c.l.b16 %v1306
    %v1399 = vunpack.c.h.b16 %v1306
    %v1400 = vunpack.c.l.b16 %v1307
    %v1401 = vunpack.c.h.b16 %v1307
    %v1402 = vunpack.c.l.b16 %v1308
    %v1403 = vunpack.c.h.b16 %v1308
    %v1404 = vunpack.c.l.b16 %v1309
    %v1405 = vunpack.c.h.b16 %v1309
    %v1406 = vpack.c.b16 %v1342, %v1342
    %v1407 = vpack.c.b16 %v1343, %v1343
    %v1408 = vpack.c.b16 %v1344, %v1344
    %v1409 = vpack.c.b16 %v1345, %v1345
    %v1410 = vpack.c.b16 %v1346, %v1346
    %v1411 = vpack.c.b16 %v1347, %v1347
    %v1412 = vpack.c.b16 %v1348, %v1348
    %v1413 = vpack.c.b16 %v1349, %v1349
    %v1414 = vpack.c.b16 %v1350, %v1350
    %v1415 = vpack.c.b16 %v1351, %v1351
    %v1416 = vpack.c.b16 %v1352, %v1352
    %v1417 = vpack.c.b16 %v1353, %v1353
    %v1418 = vpack.c.b16 %v1354, %v1354
    %v1419 = vpack.c.b16 %v1355, %v1355
    %v1420 = vpack.c.b16 %v1356, %v1356
    %v1421 = vpack.c.b16 %v1357, %v1357
    %v1422 = vpack.c.b16 %v1358, %v1358
    %v1423 = vpack.c.b16 %v1359, %v1359
    %v1424 = vpack.c.b16 %v1360, %v1360
    %v1425 = vpack.c.b16 %v1361, %v1361
    %v1426 = vpack.c.b16 %v1362, %v1362
    %v1427 = vpack.c.b16 %v1363, %v1363
    %v1428 = vpack.c.b16 %v1364, %v1364
    %v1429 = vpack.c.b16 %v1365, %v1365
    %v1430 = vpack.c.b16 %v1366, %v1366
    %v1431 = vpack.c.b16 %v1367, %v1367
    %v1432 = vpack.c.b16 %v1368, %v1368
    %v1433 = vpack.c.b16 %v1369, %v1369
    %v1434 = vpack.c.b16 %v1370, %v1370
    %v1435 = vpack.c.b16 %v1371, %v1371
    %v1436 = vpack.c.b16 %v1372, %v1372
    %v1437 = vpack.c.b16 %v1373, %v1373
    %v1438 = vpack.c.b16 %v1374, %v1374
    %v1439 = vpack.c.b16 %v1375, %v1375
    %v1440 = vpack.c.b16 %v1376, %v1376
    %v1441 = vpack.c.b16 %v1377, %v1377
    %v1442 = vpack.c.b16 %v1378, %v1378
    %v1443 = vpack.c.b16 %v1379, %v1379
    %v1444 = vpack.c.b16 %v1380, %v1380
    %v1445 = vpack.c.b16 %v1381, %v1381
    %v1446 = vpack.c.b16 %v1382, %v1382
    %v1447 = vpack.c.b16 %v1383, %v1383
    %v1448 = vpack.c.b16 %v1384, %v1384
    %v1449 = vpack.c.b16 %v1385, %v1385
    %v1450 = vpack.c.b16 %v1386, %v1386
    %v1451 = vpack.c.b16 %v1387, %v1387
    %v1452 = vpack.c.b16 %v1388, %v1388
    %v1453 = vpack.c.b16 %v1389, %v1389
    %v1454 = vpack.c.b16 %v1390, %v1390
    %v1455 = vpack.c.b16 %v1391, %v1391
    %v1456 = vpack.c.b16 %v1392, %v1392
    %v1457 = vpack.c.b16 %v1393, %v1393
    %v1458 = vpack.c.b16 %v1394, %v1394
    %v1459 = vpack.c.b16 %v1395, %v1395
    %v1460 = vpack.c.b16 %v1396, %v1396
    %v1461 = vpack.c.b16 %v1397, %v1397
    %v1462 = vpack.c.b16 %v1398, %v1398
    %v1463 = vpack.c.b16 %v1399, %v1399
    %v1464 = vpack.c.b16 %v1400, %v1400
    %v1465 = vpack.c.b16 %v1401, %v1401
    %v1466 = vpack.c.b16 %v1402, %v1402
    %v1467 = vpack.c.b16 %v1403, %v1403
    %v1468 = vpack.c.b16 %v1404, %v1404
    %v1469 = vpack.c.b16 %v1405, %v1405
    %1534 = vst [vmem:[%s3] sm:$0xf] %v1406
    %1535 = vst [vmem:[%s3 + $0x4] sm:$0xf] %v1407
    %1536 = vst [vmem:[%s3 + $0x8] sm:$0xf] %v1408
    %1537 = vst [vmem:[%s3 + $0xc] sm:$0xf] %v1409
    %1538 = vst [vmem:[%s3 + $0x10] sm:$0xf] %v1410
    %1539 = vst [vmem:[%s3 + $0x14] sm:$0xf] %v1411
    %1540 = vst [vmem:[%s3 + $0x18] sm:$0xf] %v1412
    %1541 = vst [vmem:[%s3 + $0x1c] sm:$0xf] %v1413
    %1542 = vst [vmem:[%s3 + $0x20] sm:$0xf] %v1414
    %1543 = vst [vmem:[%s3 + $0x24] sm:$0xf] %v1415
    %1544 = vst [vmem:[%s3 + $0x28] sm:$0xf] %v1416
    %1545 = vst [vmem:[%s3 + $0x2c] sm:$0xf] %v1417
    %1546 = vst [vmem:[%s3 + $0x30] sm:$0xf] %v1418
    %1547 = vst [vmem:[%s3 + $0x34] sm:$0xf] %v1419
    %1548 = vst [vmem:[%s3 + $0x38] sm:$0xf] %v1420
    %1549 = vst [vmem:[%s3 + $0x3c] sm:$0xf] %v1421
    %1550 = vst [vmem:[%s3 + $0x40] sm:$0xf] %v1422
    %1551 = vst [vmem:[%s3 + $0x44] sm:$0xf] %v1423
    %1552 = vst [vmem:[%s3 + $0x48] sm:$0xf] %v1424
    %1553 = vst [vmem:[%s3 + $0x4c] sm:$0xf] %v1425
    %1554 = vst [vmem:[%s3 + $0x50] sm:$0xf] %v1426
    %1555 = vst [vmem:[%s3 + $0x54] sm:$0xf] %v1427
    %1556 = vst [vmem:[%s3 + $0x58] sm:$0xf] %v1428
    %1557 = vst [vmem:[%s3 + $0x5c] sm:$0xf] %v1429
    %1558 = vst [vmem:[%s3 + $0x60] sm:$0xf] %v1430
    %1559 = vst [vmem:[%s3 + $0x64] sm:$0xf] %v1431
    %1560 = vst [vmem:[%s3 + $0x68] sm:$0xf] %v1432
    %1561 = vst [vmem:[%s3 + $0x6c] sm:$0xf] %v1433
    %1562 = vst [vmem:[%s3 + $0x70] sm:$0xf] %v1434
    %1563 = vst [vmem:[%s3 + $0x74] sm:$0xf] %v1435
    %1564 = vst [vmem:[%s3 + $0x78] sm:$0xf] %v1436
    %1565 = vst [vmem:[%s3 + $0x7c] sm:$0xf] %v1437
    %1566 = vst [vmem:[%s3 + $0x80] sm:$0xf] %v1438
    %1567 = vst [vmem:[%s3 + $0x84] sm:$0xf] %v1439
    %1568 = vst [vmem:[%s3 + $0x88] sm:$0xf] %v1440
    %1569 = vst [vmem:[%s3 + $0x8c] sm:$0xf] %v1441
    %1570 = vst [vmem:[%s3 + $0x90] sm:$0xf] %v1442
    %1571 = vst [vmem:[%s3 + $0x94] sm:$0xf] %v1443
    %1572 = vst [vmem:[%s3 + $0x98] sm:$0xf] %v1444
    %1573 = vst [vmem:[%s3 + $0x9c] sm:$0xf] %v1445
    %1574 = vst [vmem:[%s3 + $0xa0] sm:$0xf] %v1446
    %1575 = vst [vmem:[%s3 + $0xa4] sm:$0xf] %v1447
    %1576 = vst [vmem:[%s3 + $0xa8] sm:$0xf] %v1448
    %1577 = vst [vmem:[%s3 + $0xac] sm:$0xf] %v1449
    %1578 = vst [vmem:[%s3 + $0xb0] sm:$0xf] %v1450
    %1579 = vst [vmem:[%s3 + $0xb4] sm:$0xf] %v1451
    %1580 = vst [vmem:[%s3 + $0xb8] sm:$0xf] %v1452
    %1581 = vst [vmem:[%s3 + $0xbc] sm:$0xf] %v1453
    %1582 = vst [vmem:[%s3 + $0xc0] sm:$0xf] %v1454
    %1583 = vst [vmem:[%s3 + $0xc4] sm:$0xf] %v1455
    %1584 = vst [vmem:[%s3 + $0xc8] sm:$0xf] %v1456
    %1585 = vst [vmem:[%s3 + $0xcc] sm:$0xf] %v1457
    %1586 = vst [vmem:[%s3 + $0xd0] sm:$0xf] %v1458
    %1587 = vst [vmem:[%s3 + $0xd4] sm:$0xf] %v1459
    %1588 = vst [vmem:[%s3 + $0xd8] sm:$0xf] %v1460
    %1589 = vst [vmem:[%s3 + $0xdc] sm:$0xf] %v1461
    %1590 = vst [vmem:[%s3 + $0xe0] sm:$0xf] %v1462
    %1591 = vst [vmem:[%s3 + $0xe4] sm:$0xf] %v1463
    %1592 = vst [vmem:[%s3 + $0xe8] sm:$0xf] %v1464
    %1593 = vst [vmem:[%s3 + $0xec] sm:$0xf] %v1465
    %1594 = vst [vmem:[%s3 + $0xf0] sm:$0xf] %v1466
    %1595 = vst [vmem:[%s3 + $0xf4] sm:$0xf] %v1467
    %1596 = vst [vmem:[%s3 + $0xf8] sm:$0xf] %v1468
    %1597 = vst [vmem:[%s3 + $0xfc] sm:$0xf] %v1469
  $region21: #{style_block_forward.4} parent=0 // pred_fallthru
    _
  // Predicated region
  $region22: #{style_block_forward.4} parent=0 // pred_check
    _
  $region23: #{style_block_forward.4} parent=0 // pred_check_branch
    %1599 = sbr.rel (0) target = $region25
  $region24: #{style_block_forward.4} parent=0 // pred_region
    _
  $region25: #{style_block_forward.4} parent=0 // pred_fallthru
    _
  // Predicated region
  $region26: #{style_block_forward.4} parent=0 // pred_check
    _
  $region27: #{style_block_forward.4} parent=0 // pred_check_branch
    %1601 = sbr.rel (0) target = $region29
  $region28: #{style_block_forward.4} parent=0 // pred_region
    _
  $region29: #{style_block_forward.4} parent=0 // pred_fallthru
    _

// kernel: style_block_forward.5
$region0: #{style_block_forward.5}
  #allocation0 [shape = 'u32[]', space=smem, size = 0x4, offset = 0x4, fixed_abs, tag = 'smem constant byte address 0x4 - core index']
  #allocation1 [shape = 'u32[144,128]{1,0:T(1,128)}', space=vmem, size = 0x12000, scoped, tag = 'internal scratch']
  %s0 = inlined_call_operand.vmem [shape: bf16[2,20,20,4], index: 0, kind: input, shape index: {}]
  %s1 = inlined_call_operand.vmem [shape: bf16[2,17,17,4], index: 1, kind: output, shape index: {}]
  %s2 = sld [smem:[#allocation0]]
  $region37: #{style_block_forward.5} parent=0
    _
  %s4 = ssub.s32 1, %s2
  %s5 = scalar_select 0, %s4, %s2
  loop: start=0, step=1, limit=4
  $region2: #{style_block_forward.5} parent=0 // loop_pre_header
    _
  $region3: #{style_block_forward.5} parent=0 // loop_header
    %s7 = sphi 0, %s11
    %p8 = scmp.ge.s32.totalorder %s7, 4
    %s14 = sphi 0, %s26
    %s15 = sphi 0, %s22
    %s16 = sphi 0, %s14
    %s17 = sphi 0, %s15
    %s18 = sphi 0, %s16
    %s19 = sphi 0, %s17
    %s31 = sphi 0, %s33
    %s34 = sphi 0, %s31
    %s35 = sphi 0, %s34
    %s51 = sphi 0, %s35
    %s59 = sphi 0, %s61
    %s62 = sphi 0, %s59
    %s63 = sphi 0, %s62
    %s79 = sphi 0, %s63
  $region4: #{style_block_forward.5} parent=0 // loop_header_branch
    %10 = sbr.rel (%p8) target = $region8
  $region5: #{style_block_forward.5} parent=0 // loop_body
    %s12 = ssub.s32 %s7, 1
    %s13 = ssub.s32 %s7, 2
    %s20 = sadd.s32 1, %s15
    %p21 = scmp.ge.s32.totalorder %s20, 1
    %s22 = scalar_select %p21, 0, %s20
    %s23 = sadd.s32 1, %s14
    %s24 = scalar_select %p21, %s23, %s14
    %p25 = scmp.ge.s32.totalorder %s24, 2
    %s26 = scalar_select %p25, 0, %s24
    %s27 = ssub.s32 %s14, %s26
    %s28 = ssub.s32 %s15, %s22
    %s29 = sor.u32 %s27, %s28
    %p30 = scmp.eq.s32.totalorder %s29, 0
    %s32 = sadd.s32 %s31, 1
    %s33 = scalar_select %p30, %s31, %s32
    %p36 = pneg %p30
    %p37 = scmp.eq.s32.totalorder %s7, 1
    %p38 = por %p36, %p37
    %p39 = scmp.ne.s32.totalorder %s31, %s34
    %p40 = scmp.eq.s32.totalorder %s7, 0
    %p41 = por %p39, %p40
    %p42 = scmp.ne.s32.totalorder %s31, %s34
    %p43 = scmp.eq.s32.totalorder %s12, 1
    %p44 = por %p42, %p43
    %p45 = scmp.ne.s32.totalorder %s34, %s35
    %p46 = scmp.eq.s32.totalorder %s12, 0
    %p47 = por %p45, %p46
    %p48 = scmp.ne.s32.totalorder %s34, %s35
    %p49 = scmp.eq.s32.totalorder %s13, 1
    %p50 = por %p48, %p49
    %p52 = scmp.ne.s32.totalorder %s35, %s51
    %p53 = scmp.eq.s32.totalorder %s13, 0
    %p54 = por %p52, %p53
    %s55 = ssub.s32 %s14, %s26
    %s56 = ssub.s32 %s15, %s22
    %s57 = sor.u32 %s55, %s56
    %p58 = scmp.eq.s32.totalorder %s57, 0
    %s60 = sadd.s32 %s59, 1
    %s61 = scalar_select %p58, %s59, %s60
    %p64 = pneg %p58
    %p65 = scmp.eq.s32.totalorder %s7, 1
    %p66 = por %p64, %p65
    %p67 = scmp.ne.s32.totalorder %s59, %s62
    %p68 = scmp.eq.s32.totalorder %s7, 0
    %p69 = por %p67, %p68
    %p70 = scmp.ne.s32.totalorder %s59, %s62
    %p71 = scmp.eq.s32.totalorder %s12, 1
    %p72 = por %p70, %p71
    %p73 = scmp.ne.s32.totalorder %s62, %s63
    %p74 = scmp.eq.s32.totalorder %s12, 0
    %p75 = por %p73, %p74
    %p76 = scmp.ne.s32.totalorder %s62, %s63
    %p77 = scmp.eq.s32.totalorder %s13, 1
    %p78 = por %p76, %p77
    %p80 = scmp.ne.s32.totalorder %s63, %s79
    %p81 = scmp.eq.s32.totalorder %s13, 0
    %p82 = por %p80, %p81
    %p83 = scmp.le.s32.totalorder 1, %s7
    %p84 = scmp.lt.s32.totalorder %s7, 3
    %p85 = pnand %p83, %p84
    %p86 = pneg %p85
    // Predicated region
    $region9: #{style_block_forward.5} parent=5 // pred_check
      _
    $region10: #{style_block_forward.5} parent=5 // pred_check_branch
      %88 = sbr.rel (%p85) target = $region12
    $region11: #{style_block_forward.5} parent=5 // pred_region
      %s89 = ssub.s32 %s7, 1
    $region12: #{style_block_forward.5} parent=5 // pred_fallthru
      _
    %p90 = scmp.lt.s32.totalorder %s7, 2
    // Predicated region
    $region13: #{style_block_forward.5} parent=5 // pred_check
      %p91 = pneg %p90
    $region14: #{style_block_forward.5} parent=5 // pred_check_branch
      %93 = sbr.rel (%p91) target = $region16
    $region15: #{style_block_forward.5} parent=5 // pred_region
      // Predicated region
      $region17: #{style_block_forward.5} parent=15 // pred_check
        %p94 = pneg %p41
      $region18: #{style_block_forward.5} parent=15 // pred_check_branch
        %96 = sbr.rel (%p94) target = $region20
      $region19: #{style_block_forward.5} parent=15 // pred_region
        %p97 = scmp.lt.s32.totalorder %s14, 1
        %s98 = scalar_select %p97, %s14, 1
        %p99 = scmp.lt.s32.totalorder %s15, 0
        %s100 = scalar_select %p99, %s15, 0
        %s101 = smul.addr %s98, 60
        %s102 = sadd.s32 %s100, %s101
        %s103 = smul.addr %s102, 4
        %s104 = scalar_lea.vmem %s0, %s103
      $region20: #{style_block_forward.5} parent=15 // pred_fallthru
        _
    $region16: #{style_block_forward.5} parent=5 // pred_fallthru
      _
    %p105 = scmp.le.s32.totalorder 1, %s7
    %p106 = scmp.lt.s32.totalorder %s7, 3
    %p107 = pnand %p105, %p106
    %p108 = pneg %p107
    // Predicated region
    $region21: #{style_block_forward.5} parent=5 // pred_check
      _
    $region22: #{style_block_forward.5} parent=5 // pred_check_branch
      %110 = sbr.rel (%p107) target = $region24
    $region23: #{style_block_forward.5} parent=5 // pred_region
      %s111 = ssub.s32 %s7, 1
      %p112 = scmp.lt.s32.totalorder %s16, 1
      %s113 = scalar_select %p112, %s16, 1
      %p114 = scmp.lt.s32.totalorder %s17, 0
      %s115 = scalar_select %p114, %s17, 0
      %s116 = smul.addr %s113, 60
      %s117 = sadd.s32 %s115, %s116
      %s118 = smul.addr %s117, 4
      %s119 = scalar_lea.vmem %s0, %s118
      %p120 = pneg %p47
      %p121 = pneg %p44
      %p122 = pneg %p75
      %p123 = pneg %p72
      %p124 = scmp.lt.s32.totalorder %s16, 1
      %s125 = scalar_select %p124, %s16, 1
      %p126 = scmp.lt.s32.totalorder %s17, 0
      %s127 = scalar_select %p126, %s17, 0
      %s128 = smul.addr %s125, 51
      %s129 = sadd.s32 %s127, %s128
      %s130 = smul.addr %s129, 4
      %s131 = scalar_lea.vmem %s1, %s130
      %p132 = scmp.lt.s32.totalorder %s16, 1
      %s133 = scalar_select %p132, %s16, 1
      %p134 = scmp.lt.s32.totalorder %s17, 0
      %s135 = scalar_select %p134, %s17, 0
      %s136 = smul.addr %s133, 60
      %s137 = sadd.s32 %s135, %s136
      %s138 = smul.addr %s137, 4
      %s139 = scalar_lea.vmem %s0, %s138
      %p140 = scmp.lt.s32.totalorder %s16, 1
      %s141 = scalar_select %p140, %s16, 1
      %p142 = scmp.lt.s32.totalorder %s17, 0
      %s143 = scalar_select %p142, %s17, 0
      %s144 = smul.addr %s141, 51
      %s145 = sadd.s32 %s143, %s144
      %s146 = smul.addr %s145, 4
      %s147 = scalar_lea.vmem %s1, %s146
      %v148 = vld [vmem:[%s139] sm:$0xf]
      %v149 = vld [vmem:[%s139 + $0x4] sm:$0xf]
      %v150 = vld [vmem:[%s139 + $0x8] sm:$0x3]
      %v151 = vld [vmem:[%s139 + $0xc] sm:$0xf]
      %v152 = vld [vmem:[%s139 + $0x10] sm:$0xf]
      %v153 = vld [vmem:[%s139 + $0x14] sm:$0x3]
      %v154 = vld [vmem:[%s139 + $0x18] sm:$0xf]
      %v155 = vld [vmem:[%s139 + $0x1c] sm:$0xf]
      %v156 = vld [vmem:[%s139 + $0x20] sm:$0x3]
      %v157 = vld [vmem:[%s139 + $0x24] sm:$0xf]
      %v158 = vld [vmem:[%s139 + $0x28] sm:$0xf]
      %v159 = vld [vmem:[%s139 + $0x2c] sm:$0x3]
      %v160 = vld [vmem:[%s139 + $0x30] sm:$0xf]
      %v161 = vld [vmem:[%s139 + $0x34] sm:$0xf]
      %v162 = vld [vmem:[%s139 + $0x38] sm:$0x3]
      %v163 = vld [vmem:[%s139 + $0x3c] sm:$0xf]
      %v164 = vld [vmem:[%s139 + $0x40] sm:$0xf]
      %v165 = vld [vmem:[%s139 + $0x44] sm:$0x3]
      %v166 = vld [vmem:[%s139 + $0x48] sm:$0xf]
      %v167 = vld [vmem:[%s139 + $0x4c] sm:$0xf]
      %v168 = vld [vmem:[%s139 + $0x50] sm:$0x3]
      %v169 = vld [vmem:[%s139 + $0x54] sm:$0xf]
      %v170 = vld [vmem:[%s139 + $0x58] sm:$0xf]
      %v171 = vld [vmem:[%s139 + $0x5c] sm:$0x3]
      %v172 = vld [vmem:[%s139 + $0x60] sm:$0xf]
      %v173 = vld [vmem:[%s139 + $0x64] sm:$0xf]
      %v174 = vld [vmem:[%s139 + $0x68] sm:$0x3]
      %v175 = vld [vmem:[%s139 + $0x6c] sm:$0xf]
      %v176 = vld [vmem:[%s139 + $0x70] sm:$0xf]
      %v177 = vld [vmem:[%s139 + $0x74] sm:$0x3]
      %v178 = vld [vmem:[%s139 + $0x78] sm:$0xf]
      %v179 = vld [vmem:[%s139 + $0x7c] sm:$0xf]
      %v180 = vld [vmem:[%s139 + $0x80] sm:$0x3]
      %v181 = vld [vmem:[%s139 + $0x84] sm:$0xf]
      %v182 = vld [vmem:[%s139 + $0x88] sm:$0xf]
      %v183 = vld [vmem:[%s139 + $0x8c] sm:$0x3]
      %v184 = vld [vmem:[%s139 + $0x90] sm:$0xf]
      %v185 = vld [vmem:[%s139 + $0x94] sm:$0xf]
      %v186 = vld [vmem:[%s139 + $0x98] sm:$0x3]
      %v187 = vld [vmem:[%s139 + $0x9c] sm:$0xf]
      %v188 = vld [vmem:[%s139 + $0xa0] sm:$0xf]
      %v189 = vld [vmem:[%s139 + $0xa4] sm:$0x3]
      %v190 = vld [vmem:[%s139 + $0xa8] sm:$0xf]
      %v191 = vld [vmem:[%s139 + $0xac] sm:$0xf]
      %v192 = vld [vmem:[%s139 + $0xb0] sm:$0x3]
      %v193 = vld [vmem:[%s139 + $0xb4] sm:$0xf]
      %v194 = vld [vmem:[%s139 + $0xb8] sm:$0xf]
      %v195 = vld [vmem:[%s139 + $0xbc] sm:$0x3]
      %v196 = vld [vmem:[%s139 + $0xc0] sm:$0xf]
      %v197 = vld [vmem:[%s139 + $0xc4] sm:$0xf]
      %v198 = vld [vmem:[%s139 + $0xc8] sm:$0x3]
      %v199 = vld [vmem:[%s139 + $0xcc] sm:$0xf]
      %v200 = vld [vmem:[%s139 + $0xd0] sm:$0xf]
      %v201 = vld [vmem:[%s139 + $0xd4] sm:$0x3]
      %v202 = vld [vmem:[%s139 + $0xd8] sm:$0xf]
      %v203 = vld [vmem:[%s139 + $0xdc] sm:$0xf]
      %v204 = vld [vmem:[%s139 + $0xe0] sm:$0x3]
      %v205 = vld [vmem:[%s139 + $0xe4] sm:$0xf]
      %v206 = vld [vmem:[%s139 + $0xe8] sm:$0xf]
      %v207 = vld [vmem:[%s139 + $0xec] sm:$0x3]
      %v208 = vunpack.c.l.bf16 %v148
      %v209 = vunpack.c.l.bf16 %v149
      %v210 = vunpack.c.l.bf16 %v150
      %v211 = vunpack.c.l.bf16 %v151
      %v212 = vunpack.c.l.bf16 %v152
      %v213 = vunpack.c.l.bf16 %v153
      %v214 = vunpack.c.l.bf16 %v154
      %v215 = vunpack.c.l.bf16 %v155
      %v216 = vunpack.c.l.bf16 %v156
      %v217 = vunpack.c.l.bf16 %v157
      %v218 = vunpack.c.l.bf16 %v158
      %v219 = vunpack.c.l.bf16 %v159
      %v220 = vunpack.c.l.bf16 %v160
      %v221 = vunpack.c.l.bf16 %v161
      %v222 = vunpack.c.l.bf16 %v162
      %v223 = vunpack.c.l.bf16 %v163
      %v224 = vunpack.c.l.bf16 %v164
      %v225 = vunpack.c.l.bf16 %v165
      %v226 = vunpack.c.l.bf16 %v166
      %v227 = vunpack.c.l.bf16 %v167
      %v228 = vunpack.c.l.bf16 %v168
      %v229 = vunpack.c.l.bf16 %v169
      %v230 = vunpack.c.l.bf16 %v170
      %v231 = vunpack.c.l.bf16 %v171
      %v232 = vunpack.c.l.bf16 %v172
      %v233 = vunpack.c.l.bf16 %v173
      %v234 = vunpack.c.l.bf16 %v174
      %v235 = vunpack.c.l.bf16 %v175
      %v236 = vunpack.c.l.bf16 %v176
      %v237 = vunpack.c.l.bf16 %v177
      %v238 = vunpack.c.l.bf16 %v178
      %v239 = vunpack.c.l.bf16 %v179
      %v240 = vunpack.c.l.bf16 %v180
      %v241 = vunpack.c.l.bf16 %v181
      %v242 = vunpack.c.l.bf16 %v182
      %v243 = vunpack.c.l.bf16 %v183
      %v244 = vunpack.c.l.bf16 %v184
      %v245 = vunpack.c.l.bf16 %v185
      %v246 = vunpack.c.l.bf16 %v186
      %v247 = vunpack.c.l.bf16 %v187
      %v248 = vunpack.c.l.bf16 %v188
      %v249 = vunpack.c.l.bf16 %v189
      %v250 = vunpack.c.l.bf16 %v190
      %v251 = vunpack.c.l.bf16 %v191
      %v252 = vunpack.c.l.bf16 %v192
      %v253 = vunpack.c.l.bf16 %v193
      %v254 = vunpack.c.l.bf16 %v194
      %v255 = vunpack.c.l.bf16 %v195
      %v256 = vunpack.c.l.bf16 %v196
      %v257 = vunpack.c.l.bf16 %v197
      %v258 = vunpack.c.l.bf16 %v198
      %v259 = vunpack.c.l.bf16 %v199
      %v260 = vunpack.c.l.bf16 %v200
      %v261 = vunpack.c.l.bf16 %v201
      %v262 = vunpack.c.l.bf16 %v202
      %v263 = vunpack.c.l.bf16 %v203
      %v264 = vunpack.c.l.bf16 %v204
      %v265 = vunpack.c.l.bf16 %v205
      %v266 = vunpack.c.l.bf16 %v206
      %v267 = vunpack.c.l.bf16 %v207
      %v268 = vmul.f32 %v208, 0.125
      %v269 = vmul.f32 %v209, 0.125
      %v270 = vmul.f32 %v210, 0.125
      %v271 = vmul.f32 %v211, 0.125
      %v272 = vmul.f32 %v212, 0.125
      %v273 = vmul.f32 %v213, 0.125
      %v274 = vmul.f32 %v214, 0.125
      %v275 = vmul.f32 %v215, 0.125
      %v276 = vmul.f32 %v216, 0.125
      %v277 = vmul.f32 %v217, 0.125
      %v278 = vmul.f32 %v218, 0.125
      %v279 = vmul.f32 %v219, 0.125
      %v280 = vmul.f32 %v220, 0.125
      %v281 = vmul.f32 %v221, 0.125
      %v282 = vmul.f32 %v222, 0.125
      %v283 = vmul.f32 %v223, 0.125
      %v284 = vmul.f32 %v224, 0.125
      %v285 = vmul.f32 %v225, 0.125
      %v286 = vmul.f32 %v226, 0.125
      %v287 = vmul.f32 %v227, 0.125
      %v288 = vmul.f32 %v228, 0.125
      %v289 = vmul.f32 %v229, 0.125
      %v290 = vmul.f32 %v230, 0.125
      %v291 = vmul.f32 %v231, 0.125
      %v292 = vmul.f32 %v232, 0.125
      %v293 = vmul.f32 %v233, 0.125
      %v294 = vmul.f32 %v234, 0.125
      %v295 = vmul.f32 %v235, 0.125
      %v296 = vmul.f32 %v236, 0.125
      %v297 = vmul.f32 %v237, 0.125
      %v298 = vmul.f32 %v238, 0.125
      %v299 = vmul.f32 %v239, 0.125
      %v300 = vmul.f32 %v240, 0.125
      %v301 = vmul.f32 %v241, 0.125
      %v302 = vmul.f32 %v242, 0.125
      %v303 = vmul.f32 %v243, 0.125
      %v304 = vmul.f32 %v244, 0.125
      %v305 = vmul.f32 %v245, 0.125
      %v306 = vmul.f32 %v246, 0.125
      %v307 = vmul.f32 %v247, 0.125
      %v308 = vmul.f32 %v248, 0.125
      %v309 = vmul.f32 %v249, 0.125
      %v310 = vmul.f32 %v250, 0.125
      %v311 = vmul.f32 %v251, 0.125
      %v312 = vmul.f32 %v252, 0.125
      %v313 = vmul.f32 %v253, 0.125
      %v314 = vmul.f32 %v254, 0.125
      %v315 = vmul.f32 %v255, 0.125
      %v316 = vmul.f32 %v256, 0.125
      %v317 = vmul.f32 %v257, 0.125
      %v318 = vmul.f32 %v258, 0.125
      %v319 = vmul.f32 %v211, 0.375
      %v320 = vmul.f32 %v212, 0.375
      %v321 = vmul.f32 %v213, 0.375
      %v322 = vmul.f32 %v214, 0.375
      %v323 = vmul.f32 %v215, 0.375
      %v324 = vmul.f32 %v216, 0.375
      %v325 = vmul.f32 %v217, 0.375
      %v326 = vmul.f32 %v218, 0.375
      %v327 = vmul.f32 %v219, 0.375
      %v328 = vmul.f32 %v220, 0.375
      %v329 = vmul.f32 %v221, 0.375
      %v330 = vmul.f32 %v222, 0.375
      %v331 = vmul.f32 %v223, 0.375
      %v332 = vmul.f32 %v224, 0.375
      %v333 = vmul.f32 %v225, 0.375
      %v334 = vmul.f32 %v226, 0.375
      %v335 = vmul.f32 %v227, 0.375
      %v336 = vmul.f32 %v228, 0.375
      %v337 = vmul.f32 %v229, 0.375
      %v338 = vmul.f32 %v230, 0.375
      %v339 = vmul.f32 %v231, 0.375
      %v340 = vmul.f32 %v232, 0.375
      %v341 = vmul.f32 %v233, 0.375
      %v342 = vmul.f32 %v234, 0.375
      %v343 = vmul.f32 %v235, 0.375
      %v344 = vmul.f32 %v236, 0.375
      %v345 = vmul.f32 %v237, 0.375
      %v346 = vmul.f32 %v238, 0.375
      %v347 = vmul.f32 %v239, 0.375
      %v348 = vmul.f32 %v240, 0.375
      %v349 = vmul.f32 %v241, 0.375
      %v350 = vmul.f32 %v242, 0.375
      %v351 = vmul.f32 %v243, 0.375
      %v352 = vmul.f32 %v244, 0.375
      %v353 = vmul.f32 %v245, 0.375
      %v354 = vmul.f32 %v246, 0.375
      %v355 = vmul.f32 %v247, 0.375
      %v356 = vmul.f32 %v248, 0.375
      %v357 = vmul.f32 %v249, 0.375
      %v358 = vmul.f32 %v250, 0.375
      %v359 = vmul.f32 %v251, 0.375
      %v360 = vmul.f32 %v252, 0.375
      %v361 = vmul.f32 %v253, 0.375
      %v362 = vmul.f32 %v254, 0.375
      %v363 = vmul.f32 %v255, 0.375
      %v364 = vmul.f32 %v256, 0.375
      %v365 = vmul.f32 %v257, 0.375
      %v366 = vmul.f32 %v258, 0.375
      %v367 = vmul.f32 %v259, 0.375
      %v368 = vmul.f32 %v260, 0.375
      %v369 = vmul.f32 %v261, 0.375
      %v370 = vadd.f32 %v268, %v319
      %v371 = vadd.f32 %v269, %v320
      %v372 = vadd.f32 %v270, %v321
      %v373 = vadd.f32 %v271, %v322
      %v374 = vadd.f32 %v272, %v323
      %v375 = vadd.f32 %v273, %v324
      %v376 = vadd.f32 %v274, %v325
      %v377 = vadd.f32 %v275, %v326
      %v378 = vadd.f32 %v276, %v327
      %v379 = vadd.f32 %v277, %v328
      %v380 = vadd.f32 %v278, %v329
      %v381 = vadd.f32 %v279, %v330
      %v382 = vadd.f32 %v280, %v331
      %v383 = vadd.f32 %v281, %v332
      %v384 = vadd.f32 %v282, %v333
      %v385 = vadd.f32 %v283, %v334
      %v386 = vadd.f32 %v284, %v335
      %v387 = vadd.f32 %v285, %v336
      %v388 = vadd.f32 %v286, %v337
      %v389 = vadd.f32 %v287, %v338
      %v390 = vadd.f32 %v288, %v339
      %v391 = vadd.f32 %v289, %v340
      %v392 = vadd.f32 %v290, %v341
      %v393 = vadd.f32 %v291, %v342
      %v394 = vadd.f32 %v292, %v343
      %v395 = vadd.f32 %v293, %v344
      %v396 = vadd.f32 %v294, %v345
      %v397 = vadd.f32 %v295, %v346
      %v398 = vadd.f32 %v296, %v347
      %v399 = vadd.f32 %v297, %v348
      %v400 = vadd.f32 %v298, %v349
      %v401 = vadd.f32 %v299, %v350
      %v402 = vadd.f32 %v300, %v351
      %v403 = vadd.f32 %v301, %v352
      %v404 = vadd.f32 %v302, %v353
      %v405 = vadd.f32 %v303, %v354
      %v406 = vadd.f32 %v304, %v355
      %v407 = vadd.f32 %v305, %v356
      %v408 = vadd.f32 %v306, %v357
      %v409 = vadd.f32 %v307, %v358
      %v410 = vadd.f32 %v308, %v359
      %v411 = vadd.f32 %v309, %v360
      %v412 = vadd.f32 %v310, %v361
      %v413 = vadd.f32 %v311, %v362
      %v414 = vadd.f32 %v312, %v363
      %v415 = vadd.f32 %v313, %v364
      %v416 = vadd.f32 %v314, %v365
      %v417 = vadd.f32 %v315, %v366
      %v418 = vadd.f32 %v316, %v367
      %v419 = vadd.f32 %v317, %v368
      %v420 = vadd.f32 %v318, %v369
      %v421 = vmul.f32 %v262, 0.375
      %v422 = vmul.f32 %v263, 0.375
      %v423 = vmul.f32 %v264, 0.375
      %v424 = vadd.f32 %v370, %v322
      %v425 = vadd.f32 %v371, %v323
      %v426 = vadd.f32 %v372, %v324
      %v427 = vadd.f32 %v373, %v325
      %v428 = vadd.f32 %v374, %v326
      %v429 = vadd.f32 %v375, %v327
      %v430 = vadd.f32 %v376, %v328
      %v431 = vadd.f32 %v377, %v329
      %v432 = vadd.f32 %v378, %v330
      %v433 = vadd.f32 %v379, %v331
      %v434 = vadd.f32 %v380, %v332
      %v435 = vadd.f32 %v381, %v333
      %v436 = vadd.f32 %v382, %v334
      %v437 = vadd.f32 %v383, %v335
      %v438 = vadd.f32 %v384, %v336
      %v439 = vadd.f32 %v385, %v337
      %v440 = vadd.f32 %v386, %v338
      %v441 = vadd.f32 %v387, %v339
      %v442 = vadd.f32 %v388, %v340
      %v443 = vadd.f32 %v389, %v341
      %v444 = vadd.f32 %v390, %v342
      %v445 = vadd.f32 %v391, %v343
      %v446 = vadd.f32 %v392, %v344
      %v447 = vadd.f32 %v393, %v345
      %v448 = vadd.f32 %v394, %v346
      %v449 = vadd.f32 %v395, %v347
      %v450 = vadd.f32 %v396, %v348
      %v451 = vadd.f32 %v397, %v349
      %v452 = vadd.f32 %v398, %v350
      %v453 = vadd.f32 %v399, %v351
      %v454 = vadd.f32 %v400, %v352
      %v455 = vadd.f32 %v401, %v353
      %v456 = vadd.f32 %v402, %v354
      %v457 = vadd.f32 %v403, %v355
      %v458 = vadd.f32 %v404, %v356
      %v459 = vadd.f32 %v405, %v357
      %v460 = vadd.f32 %v406, %v358
      %v461 = vadd.f32 %v407, %v359
      %v462 = vadd.f32 %v408, %v360
      %v463 = vadd.f32 %v409, %v361
      %v464 = vadd.f32 %v410, %v362
      %v465 = vadd.f32 %v411, %v363
      %v466 = vadd.f32 %v412, %v364
      %v467 = vadd.f32 %v413, %v365
      %v468 = vadd.f32 %v414, %v366
      %v469 = vadd.f32 %v415, %v367
      %v470 = vadd.f32 %v416, %v368
      %v471 = vadd.f32 %v417, %v369
      %v472 = vadd.f32 %v418, %v421
      %v473 = vadd.f32 %v419, %v422
      %v474 = vadd.f32 %v420, %v423
      %v475 = vmul.f32 %v259, 0.125
      %v476 = vmul.f32 %v260, 0.125
      %v477 = vmul.f32 %v261, 0.125
      %v478 = vmul.f32 %v262, 0.125
      %v479 = vmul.f32 %v263, 0.125
      %v480 = vmul.f32 %v264, 0.125
      %v481 = vmul.f32 %v265, 0.125
      %v482 = vmul.f32 %v266, 0.125
      %v483 = vmul.f32 %v267, 0.125
      %v484 = vadd.f32 %v424, %v277
      %v485 = vadd.f32 %v425, %v278
      %v486 = vadd.f32 %v426, %v279
      %v487 = vadd.f32 %v427, %v280
      %v488 = vadd.f32 %v428, %v281
      %v489 = vadd.f32 %v429, %v282
      %v490 = vadd.f32 %v430, %v283
      %v491 = vadd.f32 %v431, %v284
      %v492 = vadd.f32 %v432, %v285
      %v493 = vadd.f32 %v433, %v286
      %v494 = vadd.f32 %v434, %v287
      %v495 = vadd.f32 %v435, %v288
      %v496 = vadd.f32 %v436, %v289
      %v497 = vadd.f32 %v437, %v290
      %v498 = vadd.f32 %v438, %v291
      %v499 = vadd.f32 %v439, %v292
      %v500 = vadd.f32 %v440, %v293
      %v501 = vadd.f32 %v441, %v294
      %v502 = vadd.f32 %v442, %v295
      %v503 = vadd.f32 %v443, %v296
      %v504 = vadd.f32 %v444, %v297
      %v505 = vadd.f32 %v445, %v298
      %v506 = vadd.f32 %v446, %v299
      %v507 = vadd.f32 %v447, %v300
      %v508 = vadd.f32 %v448, %v301
      %v509 = vadd.f32 %v449, %v302
      %v510 = vadd.f32 %v450, %v303
      %v511 = vadd.f32 %v451, %v304
      %v512 = vadd.f32 %v452, %v305
      %v513 = vadd.f32 %v453, %v306
      %v514 = vadd.f32 %v454, %v307
      %v515 = vadd.f32 %v455, %v308
      %v516 = vadd.f32 %v456, %v309
      %v517 = vadd.f32 %v457, %v310
      %v518 = vadd.f32 %v458, %v311
      %v519 = vadd.f32 %v459, %v312
      %v520 = vadd.f32 %v460, %v313
      %v521 = vadd.f32 %v461, %v314
      %v522 = vadd.f32 %v462, %v315
      %v523 = vadd.f32 %v463, %v316
      %v524 = vadd.f32 %v464, %v317
      %v525 = vadd.f32 %v465, %v318
      %v526 = vadd.f32 %v466, %v475
      %v527 = vadd.f32 %v467, %v476
      %v528 = vadd.f32 %v468, %v477
      %v529 = vadd.f32 %v469, %v478
      %v530 = vadd.f32 %v470, %v479
      %v531 = vadd.f32 %v471, %v480
      %v532 = vadd.f32 %v472, %v481
      %v533 = vadd.f32 %v473, %v482
      %v534 = vadd.f32 %v474, %v483
      %v535 = vmul.f32 %v484, 0.125
      %v536 = vmul.f32 %v485, 0.125
      %v537 = vmul.f32 %v486, 0.125
      %v538 = vmul.f32 %v487, 0.125
      %v539 = vmul.f32 %v488, 0.125
      %v540 = vmul.f32 %v489, 0.125
      %v541 = vmul.f32 %v490, 0.125
      %v542 = vmul.f32 %v491, 0.125
      %v543 = vmul.f32 %v492, 0.125
      %v544 = vmul.f32 %v493, 0.125
      %v545 = vmul.f32 %v494, 0.125
      %v546 = vmul.f32 %v495, 0.125
      %v547 = vmul.f32 %v496, 0.125
      %v548 = vmul.f32 %v497, 0.125
      %v549 = vmul.f32 %v498, 0.125
      %v550 = vmul.f32 %v499, 0.125
      %v551 = vmul.f32 %v500, 0.125
      %v552 = vmul.f32 %v501, 0.125
      %v553 = vmul.f32 %v502, 0.125
      %v554 = vmul.f32 %v503, 0.125
      %v555 = vmul.f32 %v504, 0.125
      %v556 = vmul.f32 %v505, 0.125
      %v557 = vmul.f32 %v506, 0.125
      %v558 = vmul.f32 %v507, 0.125
      %v559 = vmul.f32 %v508, 0.125
      %v560 = vmul.f32 %v509, 0.125
      %v561 = vmul.f32 %v510, 0.125
      %v562 = vmul.f32 %v511, 0.125
      %v563 = vmul.f32 %v512, 0.125
      %v564 = vmul.f32 %v513, 0.125
      %v565 = vmul.f32 %v514, 0.125
      %v566 = vmul.f32 %v515, 0.125
      %v567 = vmul.f32 %v516, 0.125
      %v568 = vmul.f32 %v517, 0.125
      %v569 = vmul.f32 %v518, 0.125
      %v570 = vmul.f32 %v519, 0.125
      %v571 = vmul.f32 %v520, 0.125
      %v572 = vmul.f32 %v521, 0.125
      %v573 = vmul.f32 %v522, 0.125
      %v574 = vmul.f32 %v523, 0.125
      %v575 = vmul.f32 %v524, 0.125
      %v576 = vmul.f32 %v525, 0.125
      %v577 = vmul.f32 %v526, 0.125
      %v578 = vmul.f32 %v527, 0.125
      %v579 = vmul.f32 %v528, 0.125
      %v580 = vmul.f32 %v529, 0.125
      %v581 = vmul.f32 %v530, 0.125
      %v582 = vmul.f32 %v531, 0.125
      %v583 = vmul.f32 %v532, 0.125
      %v584 = vmul.f32 %v533, 0.125
      %v585 = vmul.f32 %v534, 0.125
      %v586 = vmul.f32 %v484, 0.375
      %v587 = vmul.f32 %v485, 0.375
      %v588 = vmul.f32 %v486, 0.375
      %v589 = vmul.f32 %v487, 0.375
      %v590 = vmul.f32 %v488, 0.375
      %v591 = vmul.f32 %v489, 0.375
      %v592 = vmul.f32 %v490, 0.375
      %v593 = vmul.f32 %v491, 0.375
      %v594 = vmul.f32 %v492, 0.375
      %v595 = vmul.f32 %v493, 0.375
      %v596 = vmul.f32 %v494, 0.375
      %v597 = vmul.f32 %v495, 0.375
      %v598 = vmul.f32 %v496, 0.375
      %v599 = vmul.f32 %v497, 0.375
      %v600 = vmul.f32 %v498, 0.375
      %v601 = vmul.f32 %v499, 0.375
      %v602 = vmul.f32 %v500, 0.375
      %v603 = vmul.f32 %v501, 0.375
      %v604 = vmul.f32 %v502, 0.375
      %v605 = vmul.f32 %v503, 0.375
      %v606 = vmul.f32 %v504, 0.375
      %v607 = vmul.f32 %v505, 0.375
      %v608 = vmul.f32 %v506, 0.375
      %v609 = vmul.f32 %v507, 0.375
      %v610 = vmul.f32 %v508, 0.375
      %v611 = vmul.f32 %v509, 0.375
      %v612 = vmul.f32 %v510, 0.375
      %v613 = vmul.f32 %v511, 0.375
      %v614 = vmul.f32 %v512, 0.375
      %v615 = vmul.f32 %v513, 0.375
      %v616 = vmul.f32 %v514, 0.375
      %v617 = vmul.f32 %v515, 0.375
      %v618 = vmul.f32 %v516, 0.375
      %v619 = vmul.f32 %v517, 0.375
      %v620 = vmul.f32 %v518, 0.375
      %v621 = vmul.f32 %v519, 0.375
      %v622 = vmul.f32 %v520, 0.375
      %v623 = vmul.f32 %v521, 0.375
      %v624 = vmul.f32 %v522, 0.375
      %v625 = vmul.f32 %v523, 0.375
      %v626 = vmul.f32 %v524, 0.375
      %v627 = vmul.f32 %v525, 0.375
      %v628 = vmul.f32 %v526, 0.375
      %v629 = vmul.f32 %v527, 0.375
      %v630 = vmul.f32 %v528, 0.375
      %v631 = vmul.f32 %v529, 0.375
      %v632 = vmul.f32 %v530, 0.375
      %v633 = vmul.f32 %v531, 0.375
      %v634 = vmul.f32 %v532, 0.375
      %v635 = vmul.f32 %v533, 0.375
      %v636 = vmul.f32 %v534, 0.375
      %vm688 = vcmask 1046528
      %v689 = vrot.slane %v586, 1
      %v690 = vrot.slane %v587, 1
      %v691 = vsel %vm688, %v689, %v690
      %v692 = vrot.slane %v588, 1
      %v693 = vsel %vm688, %v690, %v692
      %v694 = vrot.slane %v589, 1
      %v695 = vrot.slane %v590, 1
      %v696 = vsel %vm688, %v694, %v695
      %v697 = vrot.slane %v591, 1
      %v698 = vsel %vm688, %v695, %v697
      %v699 = vrot.slane %v592, 1
      %v700 = vrot.slane %v593, 1
      %v701 = vsel %vm688, %v699, %v700
      %v702 = vrot.slane %v594, 1
      %v703 = vsel %vm688, %v700, %v702
      %v704 = vrot.slane %v595, 1
      %v705 = vrot.slane %v596, 1
      %v706 = vsel %vm688, %v704, %v705
      %v707 = vrot.slane %v597, 1
      %v708 = vsel %vm688, %v705, %v707
      %v709 = vrot.slane %v598, 1
      %v710 = vrot.slane %v599, 1
      %v711 = vsel %vm688, %v709, %v710
      %v712 = vrot.slane %v600, 1
      %v713 = vsel %vm688, %v710, %v712
      %v714 = vrot.slane %v601, 1
      %v715 = vrot.slane %v602, 1
      %v716 = vsel %vm688, %v714, %v715
      %v717 = vrot.slane %v603, 1
      %v718 = vsel %vm688, %v715, %v717
      %v719 = vrot.slane %v604, 1
      %v720 = vrot.slane %v605, 1
      %v721 = vsel %vm688, %v719, %v720
      %v722 = vrot.slane %v606, 1
      %v723 = vsel %vm688, %v720, %v722
      %v724 = vrot.slane %v607, 1
      %v725 = vrot.slane %v608, 1
      %v726 = vsel %vm688, %v724, %v725
      %v727 = vrot.slane %v609, 1
      %v728 = vsel %vm688, %v725, %v727
      %v729 = vrot.slane %v610, 1
      %v730 = vrot.slane %v611, 1
      %v731 = vsel %vm688, %v729, %v730
      %v732 = vrot.slane %v612, 1
      %v733 = vsel %vm688, %v730, %v732
      %v734 = vrot.slane %v613, 1
      %v735 = vrot.slane %v614, 1
      %v736 = vsel %vm688, %v734, %v735
      %v737 = vrot.slane %v615, 1
      %v738 = vsel %vm688, %v735, %v737
      %v739 = vrot.slane %v616, 1
      %v740 = vrot.slane %v617, 1
      %v741 = vsel %vm688, %v739, %v740
      %v742 = vrot.slane %v618, 1
      %v743 = vsel %vm688, %v740, %v742
      %v744 = vrot.slane %v619, 1
      %v745 = vrot.slane %v620, 1
      %v746 = vsel %vm688, %v744, %v745
      %v747 = vrot.slane %v621, 1
      %v748 = vsel %vm688, %v745, %v747
      %v749 = vrot.slane %v622, 1
      %v750 = vrot.slane %v623, 1
      %v751 = vsel %vm688, %v749, %v750
      %v752 = vrot.slane %v624, 1
      %v753 = vsel %vm688, %v750, %v752
      %v754 = vrot.slane %v625, 1
      %v755 = vrot.slane %v626, 1
      %v756 = vsel %vm688, %v754, %v755
      %v757 = vrot.slane %v627, 1
      %v758 = vsel %vm688, %v755, %v757
      %v759 = vrot.slane %v628, 1
      %v760 = vrot.slane %v629, 1
      %v761 = vsel %vm688, %v759, %v760
      %v762 = vrot.slane %v630, 1
      %v763 = vsel %vm688, %v760, %v762
      %v764 = vrot.slane %v631, 1
      %v765 = vrot.slane %v632, 1
      %v766 = vsel %vm688, %v764, %v765
      %v767 = vrot.slane %v633, 1
      %v768 = vsel %vm688, %v765, %v767
      %v769 = vrot.slane %v634, 1
      %v770 = vrot.slane %v635, 1
      %v771 = vsel %vm688, %v769, %v770
      %v772 = vrot.slane %v636, 1
      %v773 = vsel %vm688, %v770, %v772
      %v825 = vadd.f32 %v535, %v691
      %v826 = vadd.f32 %v536, %v693
      %v827 = vadd.f32 %v537, %v692
      %v828 = vadd.f32 %v538, %v696
      %v829 = vadd.f32 %v539, %v698
      %v830 = vadd.f32 %v540, %v697
      %v831 = vadd.f32 %v541, %v701
      %v832 = vadd.f32 %v542, %v703
      %v833 = vadd.f32 %v543, %v702
      %v834 = vadd.f32 %v544, %v706
      %v835 = vadd.f32 %v545, %v708
      %v836 = vadd.f32 %v546, %v707
      %v837 = vadd.f32 %v547, %v711
      %v838 = vadd.f32 %v548, %v713
      %v839 = vadd.f32 %v549, %v712
      %v840 = vadd.f32 %v550, %v716
      %v841 = vadd.f32 %v551, %v718
      %v842 = vadd.f32 %v552, %v717
      %v843 = vadd.f32 %v553, %v721
      %v844 = vadd.f32 %v554, %v723
      %v845 = vadd.f32 %v555, %v722
      %v846 = vadd.f32 %v556, %v726
      %v847 = vadd.f32 %v557, %v728
      %v848 = vadd.f32 %v558, %v727
      %v849 = vadd.f32 %v559, %v731
      %v850 = vadd.f32 %v560, %v733
      %v851 = vadd.f32 %v561, %v732
      %v852 = vadd.f32 %v562, %v736
      %v853 = vadd.f32 %v563, %v738
      %v854 = vadd.f32 %v564, %v737
      %v855 = vadd.f32 %v565, %v741
      %v856 = vadd.f32 %v566, %v743
      %v857 = vadd.f32 %v567, %v742
      %v858 = vadd.f32 %v568, %v746
      %v859 = vadd.f32 %v569, %v748
      %v860 = vadd.f32 %v570, %v747
      %v861 = vadd.f32 %v571, %v751
      %v862 = vadd.f32 %v572, %v753
      %v863 = vadd.f32 %v573, %v752
      %v864 = vadd.f32 %v574, %v756
      %v865 = vadd.f32 %v575, %v758
      %v866 = vadd.f32 %v576, %v757
      %v867 = vadd.f32 %v577, %v761
      %v868 = vadd.f32 %v578, %v763
      %v869 = vadd.f32 %v579, %v762
      %v870 = vadd.f32 %v580, %v766
      %v871 = vadd.f32 %v581, %v768
      %v872 = vadd.f32 %v582, %v767
      %v873 = vadd.f32 %v583, %v771
      %v874 = vadd.f32 %v584, %v773
      %v875 = vadd.f32 %v585, %v772
      %vm876 = vcmask 1045504
      %v877 = vrot.slane %v586, 2
      %v878 = vrot.slane %v587, 2
      %v879 = vsel %vm876, %v877, %v878
      %v880 = vrot.slane %v588, 2
      %v881 = vsel %vm876, %v878, %v880
      %v882 = vrot.slane %v589, 2
      %v883 = vrot.slane %v590, 2
      %v884 = vsel %vm876, %v882, %v883
      %v885 = vrot.slane %v591, 2
      %v886 = vsel %vm876, %v883, %v885
      %v887 = vrot.slane %v592, 2
      %v888 = vrot.slane %v593, 2
      %v889 = vsel %vm876, %v887, %v888
      %v890 = vrot.slane %v594, 2
      %v891 = vsel %vm876, %v888, %v890
      %v892 = vrot.slane %v595, 2
      %v893 = vrot.slane %v596, 2
      %v894 = vsel %vm876, %v892, %v893
      %v895 = vrot.slane %v597, 2
      %v896 = vsel %vm876, %v893, %v895
      %v897 = vrot.slane %v598, 2
      %v898 = vrot.slane %v599, 2
      %v899 = vsel %vm876, %v897, %v898
      %v900 = vrot.slane %v600, 2
      %v901 = vsel %vm876, %v898, %v900
      %v902 = vrot.slane %v601, 2
      %v903 = vrot.slane %v602, 2
      %v904 = vsel %vm876, %v902, %v903
      %v905 = vrot.slane %v603, 2
      %v906 = vsel %vm876, %v903, %v905
      %v907 = vrot.slane %v604, 2
      %v908 = vrot.slane %v605, 2
      %v909 = vsel %vm876, %v907, %v908
      %v910 = vrot.slane %v606, 2
      %v911 = vsel %vm876, %v908, %v910
      %v912 = vrot.slane %v607, 2
      %v913 = vrot.slane %v608, 2
      %v914 = vsel %vm876, %v912, %v913
      %v915 = vrot.slane %v609, 2
      %v916 = vsel %vm876, %v913, %v915
      %v917 = vrot.slane %v610, 2
      %v918 = vrot.slane %v611, 2
      %v919 = vsel %vm876, %v917, %v918
      %v920 = vrot.slane %v612, 2
      %v921 = vsel %vm876, %v918, %v920
      %v922 = vrot.slane %v613, 2
      %v923 = vrot.slane %v614, 2
      %v924 = vsel %vm876, %v922, %v923
      %v925 = vrot.slane %v615, 2
      %v926 = vsel %vm876, %v923, %v925
      %v927 = vrot.slane %v616, 2
      %v928 = vrot.slane %v617, 2
      %v929 = vsel %vm876, %v927, %v928
      %v930 = vrot.slane %v618, 2
      %v931 = vsel %vm876, %v928, %v930
      %v932 = vrot.slane %v619, 2
      %v933 = vrot.slane %v620, 2
      %v934 = vsel %vm876, %v932, %v933
      %v935 = vrot.slane %v621, 2
      %v936 = vsel %vm876, %v933, %v935
      %v937 = vrot.slane %v622, 2
      %v938 = vrot.slane %v623, 2
      %v939 = vsel %vm876, %v937, %v938
      %v940 = vrot.slane %v624, 2
      %v941 = vsel %vm876, %v938, %v940
      %v942 = vrot.slane %v625, 2
      %v943 = vrot.slane %v626, 2
      %v944 = vsel %vm876, %v942, %v943
      %v945 = vrot.slane %v627, 2
      %v946 = vsel %vm876, %v943, %v945
      %v947 = vrot.slane %v628, 2
      %v948 = vrot.slane %v629, 2
      %v949 = vsel %vm876, %v947, %v948
      %v950 = vrot.slane %v630, 2
      %v951 = vsel %vm876, %v948, %v950
      %v952 = vrot.slane %v631, 2
      %v953 = vrot.slane %v632, 2
      %v954 = vsel %vm876, %v952, %v953
      %v955 = vrot.slane %v633, 2
      %v956 = vsel %vm876, %v953, %v955
      %v957 = vrot.slane %v634, 2
      %v958 = vrot.slane %v635, 2
      %v959 = vsel %vm876, %v957, %v958
      %v960 = vrot.slane %v636, 2
      %v961 = vsel %vm876, %v958, %v960
      %v1013 = vadd.f32 %v825, %v879
      %v1014 = vadd.f32 %v826, %v881
      %v1015 = vadd.f32 %v827, %v880
      %v1016 = vadd.f32 %v828, %v884
      %v1017 = vadd.f32 %v829, %v886
      %v1018 = vadd.f32 %v830, %v885
      %v1019 = vadd.f32 %v831, %v889
      %v1020 = vadd.f32 %v832, %v891
      %v1021 = vadd.f32 %v833, %v890
      %v1022 = vadd.f32 %v834, %v894
      %v1023 = vadd.f32 %v835, %v896
      %v1024 = vadd.f32 %v836, %v895
      %v1025 = vadd.f32 %v837, %v899
      %v1026 = vadd.f32 %v838, %v901
      %v1027 = vadd.f32 %v839, %v900
      %v1028 = vadd.f32 %v840, %v904
      %v1029 = vadd.f32 %v841, %v906
      %v1030 = vadd.f32 %v842, %v905
      %v1031 = vadd.f32 %v843, %v909
      %v1032 = vadd.f32 %v844, %v911
      %v1033 = vadd.f32 %v845, %v910
      %v1034 = vadd.f32 %v846, %v914
      %v1035 = vadd.f32 %v847, %v916
      %v1036 = vadd.f32 %v848, %v915
      %v1037 = vadd.f32 %v849, %v919
      %v1038 = vadd.f32 %v850, %v921
      %v1039 = vadd.f32 %v851, %v920
      %v1040 = vadd.f32 %v852, %v924
      %v1041 = vadd.f32 %v853, %v926
      %v1042 = vadd.f32 %v854, %v925
      %v1043 = vadd.f32 %v855, %v929
      %v1044 = vadd.f32 %v856, %v931
      %v1045 = vadd.f32 %v857, %v930
      %v1046 = vadd.f32 %v858, %v934
      %v1047 = vadd.f32 %v859, %v936
      %v1048 = vadd.f32 %v860, %v935
      %v1049 = vadd.f32 %v861, %v939
      %v1050 = vadd.f32 %v862, %v941
      %v1051 = vadd.f32 %v863, %v940
      %v1052 = vadd.f32 %v864, %v944
      %v1053 = vadd.f32 %v865, %v946
      %v1054 = vadd.f32 %v866, %v945
      %v1055 = vadd.f32 %v867, %v949
      %v1056 = vadd.f32 %v868, %v951
      %v1057 = vadd.f32 %v869, %v950
      %v1058 = vadd.f32 %v870, %v954
      %v1059 = vadd.f32 %v871, %v956
      %v1060 = vadd.f32 %v872, %v955
      %v1061 = vadd.f32 %v873, %v959
      %v1062 = vadd.f32 %v874, %v961
      %v1063 = vadd.f32 %v875, %v960
      %vm1115 = vcmask 1044480
      %v1116 = vrot.slane %v535, 3
      %v1117 = vrot.slane %v536, 3
      %v1118 = vsel %vm1115, %v1116, %v1117
      %v1119 = vrot.slane %v537, 3
      %v1120 = vsel %vm1115, %v1117, %v1119
      %v1121 = vrot.slane %v538, 3
      %v1122 = vrot.slane %v539, 3
      %v1123 = vsel %vm1115, %v1121, %v1122
      %v1124 = vrot.slane %v540, 3
      %v1125 = vsel %vm1115, %v1122, %v1124
      %v1126 = vrot.slane %v541, 3
      %v1127 = vrot.slane %v542, 3
      %v1128 = vsel %vm1115, %v1126, %v1127
      %v1129 = vrot.slane %v543, 3
      %v1130 = vsel %vm1115, %v1127, %v1129
      %v1131 = vrot.slane %v544, 3
      %v1132 = vrot.slane %v545, 3
      %v1133 = vsel %vm1115, %v1131, %v1132
      %v1134 = vrot.slane %v546, 3
      %v1135 = vsel %vm1115, %v1132, %v1134
      %v1136 = vrot.slane %v547, 3
      %v1137 = vrot.slane %v548, 3
      %v1138 = vsel %vm1115, %v1136, %v1137
      %v1139 = vrot.slane %v549, 3
      %v1140 = vsel %vm1115, %v1137, %v1139
      %v1141 = vrot.slane %v550, 3
      %v1142 = vrot.slane %v551, 3
      %v1143 = vsel %vm1115, %v1141, %v1142
      %v1144 = vrot.slane %v552, 3
      %v1145 = vsel %vm1115, %v1142, %v1144
      %v1146 = vrot.slane %v553, 3
      %v1147 = vrot.slane %v554, 3
      %v1148 = vsel %vm1115, %v1146, %v1147
      %v1149 = vrot.slane %v555, 3
      %v1150 = vsel %vm1115, %v1147, %v1149
      %v1151 = vrot.slane %v556, 3
      %v1152 = vrot.slane %v557, 3
      %v1153 = vsel %vm1115, %v1151, %v1152
      %v1154 = vrot.slane %v558, 3
      %v1155 = vsel %vm1115, %v1152, %v1154
      %v1156 = vrot.slane %v559, 3
      %v1157 = vrot.slane %v560, 3
      %v1158 = vsel %vm1115, %v1156, %v1157
      %v1159 = vrot.slane %v561, 3
      %v1160 = vsel %vm1115, %v1157, %v1159
      %v1161 = vrot.slane %v562, 3
      %v1162 = vrot.slane %v563, 3
      %v1163 = vsel %vm1115, %v1161, %v1162
      %v1164 = vrot.slane %v564, 3
      %v1165 = vsel %vm1115, %v1162, %v1164
      %v1166 = vrot.slane %v565, 3
      %v1167 = vrot.slane %v566, 3
      %v1168 = vsel %vm1115, %v1166, %v1167
      %v1169 = vrot.slane %v567, 3
      %v1170 = vsel %vm1115, %v1167, %v1169
      %v1171 = vrot.slane %v568, 3
      %v1172 = vrot.slane %v569, 3
      %v1173 = vsel %vm1115, %v1171, %v1172
      %v1174 = vrot.slane %v570, 3
      %v1175 = vsel %vm1115, %v1172, %v1174
      %v1176 = vrot.slane %v571, 3
      %v1177 = vrot.slane %v572, 3
      %v1178 = vsel %vm1115, %v1176, %v1177
      %v1179 = vrot.slane %v573, 3
      %v1180 = vsel %vm1115, %v1177, %v1179
      %v1181 = vrot.slane %v574, 3
      %v1182 = vrot.slane %v575, 3
      %v1183 = vsel %vm1115, %v1181, %v1182
      %v1184 = vrot.slane %v576, 3
      %v1185 = vsel %vm1115, %v1182, %v1184
      %v1186 = vrot.slane %v577, 3
      %v1187 = vrot.slane %v578, 3
      %v1188 = vsel %vm1115, %v1186, %v1187
      %v1189 = vrot.slane %v579, 3
      %v1190 = vsel %vm1115, %v1187, %v1189
      %v1191 = vrot.slane %v580, 3
      %v1192 = vrot.slane %v581, 3
      %v1193 = vsel %vm1115, %v1191, %v1192
      %v1194 = vrot.slane %v582, 3
      %v1195 = vsel %vm1115, %v1192, %v1194
      %v1196 = vrot.slane %v583, 3
      %v1197 = vrot.slane %v584, 3
      %v1198 = vsel %vm1115, %v1196, %v1197
      %v1199 = vrot.slane %v585, 3
      %v1200 = vsel %vm1115, %v1197, %v1199
      %v1252 = vadd.f32 %v1013, %v1118
      %v1253 = vadd.f32 %v1014, %v1120
      %v1254 = vadd.f32 %v1015, %v1119
      %v1255 = vadd.f32 %v1016, %v1123
      %v1256 = vadd.f32 %v1017, %v1125
      %v1257 = vadd.f32 %v1018, %v1124
      %v1258 = vadd.f32 %v1019, %v1128
      %v1259 = vadd.f32 %v1020, %v1130
      %v1260 = vadd.f32 %v1021, %v1129
      %v1261 = vadd.f32 %v1022, %v1133
      %v1262 = vadd.f32 %v1023, %v1135
      %v1263 = vadd.f32 %v1024, %v1134
      %v1264 = vadd.f32 %v1025, %v1138
      %v1265 = vadd.f32 %v1026, %v1140
      %v1266 = vadd.f32 %v1027, %v1139
      %v1267 = vadd.f32 %v1028, %v1143
      %v1268 = vadd.f32 %v1029, %v1145
      %v1269 = vadd.f32 %v1030, %v1144
      %v1270 = vadd.f32 %v1031, %v1148
      %v1271 = vadd.f32 %v1032, %v1150
      %v1272 = vadd.f32 %v1033, %v1149
      %v1273 = vadd.f32 %v1034, %v1153
      %v1274 = vadd.f32 %v1035, %v1155
      %v1275 = vadd.f32 %v1036, %v1154
      %v1276 = vadd.f32 %v1037, %v1158
      %v1277 = vadd.f32 %v1038, %v1160
      %v1278 = vadd.f32 %v1039, %v1159
      %v1279 = vadd.f32 %v1040, %v1163
      %v1280 = vadd.f32 %v1041, %v1165
      %v1281 = vadd.f32 %v1042, %v1164
      %v1282 = vadd.f32 %v1043, %v1168
      %v1283 = vadd.f32 %v1044, %v1170
      %v1284 = vadd.f32 %v1045, %v1169
      %v1285 = vadd.f32 %v1046, %v1173
      %v1286 = vadd.f32 %v1047, %v1175
      %v1287 = vadd.f32 %v1048, %v1174
      %v1288 = vadd.f32 %v1049, %v1178
      %v1289 = vadd.f32 %v1050, %v1180
      %v1290 = vadd.f32 %v1051, %v1179
      %v1291 = vadd.f32 %v1052, %v1183
      %v1292 = vadd.f32 %v1053, %v1185
      %v1293 = vadd.f32 %v1054, %v1184
      %v1294 = vadd.f32 %v1055, %v1188
      %v1295 = vadd.f32 %v1056, %v1190
      %v1296 = vadd.f32 %v1057, %v1189
      %v1297 = vadd.f32 %v1058, %v1193
      %v1298 = vadd.f32 %v1059, %v1195
      %v1299 = vadd.f32 %v1060, %v1194
      %v1300 = vadd.f32 %v1061, %v1198
      %v1301 = vadd.f32 %v1062, %v1200
      %v1302 = vadd.f32 %v1063, %v1199
      %v1303 = vpack.c.bf16 %v1253, %v1252
      %v1304 = vpack.c.bf16 %v1254, %v1254
      %v1305 = vpack.c.bf16 %v1256, %v1255
      %v1306 = vpack.c.bf16 %v1257, %v1257
      %v1307 = vpack.c.bf16 %v1259, %v1258
      %v1308 = vpack.c.bf16 %v1260, %v1260
      %v1309 = vpack.c.bf16 %v1262, %v1261
      %v1310 = vpack.c.bf16 %v1263, %v1263
      %v1311 = vpack.c.bf16 %v1265, %v1264
      %v1312 = vpack.c.bf16 %v1266, %v1266
      %v1313 = vpack.c.bf16 %v1268, %v1267
      %v1314 = vpack.c.bf16 %v1269, %v1269
      %v1315 = vpack.c.bf16 %v1271, %v1270
      %v1316 = vpack.c.bf16 %v1272, %v1272
      %v1317 = vpack.c.bf16 %v1274, %v1273
      %v1318 = vpack.c.bf16 %v1275, %v1275
      %v1319 = vpack.c.bf16 %v1277, %v1276
      %v1320 = vpack.c.bf16 %v1278, %v1278
      %v1321 = vpack.c.bf16 %v1280, %v1279
      %v1322 = vpack.c.bf16 %v1281, %v1281
      %v1323 = vpack.c.bf16 %v1283, %v1282
      %v1324 = vpack.c.bf16 %v1284, %v1284
      %v1325 = vpack.c.bf16 %v1286, %v1285
      %v1326 = vpack.c.bf16 %v1287, %v1287
      %v1327 = vpack.c.bf16 %v1289, %v1288
      %v1328 = vpack.c.bf16 %v1290, %v1290
      %v1329 = vpack.c.bf16 %v1292, %v1291
      %v1330 = vpack.c.bf16 %v1293, %v1293
      %v1331 = vpack.c.bf16 %v1295, %v1294
      %v1332 = vpack.c.bf16 %v1296, %v1296
      %v1333 = vpack.c.bf16 %v1298, %v1297
      %v1334 = vpack.c.bf16 %v1299, %v1299
      %v1335 = vpack.c.bf16 %v1301, %v1300
      %v1336 = vpack.c.bf16 %v1302, %v1302
      %v1371 = vunpack.c.l.b16 %v1303
      %v1372 = vunpack.c.h.b16 %v1303
      %v1373 = vunpack.c.l.b16 %v1304
      %v1374 = vunpack.c.l.b16 %v1305
      %v1375 = vunpack.c.h.b16 %v1305
      %v1376 = vunpack.c.l.b16 %v1306
      %v1377 = vunpack.c.l.b16 %v1307
      %v1378 = vunpack.c.h.b16 %v1307
      %v1379 = vunpack.c.l.b16 %v1308
      %v1380 = vunpack.c.l.b16 %v1309
      %v1381 = vunpack.c.h.b16 %v1309
      %v1382 = vunpack.c.l.b16 %v1310
      %v1383 = vunpack.c.l.b16 %v1311
      %v1384 = vunpack.c.h.b16 %v1311
      %v1385 = vunpack.c.l.b16 %v1312
      %v1386 = vunpack.c.l.b16 %v1313
      %v1387 = vunpack.c.h.b16 %v1313
      %v1388 = vunpack.c.l.b16 %v1314
      %v1389 = vunpack.c.l.b16 %v1315
      %v1390 = vunpack.c.h.b16 %v1315
      %v1391 = vunpack.c.l.b16 %v1316
      %v1392 = vunpack.c.l.b16 %v1317
      %v1393 = vunpack.c.h.b16 %v1317
      %v1394 = vunpack.c.l.b16 %v1318
      %v1395 = vunpack.c.l.b16 %v1319
      %v1396 = vunpack.c.h.b16 %v1319
      %v1397 = vunpack.c.l.b16 %v1320
      %v1398 = vunpack.c.l.b16 %v1321
      %v1399 = vunpack.c.h.b16 %v1321
      %v1400 = vunpack.c.l.b16 %v1322
      %v1401 = vunpack.c.l.b16 %v1323
      %v1402 = vunpack.c.h.b16 %v1323
      %v1403 = vunpack.c.l.b16 %v1324
      %v1404 = vunpack.c.l.b16 %v1325
      %v1405 = vunpack.c.h.b16 %v1325
      %v1406 = vunpack.c.l.b16 %v1326
      %v1407 = vunpack.c.l.b16 %v1327
      %v1408 = vunpack.c.h.b16 %v1327
      %v1409 = vunpack.c.l.b16 %v1328
      %v1410 = vunpack.c.l.b16 %v1329
      %v1411 = vunpack.c.h.b16 %v1329
      %v1412 = vunpack.c.l.b16 %v1330
      %v1413 = vunpack.c.l.b16 %v1331
      %v1414 = vunpack.c.h.b16 %v1331
      %v1415 = vunpack.c.l.b16 %v1332
      %v1416 = vunpack.c.l.b16 %v1333
      %v1417 = vunpack.c.h.b16 %v1333
      %v1418 = vunpack.c.l.b16 %v1334
      %v1419 = vunpack.c.l.b16 %v1335
      %v1420 = vunpack.c.h.b16 %v1335
      %v1421 = vunpack.c.l.b16 %v1336
      %v1422 = vpack.c.b16 %v1371, %v1371
      %v1423 = vpack.c.b16 %v1372, %v1372
      %v1424 = vpack.c.b16 %v1373, %v1373
      %v1425 = vpack.c.b16 %v1374, %v1374
      %v1426 = vpack.c.b16 %v1375, %v1375
      %v1427 = vpack.c.b16 %v1376, %v1376
      %v1428 = vpack.c.b16 %v1377, %v1377
      %v1429 = vpack.c.b16 %v1378, %v1378
      %v1430 = vpack.c.b16 %v1379, %v1379
      %v1431 = vpack.c.b16 %v1380, %v1380
      %v1432 = vpack.c.b16 %v1381, %v1381
      %v1433 = vpack.c.b16 %v1382, %v1382
      %v1434 = vpack.c.b16 %v1383, %v1383
      %v1435 = vpack.c.b16 %v1384, %v1384
      %v1436 = vpack.c.b16 %v1385, %v1385
      %v1437 = vpack.c.b16 %v1386, %v1386
      %v1438 = vpack.c.b16 %v1387, %v1387
      %v1439 = vpack.c.b16 %v1388, %v1388
      %v1440 = vpack.c.b16 %v1389, %v1389
      %v1441 = vpack.c.b16 %v1390, %v1390
      %v1442 = vpack.c.b16 %v1391, %v1391
      %v1443 = vpack.c.b16 %v1392, %v1392
      %v1444 = vpack.c.b16 %v1393, %v1393
      %v1445 = vpack.c.b16 %v1394, %v1394
      %v1446 = vpack.c.b16 %v1395, %v1395
      %v1447 = vpack.c.b16 %v1396, %v1396
      %v1448 = vpack.c.b16 %v1397, %v1397
      %v1449 = vpack.c.b16 %v1398, %v1398
      %v1450 = vpack.c.b16 %v1399, %v1399
      %v1451 = vpack.c.b16 %v1400, %v1400
      %v1452 = vpack.c.b16 %v1401, %v1401
      %v1453 = vpack.c.b16 %v1402, %v1402
      %v1454 = vpack.c.b16 %v1403, %v1403
      %v1455 = vpack.c.b16 %v1404, %v1404
      %v1456 = vpack.c.b16 %v1405, %v1405
      %v1457 = vpack.c.b16 %v1406, %v1406
      %v1458 = vpack.c.b16 %v1407, %v1407
      %v1459 = vpack.c.b16 %v1408, %v1408
      %v1460 = vpack.c.b16 %v1409, %v1409
      %v1461 = vpack.c.b16 %v1410, %v1410
      %v1462 = vpack.c.b16 %v1411, %v1411
      %v1463 = vpack.c.b16 %v1412, %v1412
      %v1464 = vpack.c.b16 %v1413, %v1413
      %v1465 = vpack.c.b16 %v1414, %v1414
      %v1466 = vpack.c.b16 %v1415, %v1415
      %v1467 = vpack.c.b16 %v1416, %v1416
      %v1468 = vpack.c.b16 %v1417, %v1417
      %v1469 = vpack.c.b16 %v1418, %v1418
      %v1470 = vpack.c.b16 %v1419, %v1419
      %v1471 = vpack.c.b16 %v1420, %v1420
      %v1472 = vpack.c.b16 %v1421, %v1421
      %vm1524 = vcmask 27648
      %1525 = vst.msk [vmem:[%s147] sm:$0xf] %vm1524, %v1422
      %1526 = vst.msk [vmem:[%s147 + $0x4] sm:$0xf] %vm1524, %v1423
      %vm1527 = vcmask 24576
      %vm1528 = vsmask.f32 256
      %vm1529 = vmand %vm1527, %vm1528
      %v1530 = vld [vmem:[%s147 + $0x8] sm:$0x1]
      %v1531 = vsel %vm1529, %v1424, %v1530
      %1532 = vst [vmem:[%s147 + $0x8] sm:$0x1] %v1531
      %1533 = vst.msk [vmem:[%s147 + $0xc] sm:$0xf] %vm1524, %v1425
      %1534 = vst.msk [vmem:[%s147 + $0x10] sm:$0xf] %vm1524, %v1426
      %v1535 = vld [vmem:[%s147 + $0x14] sm:$0x1]
      %v1536 = vsel %vm1529, %v1427, %v1535
      %1537 = vst [vmem:[%s147 + $0x14] sm:$0x1] %v1536
      %1538 = vst.msk [vmem:[%s147 + $0x18] sm:$0xf] %vm1524, %v1428
      %1539 = vst.msk [vmem:[%s147 + $0x1c] sm:$0xf] %vm1524, %v1429
      %v1540 = vld [vmem:[%s147 + $0x20] sm:$0x1]
      %v1541 = vsel %vm1529, %v1430, %v1540
      %1542 = vst [vmem:[%s147 + $0x20] sm:$0x1] %v1541
      %1543 = vst.msk [vmem:[%s147 + $0x24] sm:$0xf] %vm1524, %v1431
      %1544 = vst.msk [vmem:[%s147 + $0x28] sm:$0xf] %vm1524, %v1432
      %v1545 = vld [vmem:[%s147 + $0x2c] sm:$0x1]
      %v1546 = vsel %vm1529, %v1433, %v1545
      %1547 = vst [vmem:[%s147 + $0x2c] sm:$0x1] %v1546
      %1548 = vst.msk [vmem:[%s147 + $0x30] sm:$0xf] %vm1524, %v1434
      %1549 = vst.msk [vmem:[%s147 + $0x34] sm:$0xf] %vm1524, %v1435
      %v1550 = vld [vmem:[%s147 + $0x38] sm:$0x1]
      %v1551 = vsel %vm1529, %v1436, %v1550
      %1552 = vst [vmem:[%s147 + $0x38] sm:$0x1] %v1551
      %1553 = vst.msk [vmem:[%s147 + $0x3c] sm:$0xf] %vm1524, %v1437
      %1554 = vst.msk [vmem:[%s147 + $0x40] sm:$0xf] %vm1524, %v1438
      %v1555 = vld [vmem:[%s147 + $0x44] sm:$0x1]
      %v1556 = vsel %vm1529, %v1439, %v1555
      %1557 = vst [vmem:[%s147 + $0x44] sm:$0x1] %v1556
      %1558 = vst.msk [vmem:[%s147 + $0x48] sm:$0xf] %vm1524, %v1440
      %1559 = vst.msk [vmem:[%s147 + $0x4c] sm:$0xf] %vm1524, %v1441
      %v1560 = vld [vmem:[%s147 + $0x50] sm:$0x1]
      %v1561 = vsel %vm1529, %v1442, %v1560
      %1562 = vst [vmem:[%s147 + $0x50] sm:$0x1] %v1561
      %1563 = vst.msk [vmem:[%s147 + $0x54] sm:$0xf] %vm1524, %v1443
      %1564 = vst.msk [vmem:[%s147 + $0x58] sm:$0xf] %vm1524, %v1444
      %v1565 = vld [vmem:[%s147 + $0x5c] sm:$0x1]
      %v1566 = vsel %vm1529, %v1445, %v1565
      %1567 = vst [vmem:[%s147 + $0x5c] sm:$0x1] %v1566
      %1568 = vst.msk [vmem:[%s147 + $0x60] sm:$0xf] %vm1524, %v1446
      %1569 = vst.msk [vmem:[%s147 + $0x64] sm:$0xf] %vm1524, %v1447
      %v1570 = vld [vmem:[%s147 + $0x68] sm:$0x1]
      %v1571 = vsel %vm1529, %v1448, %v1570
      %1572 = vst [vmem:[%s147 + $0x68] sm:$0x1] %v1571
      %1573 = vst.msk [vmem:[%s147 + $0x6c] sm:$0xf] %vm1524, %v1449
      %1574 = vst.msk [vmem:[%s147 + $0x70] sm:$0xf] %vm1524, %v1450
      %v1575 = vld [vmem:[%s147 + $0x74] sm:$0x1]
      %v1576 = vsel %vm1529, %v1451, %v1575
      %1577 = vst [vmem:[%s147 + $0x74] sm:$0x1] %v1576
      %1578 = vst.msk [vmem:[%s147 + $0x78] sm:$0xf] %vm1524, %v1452
      %1579 = vst.msk [vmem:[%s147 + $0x7c] sm:$0xf] %vm1524, %v1453
      %v1580 = vld [vmem:[%s147 + $0x80] sm:$0x1]
      %v1581 = vsel %vm1529, %v1454, %v1580
      %1582 = vst [vmem:[%s147 + $0x80] sm:$0x1] %v1581
      %1583 = vst.msk [vmem:[%s147 + $0x84] sm:$0xf] %vm1524, %v1455
      %1584 = vst.msk [vmem:[%s147 + $0x88] sm:$0xf] %vm1524, %v1456
      %v1585 = vld [vmem:[%s147 + $0x8c] sm:$0x1]
      %v1586 = vsel %vm1529, %v1457, %v1585
      %1587 = vst [vmem:[%s147 + $0x8c] sm:$0x1] %v1586
      %1588 = vst.msk [vmem:[%s147 + $0x90] sm:$0xf] %vm1524, %v1458
      %1589 = vst.msk [vmem:[%s147 + $0x94] sm:$0xf] %vm1524, %v1459
      %v1590 = vld [vmem:[%s147 + $0x98] sm:$0x1]
      %v1591 = vsel %vm1529, %v1460, %v1590
      %1592 = vst [vmem:[%s147 + $0x98] sm:$0x1] %v1591
      %1593 = vst.msk [vmem:[%s147 + $0x9c] sm:$0xf] %vm1524, %v1461
      %1594 = vst.msk [vmem:[%s147 + $0xa0] sm:$0xf] %vm1524, %v1462
      %v1595 = vld [vmem:[%s147 + $0xa4] sm:$0x1]
      %v1596 = vsel %vm1529, %v1463, %v1595
      %1597 = vst [vmem:[%s147 + $0xa4] sm:$0x1] %v1596
      %1598 = vst.msk [vmem:[%s147 + $0xa8] sm:$0xf] %vm1524, %v1464
      %1599 = vst.msk [vmem:[%s147 + $0xac] sm:$0xf] %vm1524, %v1465
      %v1600 = vld [vmem:[%s147 + $0xb0] sm:$0x1]
      %v1601 = vsel %vm1529, %v1466, %v1600
      %1602 = vst [vmem:[%s147 + $0xb0] sm:$0x1] %v1601
      %1603 = vst.msk [vmem:[%s147 + $0xb4] sm:$0xf] %vm1524, %v1467
      %1604 = vst.msk [vmem:[%s147 + $0xb8] sm:$0xf] %vm1524, %v1468
      %v1605 = vld [vmem:[%s147 + $0xbc] sm:$0x1]
      %v1606 = vsel %vm1529, %v1469, %v1605
      %1607 = vst [vmem:[%s147 + $0xbc] sm:$0x1] %v1606
      %1608 = vst.msk [vmem:[%s147 + $0xc0] sm:$0xf] %vm1524, %v1470
      %1609 = vst.msk [vmem:[%s147 + $0xc4] sm:$0xf] %vm1524, %v1471
      %v1610 = vld [vmem:[%s147 + $0xc8] sm:$0x1]
      %v1611 = vsel %vm1529, %v1472, %v1610
      %1612 = vst [vmem:[%s147 + $0xc8] sm:$0x1] %v1611
      %p1613 = scmp.lt.s32.totalorder %s16, 1
      %s1614 = scalar_select %p1613, %s16, 1
      %p1615 = scmp.lt.s32.totalorder %s17, 0
      %s1616 = scalar_select %p1615, %s17, 0
      %s1617 = smul.addr %s1614, 51
      %s1618 = sadd.s32 %s1616, %s1617
      %s1619 = smul.addr %s1618, 4
      %s1620 = scalar_lea.vmem %s1, %s1619
      // Predicated region
      $region25: #{style_block_forward.5} parent=23 // pred_check
        %p1621 = pneg %p72
      $region26: #{style_block_forward.5} parent=23 // pred_check_branch
        %1623 = sbr.rel (%p1621) target = $region28
      $region27: #{style_block_forward.5} parent=23 // pred_region
        _
      $region28: #{style_block_forward.5} parent=23 // pred_fallthru
        _
    $region24: #{style_block_forward.5} parent=5 // pred_fallthru
      _
    %p1624 = scmp.le.s32.totalorder 2, %s7
    // Predicated region
    $region29: #{style_block_forward.5} parent=5 // pred_check
      %p1625 = pneg %p1624
    $region30: #{style_block_forward.5} parent=5 // pred_check_branch
      %1627 = sbr.rel (%p1625) target = $region32
    $region31: #{style_block_forward.5} parent=5 // pred_region
      %s1628 = ssub.s32 %s7, 2
      // Predicated region
      $region33: #{style_block_forward.5} parent=31 // pred_check
        %p1629 = pneg %p78
      $region34: #{style_block_forward.5} parent=31 // pred_check_branch
        %1631 = sbr.rel (%p1629) target = $region36
      $region35: #{style_block_forward.5} parent=31 // pred_region
        %p1632 = scmp.lt.s32.totalorder %s18, 1
        %s1633 = scalar_select %p1632, %s18, 1
        %p1634 = scmp.lt.s32.totalorder %s19, 0
        %s1635 = scalar_select %p1634, %s19, 0
        %s1636 = smul.addr %s1633, 51
        %s1637 = sadd.s32 %s1635, %s1636
        %s1638 = smul.addr %s1637, 4
        %s1639 = scalar_lea.vmem %s1, %s1638
      $region36: #{style_block_forward.5} parent=31 // pred_fallthru
        _
    $region32: #{style_block_forward.5} parent=5 // pred_fallthru
      _
  $region6: #{style_block_forward.5} parent=0 // loop_footer
    %s11 = sadd.s32 1, %s7
  $region7: #{style_block_forward.5} parent=0 // loop_footer_branch
    %6 = sbr.rel target = $region3
  $region8: #{style_block_forward.5} parent=0 // loop_exit
    _

// kernel: style_block_forward.6
$region0: #{style_block_forward.6}
  #allocation0 [shape = 'u32[]', space=smem, size = 0x4, offset = 0x4, fixed_abs, tag = 'smem constant byte address 0x4 - core index']
  #allocation1 [shape = 'u32[144,128]{1,0:T(1,128)}', space=vmem, size = 0x12000, scoped, tag = 'internal scratch']
  %s0 = inlined_call_operand.vmem [shape: bf16[2,18,18,4], index: 0, kind: input, shape index: {}]
  %s1 = inlined_call_operand.vmem [shape: bf16[2,15,15,4], index: 1, kind: output, shape index: {}]
  %s2 = sld [smem:[#allocation0]]
  $region37: #{style_block_forward.6} parent=0
    _
  %s4 = ssub.s32 1, %s2
  %s5 = scalar_select 0, %s4, %s2
  loop: start=0, step=1, limit=4
  $region2: #{style_block_forward.6} parent=0 // loop_pre_header
    _
  $region3: #{style_block_forward.6} parent=0 // loop_header
    %s7 = sphi 0, %s11
    %p8 = scmp.ge.s32.totalorder %s7, 4
    %s14 = sphi 0, %s26
    %s15 = sphi 0, %s22
    %s16 = sphi 0, %s14
    %s17 = sphi 0, %s15
    %s18 = sphi 0, %s16
    %s19 = sphi 0, %s17
    %s31 = sphi 0, %s33
    %s34 = sphi 0, %s31
    %s35 = sphi 0, %s34
    %s51 = sphi 0, %s35
    %s59 = sphi 0, %s61
    %s62 = sphi 0, %s59
    %s63 = sphi 0, %s62
    %s79 = sphi 0, %s63
  $region4: #{style_block_forward.6} parent=0 // loop_header_branch
    %10 = sbr.rel (%p8) target = $region8
  $region5: #{style_block_forward.6} parent=0 // loop_body
    %s12 = ssub.s32 %s7, 1
    %s13 = ssub.s32 %s7, 2
    %s20 = sadd.s32 1, %s15
    %p21 = scmp.ge.s32.totalorder %s20, 1
    %s22 = scalar_select %p21, 0, %s20
    %s23 = sadd.s32 1, %s14
    %s24 = scalar_select %p21, %s23, %s14
    %p25 = scmp.ge.s32.totalorder %s24, 2
    %s26 = scalar_select %p25, 0, %s24
    %s27 = ssub.s32 %s14, %s26
    %s28 = ssub.s32 %s15, %s22
    %s29 = sor.u32 %s27, %s28
    %p30 = scmp.eq.s32.totalorder %s29, 0
    %s32 = sadd.s32 %s31, 1
    %s33 = scalar_select %p30, %s31, %s32
    %p36 = pneg %p30
    %p37 = scmp.eq.s32.totalorder %s7, 1
    %p38 = por %p36, %p37
    %p39 = scmp.ne.s32.totalorder %s31, %s34
    %p40 = scmp.eq.s32.totalorder %s7, 0
    %p41 = por %p39, %p40
    %p42 = scmp.ne.s32.totalorder %s31, %s34
    %p43 = scmp.eq.s32.totalorder %s12, 1
    %p44 = por %p42, %p43
    %p45 = scmp.ne.s32.totalorder %s34, %s35
    %p46 = scmp.eq.s32.totalorder %s12, 0
    %p47 = por %p45, %p46
    %p48 = scmp.ne.s32.totalorder %s34, %s35
    %p49 = scmp.eq.s32.totalorder %s13, 1
    %p50 = por %p48, %p49
    %p52 = scmp.ne.s32.totalorder %s35, %s51
    %p53 = scmp.eq.s32.totalorder %s13, 0
    %p54 = por %p52, %p53
    %s55 = ssub.s32 %s14, %s26
    %s56 = ssub.s32 %s15, %s22
    %s57 = sor.u32 %s55, %s56
    %p58 = scmp.eq.s32.totalorder %s57, 0
    %s60 = sadd.s32 %s59, 1
    %s61 = scalar_select %p58, %s59, %s60
    %p64 = pneg %p58
    %p65 = scmp.eq.s32.totalorder %s7, 1
    %p66 = por %p64, %p65
    %p67 = scmp.ne.s32.totalorder %s59, %s62
    %p68 = scmp.eq.s32.totalorder %s7, 0
    %p69 = por %p67, %p68
    %p70 = scmp.ne.s32.totalorder %s59, %s62
    %p71 = scmp.eq.s32.totalorder %s12, 1
    %p72 = por %p70, %p71
    %p73 = scmp.ne.s32.totalorder %s62, %s63
    %p74 = scmp.eq.s32.totalorder %s12, 0
    %p75 = por %p73, %p74
    %p76 = scmp.ne.s32.totalorder %s62, %s63
    %p77 = scmp.eq.s32.totalorder %s13, 1
    %p78 = por %p76, %p77
    %p80 = scmp.ne.s32.totalorder %s63, %s79
    %p81 = scmp.eq.s32.totalorder %s13, 0
    %p82 = por %p80, %p81
    %p83 = scmp.le.s32.totalorder 1, %s7
    %p84 = scmp.lt.s32.totalorder %s7, 3
    %p85 = pnand %p83, %p84
    %p86 = pneg %p85
    // Predicated region
    $region9: #{style_block_forward.6} parent=5 // pred_check
      _
    $region10: #{style_block_forward.6} parent=5 // pred_check_branch
      %88 = sbr.rel (%p85) target = $region12
    $region11: #{style_block_forward.6} parent=5 // pred_region
      %s89 = ssub.s32 %s7, 1
    $region12: #{style_block_forward.6} parent=5 // pred_fallthru
      _
    %p90 = scmp.lt.s32.totalorder %s7, 2
    // Predicated region
    $region13: #{style_block_forward.6} parent=5 // pred_check
      %p91 = pneg %p90
    $region14: #{style_block_forward.6} parent=5 // pred_check_branch
      %93 = sbr.rel (%p91) target = $region16
    $region15: #{style_block_forward.6} parent=5 // pred_region
      // Predicated region
      $region17: #{style_block_forward.6} parent=15 // pred_check
        %p94 = pneg %p41
      $region18: #{style_block_forward.6} parent=15 // pred_check_branch
        %96 = sbr.rel (%p94) target = $region20
      $region19: #{style_block_forward.6} parent=15 // pred_region
        %p97 = scmp.lt.s32.totalorder %s14, 1
        %s98 = scalar_select %p97, %s14, 1
        %p99 = scmp.lt.s32.totalorder %s15, 0
        %s100 = scalar_select %p99, %s15, 0
        %s101 = smul.addr %s98, 54
        %s102 = sadd.s32 %s100, %s101
        %s103 = smul.addr %s102, 4
        %s104 = scalar_lea.vmem %s0, %s103
      $region20: #{style_block_forward.6} parent=15 // pred_fallthru
        _
    $region16: #{style_block_forward.6} parent=5 // pred_fallthru
      _
    %p105 = scmp.le.s32.totalorder 1, %s7
    %p106 = scmp.lt.s32.totalorder %s7, 3
    %p107 = pnand %p105, %p106
    %p108 = pneg %p107
    // Predicated region
    $region21: #{style_block_forward.6} parent=5 // pred_check
      _
    $region22: #{style_block_forward.6} parent=5 // pred_check_branch
      %110 = sbr.rel (%p107) target = $region24
    $region23: #{style_block_forward.6} parent=5 // pred_region
      %s111 = ssub.s32 %s7, 1
      %p112 = scmp.lt.s32.totalorder %s16, 1
      %s113 = scalar_select %p112, %s16, 1
      %p114 = scmp.lt.s32.totalorder %s17, 0
      %s115 = scalar_select %p114, %s17, 0
      %s116 = smul.addr %s113, 54
      %s117 = sadd.s32 %s115, %s116
      %s118 = smul.addr %s117, 4
      %s119 = scalar_lea.vmem %s0, %s118
      %p120 = pneg %p47
      %p121 = pneg %p44
      %p122 = pneg %p75
      %p123 = pneg %p72
      %p124 = scmp.lt.s32.totalorder %s16, 1
      %s125 = scalar_select %p124, %s16, 1
      %p126 = scmp.lt.s32.totalorder %s17, 0
      %s127 = scalar_select %p126, %s17, 0
      %s128 = smul.addr %s125, 30
      %s129 = sadd.s32 %s127, %s128
      %s130 = smul.addr %s129, 4
      %s131 = scalar_lea.vmem %s1, %s130
      %p132 = scmp.lt.s32.totalorder %s16, 1
      %s133 = scalar_select %p132, %s16, 1
      %p134 = scmp.lt.s32.totalorder %s17, 0
      %s135 = scalar_select %p134, %s17, 0
      %s136 = smul.addr %s133, 54
      %s137 = sadd.s32 %s135, %s136
      %s138 = smul.addr %s137, 4
      %s139 = scalar_lea.vmem %s0, %s138
      %p140 = scmp.lt.s32.totalorder %s16, 1
      %s141 = scalar_select %p140, %s16, 1
      %p142 = scmp.lt.s32.totalorder %s17, 0
      %s143 = scalar_select %p142, %s17, 0
      %s144 = smul.addr %s141, 30
      %s145 = sadd.s32 %s143, %s144
      %s146 = smul.addr %s145, 4
      %s147 = scalar_lea.vmem %s1, %s146
      %v148 = vld [vmem:[%s139] sm:$0xf]
      %v149 = vld [vmem:[%s139 + $0x4] sm:$0xf]
      %v150 = vld [vmem:[%s139 + $0x8] sm:$0x1]
      %v151 = vld [vmem:[%s139 + $0xc] sm:$0xf]
      %v152 = vld [vmem:[%s139 + $0x10] sm:$0xf]
      %v153 = vld [vmem:[%s139 + $0x14] sm:$0x1]
      %v154 = vld [vmem:[%s139 + $0x18] sm:$0xf]
      %v155 = vld [vmem:[%s139 + $0x1c] sm:$0xf]
      %v156 = vld [vmem:[%s139 + $0x20] sm:$0x1]
      %v157 = vld [vmem:[%s139 + $0x24] sm:$0xf]
      %v158 = vld [vmem:[%s139 + $0x28] sm:$0xf]
      %v159 = vld [vmem:[%s139 + $0x2c] sm:$0x1]
      %v160 = vld [vmem:[%s139 + $0x30] sm:$0xf]
      %v161 = vld [vmem:[%s139 + $0x34] sm:$0xf]
      %v162 = vld [vmem:[%s139 + $0x38] sm:$0x1]
      %v163 = vld [vmem:[%s139 + $0x3c] sm:$0xf]
      %v164 = vld [vmem:[%s139 + $0x40] sm:$0xf]
      %v165 = vld [vmem:[%s139 + $0x44] sm:$0x1]
      %v166 = vld [vmem:[%s139 + $0x48] sm:$0xf]
      %v167 = vld [vmem:[%s139 + $0x4c] sm:$0xf]
      %v168 = vld [vmem:[%s139 + $0x50] sm:$0x1]
      %v169 = vld [vmem:[%s139 + $0x54] sm:$0xf]
      %v170 = vld [vmem:[%s139 + $0x58] sm:$0xf]
      %v171 = vld [vmem:[%s139 + $0x5c] sm:$0x1]
      %v172 = vld [vmem:[%s139 + $0x60] sm:$0xf]
      %v173 = vld [vmem:[%s139 + $0x64] sm:$0xf]
      %v174 = vld [vmem:[%s139 + $0x68] sm:$0x1]
      %v175 = vld [vmem:[%s139 + $0x6c] sm:$0xf]
      %v176 = vld [vmem:[%s139 + $0x70] sm:$0xf]
      %v177 = vld [vmem:[%s139 + $0x74] sm:$0x1]
      %v178 = vld [vmem:[%s139 + $0x78] sm:$0xf]
      %v179 = vld [vmem:[%s139 + $0x7c] sm:$0xf]
      %v180 = vld [vmem:[%s139 + $0x80] sm:$0x1]
      %v181 = vld [vmem:[%s139 + $0x84] sm:$0xf]
      %v182 = vld [vmem:[%s139 + $0x88] sm:$0xf]
      %v183 = vld [vmem:[%s139 + $0x8c] sm:$0x1]
      %v184 = vld [vmem:[%s139 + $0x90] sm:$0xf]
      %v185 = vld [vmem:[%s139 + $0x94] sm:$0xf]
      %v186 = vld [vmem:[%s139 + $0x98] sm:$0x1]
      %v187 = vld [vmem:[%s139 + $0x9c] sm:$0xf]
      %v188 = vld [vmem:[%s139 + $0xa0] sm:$0xf]
      %v189 = vld [vmem:[%s139 + $0xa4] sm:$0x1]
      %v190 = vld [vmem:[%s139 + $0xa8] sm:$0xf]
      %v191 = vld [vmem:[%s139 + $0xac] sm:$0xf]
      %v192 = vld [vmem:[%s139 + $0xb0] sm:$0x1]
      %v193 = vld [vmem:[%s139 + $0xb4] sm:$0xf]
      %v194 = vld [vmem:[%s139 + $0xb8] sm:$0xf]
      %v195 = vld [vmem:[%s139 + $0xbc] sm:$0x1]
      %v196 = vld [vmem:[%s139 + $0xc0] sm:$0xf]
      %v197 = vld [vmem:[%s139 + $0xc4] sm:$0xf]
      %v198 = vld [vmem:[%s139 + $0xc8] sm:$0x1]
      %v199 = vld [vmem:[%s139 + $0xcc] sm:$0xf]
      %v200 = vld [vmem:[%s139 + $0xd0] sm:$0xf]
      %v201 = vld [vmem:[%s139 + $0xd4] sm:$0x1]
      %v202 = vunpack.c.l.bf16 %v148
      %v203 = vunpack.c.l.bf16 %v149
      %v204 = vunpack.c.l.bf16 %v150
      %v205 = vunpack.c.l.bf16 %v151
      %v206 = vunpack.c.l.bf16 %v152
      %v207 = vunpack.c.l.bf16 %v153
      %v208 = vunpack.c.l.bf16 %v154
      %v209 = vunpack.c.l.bf16 %v155
      %v210 = vunpack.c.l.bf16 %v156
      %v211 = vunpack.c.l.bf16 %v157
      %v212 = vunpack.c.l.bf16 %v158
      %v213 = vunpack.c.l.bf16 %v159
      %v214 = vunpack.c.l.bf16 %v160
      %v215 = vunpack.c.l.bf16 %v161
      %v216 = vunpack.c.l.bf16 %v162
      %v217 = vunpack.c.l.bf16 %v163
      %v218 = vunpack.c.l.bf16 %v164
      %v219 = vunpack.c.l.bf16 %v165
      %v220 = vunpack.c.l.bf16 %v166
      %v221 = vunpack.c.l.bf16 %v167
      %v222 = vunpack.c.l.bf16 %v168
      %v223 = vunpack.c.l.bf16 %v169
      %v224 = vunpack.c.l.bf16 %v170
      %v225 = vunpack.c.l.bf16 %v171
      %v226 = vunpack.c.l.bf16 %v172
      %v227 = vunpack.c.l.bf16 %v173
      %v228 = vunpack.c.l.bf16 %v174
      %v229 = vunpack.c.l.bf16 %v175
      %v230 = vunpack.c.l.bf16 %v176
      %v231 = vunpack.c.l.bf16 %v177
      %v232 = vunpack.c.l.bf16 %v178
      %v233 = vunpack.c.l.bf16 %v179
      %v234 = vunpack.c.l.bf16 %v180
      %v235 = vunpack.c.l.bf16 %v181
      %v236 = vunpack.c.l.bf16 %v182
      %v237 = vunpack.c.l.bf16 %v183
      %v238 = vunpack.c.l.bf16 %v184
      %v239 = vunpack.c.l.bf16 %v185
      %v240 = vunpack.c.l.bf16 %v186
      %v241 = vunpack.c.l.bf16 %v187
      %v242 = vunpack.c.l.bf16 %v188
      %v243 = vunpack.c.l.bf16 %v189
      %v244 = vunpack.c.l.bf16 %v190
      %v245 = vunpack.c.l.bf16 %v191
      %v246 = vunpack.c.l.bf16 %v192
      %v247 = vunpack.c.l.bf16 %v193
      %v248 = vunpack.c.l.bf16 %v194
      %v249 = vunpack.c.l.bf16 %v195
      %v250 = vunpack.c.l.bf16 %v196
      %v251 = vunpack.c.l.bf16 %v197
      %v252 = vunpack.c.l.bf16 %v198
      %v253 = vunpack.c.l.bf16 %v199
      %v254 = vunpack.c.l.bf16 %v200
      %v255 = vunpack.c.l.bf16 %v201
      %v256 = vmul.f32 %v202, 0.125
      %v257 = vmul.f32 %v203, 0.125
      %v258 = vmul.f32 %v204, 0.125
      %v259 = vmul.f32 %v205, 0.125
      %v260 = vmul.f32 %v206, 0.125
      %v261 = vmul.f32 %v207, 0.125
      %v262 = vmul.f32 %v208, 0.125
      %v263 = vmul.f32 %v209, 0.125
      %v264 = vmul.f32 %v210, 0.125
      %v265 = vmul.f32 %v211, 0.125
      %v266 = vmul.f32 %v212, 0.125
      %v267 = vmul.f32 %v213, 0.125
      %v268 = vmul.f32 %v214, 0.125
      %v269 = vmul.f32 %v215, 0.125
      %v270 = vmul.f32 %v216, 0.125
      %v271 = vmul.f32 %v217, 0.125
      %v272 = vmul.f32 %v218, 0.125
      %v273 = vmul.f32 %v219, 0.125
      %v274 = vmul.f32 %v220, 0.125
      %v275 = vmul.f32 %v221, 0.125
      %v276 = vmul.f32 %v222, 0.125
      %v277 = vmul.f32 %v223, 0.125
      %v278 = vmul.f32 %v224, 0.125
      %v279 = vmul.f32 %v225, 0.125
      %v280 = vmul.f32 %v226, 0.125
      %v281 = vmul.f32 %v227, 0.125
      %v282 = vmul.f32 %v228, 0.125
      %v283 = vmul.f32 %v229, 0.125
      %v284 = vmul.f32 %v230, 0.125
      %v285 = vmul.f32 %v231, 0.125
      %v286 = vmul.f32 %v232, 0.125
      %v287 = vmul.f32 %v233, 0.125
      %v288 = vmul.f32 %v234, 0.125
      %v289 = vmul.f32 %v235, 0.125
      %v290 = vmul.f32 %v236, 0.125
      %v291 = vmul.f32 %v237, 0.125
      %v292 = vmul.f32 %v238, 0.125
      %v293 = vmul.f32 %v239, 0.125
      %v294 = vmul.f32 %v240, 0.125
      %v295 = vmul.f32 %v241, 0.125
      %v296 = vmul.f32 %v242, 0.125
      %v297 = vmul.f32 %v243, 0.125
      %v298 = vmul.f32 %v244, 0.125
      %v299 = vmul.f32 %v245, 0.125
      %v300 = vmul.f32 %v246, 0.125
      %v301 = vmul.f32 %v205, 0.375
      %v302 = vmul.f32 %v206, 0.375
      %v303 = vmul.f32 %v207, 0.375
      %v304 = vmul.f32 %v208, 0.375
      %v305 = vmul.f32 %v209, 0.375
      %v306 = vmul.f32 %v210, 0.375
      %v307 = vmul.f32 %v211, 0.375
      %v308 = vmul.f32 %v212, 0.375
      %v309 = vmul.f32 %v213, 0.375
      %v310 = vmul.f32 %v214, 0.375
      %v311 = vmul.f32 %v215, 0.375
      %v312 = vmul.f32 %v216, 0.375
      %v313 = vmul.f32 %v217, 0.375
      %v314 = vmul.f32 %v218, 0.375
      %v315 = vmul.f32 %v219, 0.375
      %v316 = vmul.f32 %v220, 0.375
      %v317 = vmul.f32 %v221, 0.375
      %v318 = vmul.f32 %v222, 0.375
      %v319 = vmul.f32 %v223, 0.375
      %v320 = vmul.f32 %v224, 0.375
      %v321 = vmul.f32 %v225, 0.375
      %v322 = vmul.f32 %v226, 0.375
      %v323 = vmul.f32 %v227, 0.375
      %v324 = vmul.f32 %v228, 0.375
      %v325 = vmul.f32 %v229, 0.375
      %v326 = vmul.f32 %v230, 0.375
      %v327 = vmul.f32 %v231, 0.375
      %v328 = vmul.f32 %v232, 0.375
      %v329 = vmul.f32 %v233, 0.375
      %v330 = vmul.f32 %v234, 0.375
      %v331 = vmul.f32 %v235, 0.375
      %v332 = vmul.f32 %v236, 0.375
      %v333 = vmul.f32 %v237, 0.375
      %v334 = vmul.f32 %v238, 0.375
      %v335 = vmul.f32 %v239, 0.375
      %v336 = vmul.f32 %v240, 0.375
      %v337 = vmul.f32 %v241, 0.375
      %v338 = vmul.f32 %v242, 0.375
      %v339 = vmul.f32 %v243, 0.375
      %v340 = vmul.f32 %v244, 0.375
      %v341 = vmul.f32 %v245, 0.375
      %v342 = vmul.f32 %v246, 0.375
      %v343 = vmul.f32 %v247, 0.375
      %v344 = vmul.f32 %v248, 0.375
      %v345 = vmul.f32 %v249, 0.375
      %v346 = vadd.f32 %v256, %v301
      %v347 = vadd.f32 %v257, %v302
      %v348 = vadd.f32 %v258, %v303
      %v349 = vadd.f32 %v259, %v304
      %v350 = vadd.f32 %v260, %v305
      %v351 = vadd.f32 %v261, %v306
      %v352 = vadd.f32 %v262, %v307
      %v353 = vadd.f32 %v263, %v308
      %v354 = vadd.f32 %v264, %v309
      %v355 = vadd.f32 %v265, %v310
      %v356 = vadd.f32 %v266, %v311
      %v357 = vadd.f32 %v267, %v312
      %v358 = vadd.f32 %v268, %v313
      %v359 = vadd.f32 %v269, %v314
      %v360 = vadd.f32 %v270, %v315
      %v361 = vadd.f32 %v271, %v316
      %v362 = vadd.f32 %v272, %v317
      %v363 = vadd.f32 %v273, %v318
      %v364 = vadd.f32 %v274, %v319
      %v365 = vadd.f32 %v275, %v320
      %v366 = vadd.f32 %v276, %v321
      %v367 = vadd.f32 %v277, %v322
      %v368 = vadd.f32 %v278, %v323
      %v369 = vadd.f32 %v279, %v324
      %v370 = vadd.f32 %v280, %v325
      %v371 = vadd.f32 %v281, %v326
      %v372 = vadd.f32 %v282, %v327
      %v373 = vadd.f32 %v283, %v328
      %v374 = vadd.f32 %v284, %v329
      %v375 = vadd.f32 %v285, %v330
      %v376 = vadd.f32 %v286, %v331
      %v377 = vadd.f32 %v287, %v332
      %v378 = vadd.f32 %v288, %v333
      %v379 = vadd.f32 %v289, %v334
      %v380 = vadd.f32 %v290, %v335
      %v381 = vadd.f32 %v291, %v336
      %v382 = vadd.f32 %v292, %v337
      %v383 = vadd.f32 %v293, %v338
      %v384 = vadd.f32 %v294, %v339
      %v385 = vadd.f32 %v295, %v340
      %v386 = vadd.f32 %v296, %v341
      %v387 = vadd.f32 %v297, %v342
      %v388 = vadd.f32 %v298, %v343
      %v389 = vadd.f32 %v299, %v344
      %v390 = vadd.f32 %v300, %v345
      %v391 = vmul.f32 %v250, 0.375
      %v392 = vmul.f32 %v251, 0.375
      %v393 = vmul.f32 %v252, 0.375
      %v394 = vadd.f32 %v346, %v304
      %v395 = vadd.f32 %v347, %v305
      %v396 = vadd.f32 %v348, %v306
      %v397 = vadd.f32 %v349, %v307
      %v398 = vadd.f32 %v350, %v308
      %v399 = vadd.f32 %v351, %v309
      %v400 = vadd.f32 %v352, %v310
      %v401 = vadd.f32 %v353, %v311
      %v402 = vadd.f32 %v354, %v312
      %v403 = vadd.f32 %v355, %v313
      %v404 = vadd.f32 %v356, %v314
      %v405 = vadd.f32 %v357, %v315
      %v406 = vadd.f32 %v358, %v316
      %v407 = vadd.f32 %v359, %v317
      %v408 = vadd.f32 %v360, %v318
      %v409 = vadd.f32 %v361, %v319
      %v410 = vadd.f32 %v362, %v320
      %v411 = vadd.f32 %v363, %v321
      %v412 = vadd.f32 %v364, %v322
      %v413 = vadd.f32 %v365, %v323
      %v414 = vadd.f32 %v366, %v324
      %v415 = vadd.f32 %v367, %v325
      %v416 = vadd.f32 %v368, %v326
      %v417 = vadd.f32 %v369, %v327
      %v418 = vadd.f32 %v370, %v328
      %v419 = vadd.f32 %v371, %v329
      %v420 = vadd.f32 %v372, %v330
      %v421 = vadd.f32 %v373, %v331
      %v422 = vadd.f32 %v374, %v332
      %v423 = vadd.f32 %v375, %v333
      %v424 = vadd.f32 %v376, %v334
      %v425 = vadd.f32 %v377, %v335
      %v426 = vadd.f32 %v378, %v336
      %v427 = vadd.f32 %v379, %v337
      %v428 = vadd.f32 %v380, %v338
      %v429 = vadd.f32 %v381, %v339
      %v430 = vadd.f32 %v382, %v340
      %v431 = vadd.f32 %v383, %v341
      %v432 = vadd.f32 %v384, %v342
      %v433 = vadd.f32 %v385, %v343
      %v434 = vadd.f32 %v386, %v344
      %v435 = vadd.f32 %v387, %v345
      %v436 = vadd.f32 %v388, %v391
      %v437 = vadd.f32 %v389, %v392
      %v438 = vadd.f32 %v390, %v393
      %v439 = vmul.f32 %v247, 0.125
      %v440 = vmul.f32 %v248, 0.125
      %v441 = vmul.f32 %v249, 0.125
      %v442 = vmul.f32 %v250, 0.125
      %v443 = vmul.f32 %v251, 0.125
      %v444 = vmul.f32 %v252, 0.125
      %v445 = vmul.f32 %v253, 0.125
      %v446 = vmul.f32 %v254, 0.125
      %v447 = vmul.f32 %v255, 0.125
      %v448 = vadd.f32 %v394, %v265
      %v449 = vadd.f32 %v395, %v266
      %v450 = vadd.f32 %v396, %v267
      %v451 = vadd.f32 %v397, %v268
      %v452 = vadd.f32 %v398, %v269
      %v453 = vadd.f32 %v399, %v270
      %v454 = vadd.f32 %v400, %v271
      %v455 = vadd.f32 %v401, %v272
      %v456 = vadd.f32 %v402, %v273
      %v457 = vadd.f32 %v403, %v274
      %v458 = vadd.f32 %v404, %v275
      %v459 = vadd.f32 %v405, %v276
      %v460 = vadd.f32 %v406, %v277
      %v461 = vadd.f32 %v407, %v278
      %v462 = vadd.f32 %v408, %v279
      %v463 = vadd.f32 %v409, %v280
      %v464 = vadd.f32 %v410, %v281
      %v465 = vadd.f32 %v411, %v282
      %v466 = vadd.f32 %v412, %v283
      %v467 = vadd.f32 %v413, %v284
      %v468 = vadd.f32 %v414, %v285
      %v469 = vadd.f32 %v415, %v286
      %v470 = vadd.f32 %v416, %v287
      %v471 = vadd.f32 %v417, %v288
      %v472 = vadd.f32 %v418, %v289
      %v473 = vadd.f32 %v419, %v290
      %v474 = vadd.f32 %v420, %v291
      %v475 = vadd.f32 %v421, %v292
      %v476 = vadd.f32 %v422, %v293
      %v477 = vadd.f32 %v423, %v294
      %v478 = vadd.f32 %v424, %v295
      %v479 = vadd.f32 %v425, %v296
      %v480 = vadd.f32 %v426, %v297
      %v481 = vadd.f32 %v427, %v298
      %v482 = vadd.f32 %v428, %v299
      %v483 = vadd.f32 %v429, %v300
      %v484 = vadd.f32 %v430, %v439
      %v485 = vadd.f32 %v431, %v440
      %v486 = vadd.f32 %v432, %v441
      %v487 = vadd.f32 %v433, %v442
      %v488 = vadd.f32 %v434, %v443
      %v489 = vadd.f32 %v435, %v444
      %v490 = vadd.f32 %v436, %v445
      %v491 = vadd.f32 %v437, %v446
      %v492 = vadd.f32 %v438, %v447
      %v493 = vmul.f32 %v448, 0.125
      %v494 = vmul.f32 %v449, 0.125
      %v495 = vmul.f32 %v451, 0.125
      %v496 = vmul.f32 %v452, 0.125
      %v497 = vmul.f32 %v454, 0.125
      %v498 = vmul.f32 %v455, 0.125
      %v499 = vmul.f32 %v457, 0.125
      %v500 = vmul.f32 %v458, 0.125
      %v501 = vmul.f32 %v460, 0.125
      %v502 = vmul.f32 %v461, 0.125
      %v503 = vmul.f32 %v463, 0.125
      %v504 = vmul.f32 %v464, 0.125
      %v505 = vmul.f32 %v466, 0.125
      %v506 = vmul.f32 %v467, 0.125
      %v507 = vmul.f32 %v469, 0.125
      %v508 = vmul.f32 %v470, 0.125
      %v509 = vmul.f32 %v472, 0.125
      %v510 = vmul.f32 %v473, 0.125
      %v511 = vmul.f32 %v475, 0.125
      %v512 = vmul.f32 %v476, 0.125
      %v513 = vmul.f32 %v478, 0.125
      %v514 = vmul.f32 %v479, 0.125
      %v515 = vmul.f32 %v481, 0.125
      %v516 = vmul.f32 %v482, 0.125
      %v517 = vmul.f32 %v484, 0.125
      %v518 = vmul.f32 %v485, 0.125
      %v519 = vmul.f32 %v487, 0.125
      %v520 = vmul.f32 %v488, 0.125
      %v521 = vmul.f32 %v490, 0.125
      %v522 = vmul.f32 %v491, 0.125
      %v523 = vmul.f32 %v448, 0.375
      %v524 = vmul.f32 %v449, 0.375
      %v525 = vmul.f32 %v451, 0.375
      %v526 = vmul.f32 %v452, 0.375
      %v527 = vmul.f32 %v454, 0.375
      %v528 = vmul.f32 %v455, 0.375
      %v529 = vmul.f32 %v457, 0.375
      %v530 = vmul.f32 %v458, 0.375
      %v531 = vmul.f32 %v460, 0.375
      %v532 = vmul.f32 %v461, 0.375
      %v533 = vmul.f32 %v463, 0.375
      %v534 = vmul.f32 %v464, 0.375
      %v535 = vmul.f32 %v466, 0.375
      %v536 = vmul.f32 %v467, 0.375
      %v537 = vmul.f32 %v469, 0.375
      %v538 = vmul.f32 %v470, 0.375
      %v539 = vmul.f32 %v472, 0.375
      %v540 = vmul.f32 %v473, 0.375
      %v541 = vmul.f32 %v475, 0.375
      %v542 = vmul.f32 %v476, 0.375
      %v543 = vmul.f32 %v478, 0.375
      %v544 = vmul.f32 %v479, 0.375
      %v545 = vmul.f32 %v481, 0.375
      %v546 = vmul.f32 %v482, 0.375
      %v547 = vmul.f32 %v484, 0.375
      %v548 = vmul.f32 %v485, 0.375
      %v549 = vmul.f32 %v487, 0.375
      %v550 = vmul.f32 %v488, 0.375
      %v551 = vmul.f32 %v490, 0.375
      %v552 = vmul.f32 %v491, 0.375
      %vm583 = vcmask 1046528
      %v584 = vrot.slane %v523, 1
      %v585 = vrot.slane %v524, 1
      %v586 = vsel %vm583, %v584, %v585
      %v587 = vrot.slane %v525, 1
      %v588 = vrot.slane %v526, 1
      %v589 = vsel %vm583, %v587, %v588
      %v590 = vrot.slane %v527, 1
      %v591 = vrot.slane %v528, 1
      %v592 = vsel %vm583, %v590, %v591
      %v593 = vrot.slane %v529, 1
      %v594 = vrot.slane %v530, 1
      %v595 = vsel %vm583, %v593, %v594
      %v596 = vrot.slane %v531, 1
      %v597 = vrot.slane %v532, 1
      %v598 = vsel %vm583, %v596, %v597
      %v599 = vrot.slane %v533, 1
      %v600 = vrot.slane %v534, 1
      %v601 = vsel %vm583, %v599, %v600
      %v602 = vrot.slane %v535, 1
      %v603 = vrot.slane %v536, 1
      %v604 = vsel %vm583, %v602, %v603
      %v605 = vrot.slane %v537, 1
      %v606 = vrot.slane %v538, 1
      %v607 = vsel %vm583, %v605, %v606
      %v608 = vrot.slane %v539, 1
      %v609 = vrot.slane %v540, 1
      %v610 = vsel %vm583, %v608, %v609
      %v611 = vrot.slane %v541, 1
      %v612 = vrot.slane %v542, 1
      %v613 = vsel %vm583, %v611, %v612
      %v614 = vrot.slane %v543, 1
      %v615 = vrot.slane %v544, 1
      %v616 = vsel %vm583, %v614, %v615
      %v617 = vrot.slane %v545, 1
      %v618 = vrot.slane %v546, 1
      %v619 = vsel %vm583, %v617, %v618
      %v620 = vrot.slane %v547, 1
      %v621 = vrot.slane %v548, 1
      %v622 = vsel %vm583, %v620, %v621
      %v623 = vrot.slane %v549, 1
      %v624 = vrot.slane %v550, 1
      %v625 = vsel %vm583, %v623, %v624
      %v626 = vrot.slane %v551, 1
      %v627 = vrot.slane %v552, 1
      %v628 = vsel %vm583, %v626, %v627
      %v659 = vadd.f32 %v493, %v586
      %v660 = vadd.f32 %v494, %v585
      %v661 = vadd.f32 %v495, %v589
      %v662 = vadd.f32 %v496, %v588
      %v663 = vadd.f32 %v497, %v592
      %v664 = vadd.f32 %v498, %v591
      %v665 = vadd.f32 %v499, %v595
      %v666 = vadd.f32 %v500, %v594
      %v667 = vadd.f32 %v501, %v598
      %v668 = vadd.f32 %v502, %v597
      %v669 = vadd.f32 %v503, %v601
      %v670 = vadd.f32 %v504, %v600
      %v671 = vadd.f32 %v505, %v604
      %v672 = vadd.f32 %v506, %v603
      %v673 = vadd.f32 %v507, %v607
      %v674 = vadd.f32 %v508, %v606
      %v675 = vadd.f32 %v509, %v610
      %v676 = vadd.f32 %v510, %v609
      %v677 = vadd.f32 %v511, %v613
      %v678 = vadd.f32 %v512, %v612
      %v679 = vadd.f32 %v513, %v616
      %v680 = vadd.f32 %v514, %v615
      %v681 = vadd.f32 %v515, %v619
      %v682 = vadd.f32 %v516, %v618
      %v683 = vadd.f32 %v517, %v622
      %v684 = vadd.f32 %v518, %v621
      %v685 = vadd.f32 %v519, %v625
      %v686 = vadd.f32 %v520, %v624
      %v687 = vadd.f32 %v521, %v628
      %v688 = vadd.f32 %v522, %v627
      %v689 = vmul.f32 %v450, 0.375
      %v690 = vmul.f32 %v453, 0.375
      %v691 = vmul.f32 %v456, 0.375
      %v692 = vmul.f32 %v459, 0.375
      %v693 = vmul.f32 %v462, 0.375
      %v694 = vmul.f32 %v465, 0.375
      %v695 = vmul.f32 %v468, 0.375
      %v696 = vmul.f32 %v471, 0.375
      %v697 = vmul.f32 %v474, 0.375
      %v698 = vmul.f32 %v477, 0.375
      %v699 = vmul.f32 %v480, 0.375
      %v700 = vmul.f32 %v483, 0.375
      %v701 = vmul.f32 %v486, 0.375
      %v702 = vmul.f32 %v489, 0.375
      %v703 = vmul.f32 %v492, 0.375
      %vm719 = vcmask 1045504
      %v720 = vrot.slane %v523, 2
      %v721 = vrot.slane %v524, 2
      %v722 = vsel %vm719, %v720, %v721
      %v723 = vrot.slane %v689, 2
      %v724 = vsel %vm719, %v721, %v723
      %v725 = vrot.slane %v525, 2
      %v726 = vrot.slane %v526, 2
      %v727 = vsel %vm719, %v725, %v726
      %v728 = vrot.slane %v690, 2
      %v729 = vsel %vm719, %v726, %v728
      %v730 = vrot.slane %v527, 2
      %v731 = vrot.slane %v528, 2
      %v732 = vsel %vm719, %v730, %v731
      %v733 = vrot.slane %v691, 2
      %v734 = vsel %vm719, %v731, %v733
      %v735 = vrot.slane %v529, 2
      %v736 = vrot.slane %v530, 2
      %v737 = vsel %vm719, %v735, %v736
      %v738 = vrot.slane %v692, 2
      %v739 = vsel %vm719, %v736, %v738
      %v740 = vrot.slane %v531, 2
      %v741 = vrot.slane %v532, 2
      %v742 = vsel %vm719, %v740, %v741
      %v743 = vrot.slane %v693, 2
      %v744 = vsel %vm719, %v741, %v743
      %v745 = vrot.slane %v533, 2
      %v746 = vrot.slane %v534, 2
      %v747 = vsel %vm719, %v745, %v746
      %v748 = vrot.slane %v694, 2
      %v749 = vsel %vm719, %v746, %v748
      %v750 = vrot.slane %v535, 2
      %v751 = vrot.slane %v536, 2
      %v752 = vsel %vm719, %v750, %v751
      %v753 = vrot.slane %v695, 2
      %v754 = vsel %vm719, %v751, %v753
      %v755 = vrot.slane %v537, 2
      %v756 = vrot.slane %v538, 2
      %v757 = vsel %vm719, %v755, %v756
      %v758 = vrot.slane %v696, 2
      %v759 = vsel %vm719, %v756, %v758
      %v760 = vrot.slane %v539, 2
      %v761 = vrot.slane %v540, 2
      %v762 = vsel %vm719, %v760, %v761
      %v763 = vrot.slane %v697, 2
      %v764 = vsel %vm719, %v761, %v763
      %v765 = vrot.slane %v541, 2
      %v766 = vrot.slane %v542, 2
      %v767 = vsel %vm719, %v765, %v766
      %v768 = vrot.slane %v698, 2
      %v769 = vsel %vm719, %v766, %v768
      %v770 = vrot.slane %v543, 2
      %v771 = vrot.slane %v544, 2
      %v772 = vsel %vm719, %v770, %v771
      %v773 = vrot.slane %v699, 2
      %v774 = vsel %vm719, %v771, %v773
      %v775 = vrot.slane %v545, 2
      %v776 = vrot.slane %v546, 2
      %v777 = vsel %vm719, %v775, %v776
      %v778 = vrot.slane %v700, 2
      %v779 = vsel %vm719, %v776, %v778
      %v780 = vrot.slane %v547, 2
      %v781 = vrot.slane %v548, 2
      %v782 = vsel %vm719, %v780, %v781
      %v783 = vrot.slane %v701, 2
      %v784 = vsel %vm719, %v781, %v783
      %v785 = vrot.slane %v549, 2
      %v786 = vrot.slane %v550, 2
      %v787 = vsel %vm719, %v785, %v786
      %v788 = vrot.slane %v702, 2
      %v789 = vsel %vm719, %v786, %v788
      %v790 = vrot.slane %v551, 2
      %v791 = vrot.slane %v552, 2
      %v792 = vsel %vm719, %v790, %v791
      %v793 = vrot.slane %v703, 2
      %v794 = vsel %vm719, %v791, %v793
      %v825 = vadd.f32 %v659, %v722
      %v826 = vadd.f32 %v660, %v724
      %v827 = vadd.f32 %v661, %v727
      %v828 = vadd.f32 %v662, %v729
      %v829 = vadd.f32 %v663, %v732
      %v830 = vadd.f32 %v664, %v734
      %v831 = vadd.f32 %v665, %v737
      %v832 = vadd.f32 %v666, %v739
      %v833 = vadd.f32 %v667, %v742
      %v834 = vadd.f32 %v668, %v744
      %v835 = vadd.f32 %v669, %v747
      %v836 = vadd.f32 %v670, %v749
      %v837 = vadd.f32 %v671, %v752
      %v838 = vadd.f32 %v672, %v754
      %v839 = vadd.f32 %v673, %v757
      %v840 = vadd.f32 %v674, %v759
      %v841 = vadd.f32 %v675, %v762
      %v842 = vadd.f32 %v676, %v764
      %v843 = vadd.f32 %v677, %v767
      %v844 = vadd.f32 %v678, %v769
      %v845 = vadd.f32 %v679, %v772
      %v846 = vadd.f32 %v680, %v774
      %v847 = vadd.f32 %v681, %v777
      %v848 = vadd.f32 %v682, %v779
      %v849 = vadd.f32 %v683, %v782
      %v850 = vadd.f32 %v684, %v784
      %v851 = vadd.f32 %v685, %v787
      %v852 = vadd.f32 %v686, %v789
      %v853 = vadd.f32 %v687, %v792
      %v854 = vadd.f32 %v688, %v794
      %v855 = vmul.f32 %v450, 0.125
      %v856 = vmul.f32 %v453, 0.125
      %v857 = vmul.f32 %v456, 0.125
      %v858 = vmul.f32 %v459, 0.125
      %v859 = vmul.f32 %v462, 0.125
      %v860 = vmul.f32 %v465, 0.125
      %v861 = vmul.f32 %v468, 0.125
      %v862 = vmul.f32 %v471, 0.125
      %v863 = vmul.f32 %v474, 0.125
      %v864 = vmul.f32 %v477, 0.125
      %v865 = vmul.f32 %v480, 0.125
      %v866 = vmul.f32 %v483, 0.125
      %v867 = vmul.f32 %v486, 0.125
      %v868 = vmul.f32 %v489, 0.125
      %v869 = vmul.f32 %v492, 0.125
      %vm915 = vcmask 1044480
      %v916 = vrot.slane %v493, 3
      %v917 = vrot.slane %v494, 3
      %v918 = vsel %vm915, %v916, %v917
      %v919 = vrot.slane %v855, 3
      %v920 = vsel %vm915, %v917, %v919
      %v921 = vrot.slane %v495, 3
      %v922 = vrot.slane %v496, 3
      %v923 = vsel %vm915, %v921, %v922
      %v924 = vrot.slane %v856, 3
      %v925 = vsel %vm915, %v922, %v924
      %v926 = vrot.slane %v497, 3
      %v927 = vrot.slane %v498, 3
      %v928 = vsel %vm915, %v926, %v927
      %v929 = vrot.slane %v857, 3
      %v930 = vsel %vm915, %v927, %v929
      %v931 = vrot.slane %v499, 3
      %v932 = vrot.slane %v500, 3
      %v933 = vsel %vm915, %v931, %v932
      %v934 = vrot.slane %v858, 3
      %v935 = vsel %vm915, %v932, %v934
      %v936 = vrot.slane %v501, 3
      %v937 = vrot.slane %v502, 3
      %v938 = vsel %vm915, %v936, %v937
      %v939 = vrot.slane %v859, 3
      %v940 = vsel %vm915, %v937, %v939
      %v941 = vrot.slane %v503, 3
      %v942 = vrot.slane %v504, 3
      %v943 = vsel %vm915, %v941, %v942
      %v944 = vrot.slane %v860, 3
      %v945 = vsel %vm915, %v942, %v944
      %v946 = vrot.slane %v505, 3
      %v947 = vrot.slane %v506, 3
      %v948 = vsel %vm915, %v946, %v947
      %v949 = vrot.slane %v861, 3
      %v950 = vsel %vm915, %v947, %v949
      %v951 = vrot.slane %v507, 3
      %v952 = vrot.slane %v508, 3
      %v953 = vsel %vm915, %v951, %v952
      %v954 = vrot.slane %v862, 3
      %v955 = vsel %vm915, %v952, %v954
      %v956 = vrot.slane %v509, 3
      %v957 = vrot.slane %v510, 3
      %v958 = vsel %vm915, %v956, %v957
      %v959 = vrot.slane %v863, 3
      %v960 = vsel %vm915, %v957, %v959
      %v961 = vrot.slane %v511, 3
      %v962 = vrot.slane %v512, 3
      %v963 = vsel %vm915, %v961, %v962
      %v964 = vrot.slane %v864, 3
      %v965 = vsel %vm915, %v962, %v964
      %v966 = vrot.slane %v513, 3
      %v967 = vrot.slane %v514, 3
      %v968 = vsel %vm915, %v966, %v967
      %v969 = vrot.slane %v865, 3
      %v970 = vsel %vm915, %v967, %v969
      %v971 = vrot.slane %v515, 3
      %v972 = vrot.slane %v516, 3
      %v973 = vsel %vm915, %v971, %v972
      %v974 = vrot.slane %v866, 3
      %v975 = vsel %vm915, %v972, %v974
      %v976 = vrot.slane %v517, 3
      %v977 = vrot.slane %v518, 3
      %v978 = vsel %vm915, %v976, %v977
      %v979 = vrot.slane %v867, 3
      %v980 = vsel %vm915, %v977, %v979
      %v981 = vrot.slane %v519, 3
      %v982 = vrot.slane %v520, 3
      %v983 = vsel %vm915, %v981, %v982
      %v984 = vrot.slane %v868, 3
      %v985 = vsel %vm915, %v982, %v984
      %v986 = vrot.slane %v521, 3
      %v987 = vrot.slane %v522, 3
      %v988 = vsel %vm915, %v986, %v987
      %v989 = vrot.slane %v869, 3
      %v990 = vsel %vm915, %v987, %v989
      %v1021 = vadd.f32 %v825, %v918
      %v1022 = vadd.f32 %v826, %v920
      %v1023 = vadd.f32 %v827, %v923
      %v1024 = vadd.f32 %v828, %v925
      %v1025 = vadd.f32 %v829, %v928
      %v1026 = vadd.f32 %v830, %v930
      %v1027 = vadd.f32 %v831, %v933
      %v1028 = vadd.f32 %v832, %v935
      %v1029 = vadd.f32 %v833, %v938
      %v1030 = vadd.f32 %v834, %v940
      %v1031 = vadd.f32 %v835, %v943
      %v1032 = vadd.f32 %v836, %v945
      %v1033 = vadd.f32 %v837, %v948
      %v1034 = vadd.f32 %v838, %v950
      %v1035 = vadd.f32 %v839, %v953
      %v1036 = vadd.f32 %v840, %v955
      %v1037 = vadd.f32 %v841, %v958
      %v1038 = vadd.f32 %v842, %v960
      %v1039 = vadd.f32 %v843, %v963
      %v1040 = vadd.f32 %v844, %v965
      %v1041 = vadd.f32 %v845, %v968
      %v1042 = vadd.f32 %v846, %v970
      %v1043 = vadd.f32 %v847, %v973
      %v1044 = vadd.f32 %v848, %v975
      %v1045 = vadd.f32 %v849, %v978
      %v1046 = vadd.f32 %v850, %v980
      %v1047 = vadd.f32 %v851, %v983
      %v1048 = vadd.f32 %v852, %v985
      %v1049 = vadd.f32 %v853, %v988
      %v1050 = vadd.f32 %v854, %v990
      %v1051 = vpack.c.bf16 %v1022, %v1021
      %v1052 = vpack.c.bf16 %v1024, %v1023
      %v1053 = vpack.c.bf16 %v1026, %v1025
      %v1054 = vpack.c.bf16 %v1028, %v1027
      %v1055 = vpack.c.bf16 %v1030, %v1029
      %v1056 = vpack.c.bf16 %v1032, %v1031
      %v1057 = vpack.c.bf16 %v1034, %v1033
      %v1058 = vpack.c.bf16 %v1036, %v1035
      %v1059 = vpack.c.bf16 %v1038, %v1037
      %v1060 = vpack.c.bf16 %v1040, %v1039
      %v1061 = vpack.c.bf16 %v1042, %v1041
      %v1062 = vpack.c.bf16 %v1044, %v1043
      %v1063 = vpack.c.bf16 %v1046, %v1045
      %v1064 = vpack.c.bf16 %v1048, %v1047
      %v1065 = vpack.c.bf16 %v1050, %v1049
      %v1081 = vunpack.c.l.b16 %v1051
      %v1082 = vunpack.c.h.b16 %v1051
      %v1083 = vunpack.c.l.b16 %v1052
      %v1084 = vunpack.c.h.b16 %v1052
      %v1085 = vunpack.c.l.b16 %v1053
      %v1086 = vunpack.c.h.b16 %v1053
      %v1087 = vunpack.c.l.b16 %v1054
      %v1088 = vunpack.c.h.b16 %v1054
      %v1089 = vunpack.c.l.b16 %v1055
      %v1090 = vunpack.c.h.b16 %v1055
      %v1091 = vunpack.c.l.b16 %v1056
      %v1092 = vunpack.c.h.b16 %v1056
      %v1093 = vunpack.c.l.b16 %v1057
      %v1094 = vunpack.c.h.b16 %v1057
      %v1095 = vunpack.c.l.b16 %v1058
      %v1096 = vunpack.c.h.b16 %v1058
      %v1097 = vunpack.c.l.b16 %v1059
      %v1098 = vunpack.c.h.b16 %v1059
      %v1099 = vunpack.c.l.b16 %v1060
      %v1100 = vunpack.c.h.b16 %v1060
      %v1101 = vunpack.c.l.b16 %v1061
      %v1102 = vunpack.c.h.b16 %v1061
      %v1103 = vunpack.c.l.b16 %v1062
      %v1104 = vunpack.c.h.b16 %v1062
      %v1105 = vunpack.c.l.b16 %v1063
      %v1106 = vunpack.c.h.b16 %v1063
      %v1107 = vunpack.c.l.b16 %v1064
      %v1108 = vunpack.c.h.b16 %v1064
      %v1109 = vunpack.c.l.b16 %v1065
      %v1110 = vunpack.c.h.b16 %v1065
      %v1111 = vpack.c.b16 %v1081, %v1081
      %v1112 = vpack.c.b16 %v1082, %v1082
      %v1113 = vpack.c.b16 %v1083, %v1083
      %v1114 = vpack.c.b16 %v1084, %v1084
      %v1115 = vpack.c.b16 %v1085, %v1085
      %v1116 = vpack.c.b16 %v1086, %v1086
      %v1117 = vpack.c.b16 %v1087, %v1087
      %v1118 = vpack.c.b16 %v1088, %v1088
      %v1119 = vpack.c.b16 %v1089, %v1089
      %v1120 = vpack.c.b16 %v1090, %v1090
      %v1121 = vpack.c.b16 %v1091, %v1091
      %v1122 = vpack.c.b16 %v1092, %v1092
      %v1123 = vpack.c.b16 %v1093, %v1093
      %v1124 = vpack.c.b16 %v1094, %v1094
      %v1125 = vpack.c.b16 %v1095, %v1095
      %v1126 = vpack.c.b16 %v1096, %v1096
      %v1127 = vpack.c.b16 %v1097, %v1097
      %v1128 = vpack.c.b16 %v1098, %v1098
      %v1129 = vpack.c.b16 %v1099, %v1099
      %v1130 = vpack.c.b16 %v1100, %v1100
      %v1131 = vpack.c.b16 %v1101, %v1101
      %v1132 = vpack.c.b16 %v1102, %v1102
      %v1133 = vpack.c.b16 %v1103, %v1103
      %v1134 = vpack.c.b16 %v1104, %v1104
      %v1135 = vpack.c.b16 %v1105, %v1105
      %v1136 = vpack.c.b16 %v1106, %v1106
      %v1137 = vpack.c.b16 %v1107, %v1107
      %v1138 = vpack.c.b16 %v1108, %v1108
      %v1139 = vpack.c.b16 %v1109, %v1109
      %v1140 = vpack.c.b16 %v1110, %v1110
      %vm1171 = vcmask 27648
      %1172 = vst.msk [vmem:[%s147] sm:$0xf] %vm1171, %v1111
      %vm1173 = vcmask 27648
      %vm1174 = vsmask.f32 3328
      %vm1175 = vmand %vm1173, %vm1174
      %v1176 = vld [vmem:[%s147 + $0x4] sm:$0xf]
      %v1177 = vsel %vm1175, %v1112, %v1176
      %1178 = vst [vmem:[%s147 + $0x4] sm:$0xf] %v1177
      %1179 = vst.msk [vmem:[%s147 + $0x8] sm:$0xf] %vm1171, %v1113
      %v1180 = vld [vmem:[%s147 + $0xc] sm:$0xf]
      %v1181 = vsel %vm1175, %v1114, %v1180
      %1182 = vst [vmem:[%s147 + $0xc] sm:$0xf] %v1181
      %1183 = vst.msk [vmem:[%s147 + $0x10] sm:$0xf] %vm1171, %v1115
      %v1184 = vld [vmem:[%s147 + $0x14] sm:$0xf]
      %v1185 = vsel %vm1175, %v1116, %v1184
      %1186 = vst [vmem:[%s147 + $0x14] sm:$0xf] %v1185
      %1187 = vst.msk [vmem:[%s147 + $0x18] sm:$0xf] %vm1171, %v1117
      %v1188 = vld [vmem:[%s147 + $0x1c] sm:$0xf]
      %v1189 = vsel %vm1175, %v1118, %v1188
      %1190 = vst [vmem:[%s147 + $0x1c] sm:$0xf] %v1189
      %1191 = vst.msk [vmem:[%s147 + $0x20] sm:$0xf] %vm1171, %v1119
      %v1192 = vld [vmem:[%s147 + $0x24] sm:$0xf]
      %v1193 = vsel %vm1175, %v1120, %v1192
      %1194 = vst [vmem:[%s147 + $0x24] sm:$0xf] %v1193
      %1195 = vst.msk [vmem:[%s147 + $0x28] sm:$0xf] %vm1171, %v1121
      %v1196 = vld [vmem:[%s147 + $0x2c] sm:$0xf]
      %v1197 = vsel %vm1175, %v1122, %v1196
      %1198 = vst [vmem:[%s147 + $0x2c] sm:$0xf] %v1197
      %1199 = vst.msk [vmem:[%s147 + $0x30] sm:$0xf] %vm1171, %v1123
      %v1200 = vld [vmem:[%s147 + $0x34] sm:$0xf]
      %v1201 = vsel %vm1175, %v1124, %v1200
      %1202 = vst [vmem:[%s147 + $0x34] sm:$0xf] %v1201
      %1203 = vst.msk [vmem:[%s147 + $0x38] sm:$0xf] %vm1171, %v1125
      %v1204 = vld [vmem:[%s147 + $0x3c] sm:$0xf]
      %v1205 = vsel %vm1175, %v1126, %v1204
      %1206 = vst [vmem:[%s147 + $0x3c] sm:$0xf] %v1205
      %1207 = vst.msk [vmem:[%s147 + $0x40] sm:$0xf] %vm1171, %v1127
      %v1208 = vld [vmem:[%s147 + $0x44] sm:$0xf]
      %v1209 = vsel %vm1175, %v1128, %v1208
      %1210 = vst [vmem:[%s147 + $0x44] sm:$0xf] %v1209
      %1211 = vst.msk [vmem:[%s147 + $0x48] sm:$0xf] %vm1171, %v1129
      %v1212 = vld [vmem:[%s147 + $0x4c] sm:$0xf]
      %v1213 = vsel %vm1175, %v1130, %v1212
      %1214 = vst [vmem:[%s147 + $0x4c] sm:$0xf] %v1213
      %1215 = vst.msk [vmem:[%s147 + $0x50] sm:$0xf] %vm1171, %v1131
      %v1216 = vld [vmem:[%s147 + $0x54] sm:$0xf]
      %v1217 = vsel %vm1175, %v1132, %v1216
      %1218 = vst [vmem:[%s147 + $0x54] sm:$0xf] %v1217
      %1219 = vst.msk [vmem:[%s147 + $0x58] sm:$0xf] %vm1171, %v1133
      %v1220 = vld [vmem:[%s147 + $0x5c] sm:$0xf]
      %v1221 = vsel %vm1175, %v1134, %v1220
      %1222 = vst [vmem:[%s147 + $0x5c] sm:$0xf] %v1221
      %1223 = vst.msk [vmem:[%s147 + $0x60] sm:$0xf] %vm1171, %v1135
      %v1224 = vld [vmem:[%s147 + $0x64] sm:$0xf]
      %v1225 = vsel %vm1175, %v1136, %v1224
      %1226 = vst [vmem:[%s147 + $0x64] sm:$0xf] %v1225
      %1227 = vst.msk [vmem:[%s147 + $0x68] sm:$0xf] %vm1171, %v1137
      %v1228 = vld [vmem:[%s147 + $0x6c] sm:$0xf]
      %v1229 = vsel %vm1175, %v1138, %v1228
      %1230 = vst [vmem:[%s147 + $0x6c] sm:$0xf] %v1229
      %1231 = vst.msk [vmem:[%s147 + $0x70] sm:$0xf] %vm1171, %v1139
      %v1232 = vld [vmem:[%s147 + $0x74] sm:$0xf]
      %v1233 = vsel %vm1175, %v1140, %v1232
      %1234 = vst [vmem:[%s147 + $0x74] sm:$0xf] %v1233
      %p1235 = scmp.lt.s32.totalorder %s16, 1
      %s1236 = scalar_select %p1235, %s16, 1
      %p1237 = scmp.lt.s32.totalorder %s17, 0
      %s1238 = scalar_select %p1237, %s17, 0
      %s1239 = smul.addr %s1236, 30
      %s1240 = sadd.s32 %s1238, %s1239
      %s1241 = smul.addr %s1240, 4
      %s1242 = scalar_lea.vmem %s1, %s1241
      // Predicated region
      $region25: #{style_block_forward.6} parent=23 // pred_check
        %p1243 = pneg %p72
      $region26: #{style_block_forward.6} parent=23 // pred_check_branch
        %1245 = sbr.rel (%p1243) target = $region28
      $region27: #{style_block_forward.6} parent=23 // pred_region
        _
      $region28: #{style_block_forward.6} parent=23 // pred_fallthru
        _
    $region24: #{style_block_forward.6} parent=5 // pred_fallthru
      _
    %p1246 = scmp.le.s32.totalorder 2, %s7
    // Predicated region
    $region29: #{style_block_forward.6} parent=5 // pred_check
      %p1247 = pneg %p1246
    $region30: #{style_block_forward.6} parent=5 // pred_check_branch
      %1249 = sbr.rel (%p1247) target = $region32
    $region31: #{style_block_forward.6} parent=5 // pred_region
      %s1250 = ssub.s32 %s7, 2
      // Predicated region
      $region33: #{style_block_forward.6} parent=31 // pred_check
        %p1251 = pneg %p78
      $region34: #{style_block_forward.6} parent=31 // pred_check_branch
        %1253 = sbr.rel (%p1251) target = $region36
      $region35: #{style_block_forward.6} parent=31 // pred_region
        %p1254 = scmp.lt.s32.totalorder %s18, 1
        %s1255 = scalar_select %p1254, %s18, 1
        %p1256 = scmp.lt.s32.totalorder %s19, 0
        %s1257 = scalar_select %p1256, %s19, 0
        %s1258 = smul.addr %s1255, 30
        %s1259 = sadd.s32 %s1257, %s1258
        %s1260 = smul.addr %s1259, 4
        %s1261 = scalar_lea.vmem %s1, %s1260
      $region36: #{style_block_forward.6} parent=31 // pred_fallthru
        _
    $region32: #{style_block_forward.6} parent=5 // pred_fallthru
      _
  $region6: #{style_block_forward.6} parent=0 // loop_footer
    %s11 = sadd.s32 1, %s7
  $region7: #{style_block_forward.6} parent=0 // loop_footer_branch
    %6 = sbr.rel target = $region3
  $region8: #{style_block_forward.6} parent=0 // loop_exit
    _

// kernel: style_block_forward.7
$region0: #{style_block_forward.7}
  #allocation0 [shape = 'u32[]', space=smem, size = 0x4, offset = 0x4, fixed_abs, tag = 'smem constant byte address 0x4 - core index']
  #allocation1 [shape = 'u32[144,128]{1,0:T(1,128)}', space=vmem, size = 0x12000, scoped, tag = 'internal scratch']
  #allocation2 [shape = 'f32[128,128]{1,0:T(8,128)}', space=vmem, size = 0x10000, scoped, tag = 'scratch operand']
  %s0 = inlined_call_operand.vmem [shape: bf16[128,128], index: 0, kind: input, shape index: {}]
  %s1 = inlined_call_operand.vmem [shape: bf16[128,128], index: 1, kind: input, shape index: {}]
  %s2 = inlined_call_operand.vmem [shape: f32[1,128], index: 2, kind: input, shape index: {}]
  %s3 = inlined_call_operand.vmem [shape: bf16[128,128], index: 3, kind: input, shape index: {}]
  %s4 = inlined_call_operand.vmem [shape: bf16[128,128], index: 4, kind: input, shape index: {}]
  %s5 = inlined_call_operand.vmem [shape: f32[128,128], index: 5, kind: output, shape index: {}]
  %s6 = sld [smem:[#allocation0]]
  $region38: #{style_block_forward.7} parent=0
    _
  %s8 = ssub.s32 1, %s6
  %s9 = scalar_select 0, %s8, %s6
  // Predicated region
  $region2: #{style_block_forward.7} parent=0 // pred_check
    _
  $region3: #{style_block_forward.7} parent=0 // pred_check_branch
    %11 = sbr.rel (0) target = $region5
  $region4: #{style_block_forward.7} parent=0 // pred_region
    _
  $region5: #{style_block_forward.7} parent=0 // pred_fallthru
    _
  // Predicated region
  $region6: #{style_block_forward.7} parent=0 // pred_check
    _
  $region7: #{style_block_forward.7} parent=0 // pred_check_branch
    %13 = sbr.rel (0) target = $region9
  $region8: #{style_block_forward.7} parent=0 // pred_region
    _
  $region9: #{style_block_forward.7} parent=0 // pred_fallthru
    _
  // Predicated region
  $region10: #{style_block_forward.7} parent=0 // pred_check
    _
  $region11: #{style_block_forward.7} parent=0 // pred_check_branch
    %15 = sbr.rel (0) target = $region13
  $region12: #{style_block_forward.7} parent=0 // pred_region
    _
  $region13: #{style_block_forward.7} parent=0 // pred_fallthru
    _
  // Predicated region
  $region14: #{style_block_forward.7} parent=0 // pred_check
    _
  $region15: #{style_block_forward.7} parent=0 // pred_check_branch
    %17 = sbr.rel (0) target = $region17
  $region16: #{style_block_forward.7} parent=0 // pred_region
    _
  $region17: #{style_block_forward.7} parent=0 // pred_fallthru
    _
  // Predicated region
  $region18: #{style_block_forward.7} parent=0 // pred_check
    _
  $region19: #{style_block_forward.7} parent=0 // pred_check_branch
    %19 = sbr.rel (0) target = $region21
  $region20: #{style_block_forward.7} parent=0 // pred_region
    _
  $region21: #{style_block_forward.7} parent=0 // pred_fallthru
    _
  %p21 = scmp.eq.s32.totalorder 0, 0
  // Predicated region
  $region22: #{style_block_forward.7} parent=0 // pred_check
    %p22 = pneg %p21
  $region23: #{style_block_forward.7} parent=0 // pred_check_branch
    %24 = sbr.rel (%p22) target = $region25
  $region24: #{style_block_forward.7} parent=0 // pred_region
    %25 = vst [vmem:[#allocation2] sm:$0xff] 0.0
    %26 = vst [vmem:[#allocation2 + $0x8] sm:$0xff] 0.0
    %27 = vst [vmem:[#allocation2 + $0x10] sm:$0xff] 0.0
    %28 = vst [vmem:[#allocation2 + $0x18] sm:$0xff] 0.0
    %29 = vst [vmem:[#allocation2 + $0x20] sm:$0xff] 0.0
    %30 = vst [vmem:[#allocation2 + $0x28] sm:$0xff] 0.0
    %31 = vst [vmem:[#allocation2 + $0x30] sm:$0xff] 0.0
    %32 = vst [vmem:[#allocation2 + $0x38] sm:$0xff] 0.0
    %33 = vst [vmem:[#allocation2 + $0x40] sm:$0xff] 0.0
    %34 = vst [vmem:[#allocation2 + $0x48] sm:$0xff] 0.0
    %35 = vst [vmem:[#allocation2 + $0x50] sm:$0xff] 0.0
    %36 = vst [vmem:[#allocation2 + $0x58] sm:$0xff] 0.0
    %37 = vst [vmem:[#allocation2 + $0x60] sm:$0xff] 0.0
    %38 = vst [vmem:[#allocation2 + $0x68] sm:$0xff] 0.0
    %39 = vst [vmem:[#allocation2 + $0x70] sm:$0xff] 0.0
    %40 = vst [vmem:[#allocation2 + $0x78] sm:$0xff] 0.0
  $region25: #{style_block_forward.7} parent=0 // pred_fallthru
    _
  %v41 = vld [vmem:[#allocation2] sm:$0xff]
  %v42 = vld [vmem:[#allocation2 + $0x8] sm:$0xff]
  %v43 = vld [vmem:[#allocation2 + $0x10] sm:$0xff]
  %v44 = vld [vmem:[#allocation2 + $0x18] sm:$0xff]
  %v45 = vld [vmem:[#allocation2 + $0x20] sm:$0xff]
  %v46 = vld [vmem:[#allocation2 + $0x28] sm:$0xff]
  %v47 = vld [vmem:[#allocation2 + $0x30] sm:$0xff]
  %v48 = vld [vmem:[#allocation2 + $0x38] sm:$0xff]
  %v49 = vld [vmem:[#allocation2 + $0x40] sm:$0xff]
  %v50 = vld [vmem:[#allocation2 + $0x48] sm:$0xff]
  %v51 = vld [vmem:[#allocation2 + $0x50] sm:$0xff]
  %v52 = vld [vmem:[#allocation2 + $0x58] sm:$0xff]
  %v53 = vld [vmem:[#allocation2 + $0x60] sm:$0xff]
  %v54 = vld [vmem:[#allocation2 + $0x68] sm:$0xff]
  %v55 = vld [vmem:[#allocation2 + $0x70] sm:$0xff]
  %v56 = vld [vmem:[#allocation2 + $0x78] sm:$0xff]
  %v57 = vld [vmem:[%s0] sm:$0xf]
  %v58 = vld [vmem:[%s0 + $0x4] sm:$0xf]
  %v59 = vld [vmem:[%s0 + $0x8] sm:$0xf]
  %v60 = vld [vmem:[%s0 + $0xc] sm:$0xf]
  %v61 = vld [vmem:[%s0 + $0x10] sm:$0xf]
  %v62 = vld [vmem:[%s0 + $0x14] sm:$0xf]
  %v63 = vld [vmem:[%s0 + $0x18] sm:$0xf]
  %v64 = vld [vmem:[%s0 + $0x1c] sm:$0xf]
  %v65 = vld [vmem:[%s0 + $0x20] sm:$0xf]
  %v66 = vld [vmem:[%s0 + $0x24] sm:$0xf]
  %v67 = vld [vmem:[%s0 + $0x28] sm:$0xf]
  %v68 = vld [vmem:[%s0 + $0x2c] sm:$0xf]
  %v69 = vld [vmem:[%s0 + $0x30] sm:$0xf]
  %v70 = vld [vmem:[%s0 + $0x34] sm:$0xf]
  %v71 = vld [vmem:[%s0 + $0x38] sm:$0xf]
  %v72 = vld [vmem:[%s0 + $0x3c] sm:$0xf]
  %v73 = vld [vmem:[%s1] sm:$0xf]
  %v74 = vld [vmem:[%s1 + $0x4] sm:$0xf]
  %v75 = vld [vmem:[%s1 + $0x8] sm:$0xf]
  %v76 = vld [vmem:[%s1 + $0xc] sm:$0xf]
  %v77 = vld [vmem:[%s1 + $0x10] sm:$0xf]
  %v78 = vld [vmem:[%s1 + $0x14] sm:$0xf]
  %v79 = vld [vmem:[%s1 + $0x18] sm:$0xf]
  %v80 = vld [vmem:[%s1 + $0x1c] sm:$0xf]
  %v81 = vld [vmem:[%s1 + $0x20] sm:$0xf]
  %v82 = vld [vmem:[%s1 + $0x24] sm:$0xf]
  %v83 = vld [vmem:[%s1 + $0x28] sm:$0xf]
  %v84 = vld [vmem:[%s1 + $0x2c] sm:$0xf]
  %v85 = vld [vmem:[%s1 + $0x30] sm:$0xf]
  %v86 = vld [vmem:[%s1 + $0x34] sm:$0xf]
  %v87 = vld [vmem:[%s1 + $0x38] sm:$0xf]
  %v88 = vld [vmem:[%s1 + $0x3c] sm:$0xf]
  %v105 = vunpack.c.l.b16 %v57
  %v106 = vunpack.c.l.b16 %v58
  %v107 = vunpack.c.l.b16 %v59
  %v108 = vunpack.c.l.b16 %v60
  %v109 = vunpack.c.l.b16 %v61
  %v110 = vunpack.c.l.b16 %v62
  %v111 = vunpack.c.l.b16 %v63
  %v112 = vunpack.c.l.b16 %v64
  %v113 = vunpack.c.l.b16 %v65
  %v114 = vunpack.c.l.b16 %v66
  %v115 = vunpack.c.l.b16 %v67
  %v116 = vunpack.c.l.b16 %v68
  %v117 = vunpack.c.l.b16 %v69
  %v118 = vunpack.c.l.b16 %v70
  %v119 = vunpack.c.l.b16 %v71
  %v120 = vunpack.c.l.b16 %v72
  %v121 = vpack.c.b16 %v106, %v105
  %v122 = vpack.c.b16 %v108, %v107
  %v123 = vpack.c.b16 %v110, %v109
  %v124 = vpack.c.b16 %v112, %v111
  %v125 = vpack.c.b16 %v114, %v113
  %v126 = vpack.c.b16 %v116, %v115
  %v127 = vpack.c.b16 %v118, %v117
  %v128 = vpack.c.b16 %v120, %v119
  %v153 = vunpack.c.l.b16 %v73
  %v154 = vunpack.c.l.b16 %v74
  %v155 = vunpack.c.l.b16 %v75
  %v156 = vunpack.c.l.b16 %v76
  %v157 = vunpack.c.l.b16 %v77
  %v158 = vunpack.c.l.b16 %v78
  %v159 = vunpack.c.l.b16 %v79
  %v160 = vunpack.c.l.b16 %v80
  %v161 = vunpack.c.l.b16 %v81
  %v162 = vunpack.c.l.b16 %v82
  %v163 = vunpack.c.l.b16 %v83
  %v164 = vunpack.c.l.b16 %v84
  %v165 = vunpack.c.l.b16 %v85
  %v166 = vunpack.c.l.b16 %v86
  %v167 = vunpack.c.l.b16 %v87
  %v168 = vunpack.c.l.b16 %v88
  %v169 = vpack.c.b16 %v154, %v153
  %v170 = vpack.c.b16 %v156, %v155
  %v171 = vpack.c.b16 %v158, %v157
  %v172 = vpack.c.b16 %v160, %v159
  %v173 = vpack.c.b16 %v162, %v161
  %v174 = vpack.c.b16 %v164, %v163
  %v175 = vpack.c.b16 %v166, %v165
  %v176 = vpack.c.b16 %v168, %v167
  %185 = vmatprep.subr.bf16.mxu0 0
  %186 = vmatpush1.bf16.msra.mxu0 %v169
  %187 = vmatprep.subr.bf16.mxu0 0
  %188 = vmatpush1.bf16.msra.mxu0 %v170
  %189 = vmatprep.subr.bf16.mxu0 0
  %190 = vmatpush1.bf16.msra.mxu0 %v171
  %191 = vmatprep.subr.bf16.mxu0 0
  %192 = vmatpush1.bf16.msra.mxu0 %v172
  %193 = vmatprep.subr.bf16.mxu0 0
  %194 = vmatpush1.bf16.msra.mxu0 %v173
  %195 = vmatprep.subr.bf16.mxu0 0
  %196 = vmatpush1.bf16.msra.mxu0 %v174
  %197 = vmatprep.subr.bf16.mxu0 0
  %198 = vmatpush1.bf16.msra.mxu0 %v175
  %199 = vmatprep.subr.bf16.mxu0 0
  %200 = vmatpush1.bf16.msra.mxu0 %v176
  %201 = vmatprep.subr.bf16.mxu0 0
  %202 = vmatpush1.bf16.msra.mxu0 0
  %203 = vmatprep.subr.bf16.mxu0 0
  %204 = vmatpush1.bf16.msra.mxu0 0
  %205 = vmatprep.subr.bf16.mxu0 0
  %206 = vmatpush1.bf16.msra.mxu0 0
  %207 = vmatprep.subr.bf16.mxu0 0
  %208 = vmatpush1.bf16.msra.mxu0 0
  %209 = vmatprep.subr.bf16.mxu0 0
  %210 = vmatpush1.bf16.msra.mxu0 0
  %211 = vmatprep.subr.bf16.mxu0 0
  %212 = vmatpush1.bf16.msra.mxu0 0
  %213 = vmatprep.subr.bf16.mxu0 0
  %214 = vmatpush1.bf16.msra.mxu0 0
  %215 = vmatprep.subr.bf16.mxu0 0
  %216 = vmatpush1.bf16.msra.mxu0 0
  %217 = vmatprep.mubr.bf16.mxu0 0
  %218 = vmatmul.mubr.bf16.gmra.mrb[0].mxu0 %v121
  %v219 = vpop.f32.mrb[0].mxu0
  %v220 = vadd.f32 0.0, %v219
  %v221 = vpop.f32.mrb[0].mxu0
  %v222 = vpop.f32.mrb[0].mxu0
  %v223 = vadd.f32 0.0, %v222
  %v224 = vpop.f32.mrb[0].mxu0
  %225 = vmatprep.mubr.bf16.mxu0 0
  %226 = vmatmul.mubr.bf16.gmra.mrb[0].mxu0 %v122
  %v227 = vpop.f32.mrb[0].mxu0
  %v228 = vadd.f32 0.0, %v227
  %v229 = vpop.f32.mrb[0].mxu0
  %v230 = vpop.f32.mrb[0].mxu0
  %v231 = vadd.f32 0.0, %v230
  %v232 = vpop.f32.mrb[0].mxu0
  %233 = vmatprep.mubr.bf16.mxu0 0
  %234 = vmatmul.mubr.bf16.gmra.mrb[0].mxu0 %v123
  %v235 = vpop.f32.mrb[0].mxu0
  %v236 = vadd.f32 0.0, %v235
  %v237 = vpop.f32.mrb[0].mxu0
  %v238 = vpop.f32.mrb[0].mxu0
  %v239 = vadd.f32 0.0, %v238
  %v240 = vpop.f32.mrb[0].mxu0
  %241 = vmatprep.mubr.bf16.mxu0 0
  %242 = vmatmul.mubr.bf16.gmra.mrb[0].mxu0 %v124
  %v243 = vpop.f32.mrb[0].mxu0
  %v244 = vadd.f32 0.0, %v243
  %v245 = vpop.f32.mrb[0].mxu0
  %v246 = vpop.f32.mrb[0].mxu0
  %v247 = vadd.f32 0.0, %v246
  %v248 = vpop.f32.mrb[0].mxu0
  %249 = vmatprep.mubr.bf16.mxu0 0
  %250 = vmatmul.mubr.bf16.gmra.mrb[0].mxu0 %v125
  %v251 = vpop.f32.mrb[0].mxu0
  %v252 = vadd.f32 0.0, %v251
  %v253 = vpop.f32.mrb[0].mxu0
  %v254 = vpop.f32.mrb[0].mxu0
  %v255 = vadd.f32 0.0, %v254
  %v256 = vpop.f32.mrb[0].mxu0
  %257 = vmatprep.mubr.bf16.mxu0 0
  %258 = vmatmul.mubr.bf16.gmra.mrb[0].mxu0 %v126
  %v259 = vpop.f32.mrb[0].mxu0
  %v260 = vadd.f32 0.0, %v259
  %v261 = vpop.f32.mrb[0].mxu0
  %v262 = vpop.f32.mrb[0].mxu0
  %v263 = vadd.f32 0.0, %v262
  %v264 = vpop.f32.mrb[0].mxu0
  %265 = vmatprep.mubr.bf16.mxu0 0
  %266 = vmatmul.mubr.bf16.gmra.mrb[0].mxu0 %v127
  %v267 = vpop.f32.mrb[0].mxu0
  %v268 = vadd.f32 0.0, %v267
  %v269 = vpop.f32.mrb[0].mxu0
  %v270 = vpop.f32.mrb[0].mxu0
  %v271 = vadd.f32 0.0, %v270
  %v272 = vpop.f32.mrb[0].mxu0
  %273 = vmatprep.mubr.bf16.mxu0 0
  %274 = vmatmul.mubr.bf16.gmra.mrb[0].mxu0 %v128
  %v275 = vpop.f32.mrb[0].mxu0
  %v276 = vadd.f32 0.0, %v275
  %v277 = vpop.f32.mrb[0].mxu0
  %v278 = vpop.f32.mrb[0].mxu0
  %v279 = vadd.f32 0.0, %v278
  %v280 = vpop.f32.mrb[0].mxu0
  %281 = vdwg.mxu0
  %v282 = vadd.f32 %v41, %v220
  %v283 = vadd.f32 %v42, %v223
  %v284 = vadd.f32 %v43, %v228
  %v285 = vadd.f32 %v44, %v231
  %v286 = vadd.f32 %v45, %v236
  %v287 = vadd.f32 %v46, %v239
  %v288 = vadd.f32 %v47, %v244
  %v289 = vadd.f32 %v48, %v247
  %v290 = vadd.f32 %v49, %v252
  %v291 = vadd.f32 %v50, %v255
  %v292 = vadd.f32 %v51, %v260
  %v293 = vadd.f32 %v52, %v263
  %v294 = vadd.f32 %v53, %v268
  %v295 = vadd.f32 %v54, %v271
  %v296 = vadd.f32 %v55, %v276
  %v297 = vadd.f32 %v56, %v279
  %298 = vst [vmem:[#allocation2] sm:$0xff] %v282
  %299 = vst [vmem:[#allocation2 + $0x8] sm:$0xff] %v283
  %300 = vst [vmem:[#allocation2 + $0x10] sm:$0xff] %v284
  %301 = vst [vmem:[#allocation2 + $0x18] sm:$0xff] %v285
  %302 = vst [vmem:[#allocation2 + $0x20] sm:$0xff] %v286
  %303 = vst [vmem:[#allocation2 + $0x28] sm:$0xff] %v287
  %304 = vst [vmem:[#allocation2 + $0x30] sm:$0xff] %v288
  %305 = vst [vmem:[#allocation2 + $0x38] sm:$0xff] %v289
  %306 = vst [vmem:[#allocation2 + $0x40] sm:$0xff] %v290
  %307 = vst [vmem:[#allocation2 + $0x48] sm:$0xff] %v291
  %308 = vst [vmem:[#allocation2 + $0x50] sm:$0xff] %v292
  %309 = vst [vmem:[#allocation2 + $0x58] sm:$0xff] %v293
  %310 = vst [vmem:[#allocation2 + $0x60] sm:$0xff] %v294
  %311 = vst [vmem:[#allocation2 + $0x68] sm:$0xff] %v295
  %312 = vst [vmem:[#allocation2 + $0x70] sm:$0xff] %v296
  %313 = vst [vmem:[#allocation2 + $0x78] sm:$0xff] %v297
  // Predicated region
  $region26: #{style_block_forward.7} parent=0 // pred_check
    %p314 = pneg %p21
  $region27: #{style_block_forward.7} parent=0 // pred_check_branch
    %316 = sbr.rel (%p314) target = $region29
  $region28: #{style_block_forward.7} parent=0 // pred_region
    %v317 = vld [vmem:[#allocation2] sm:$0xff]
    %v318 = vld [vmem:[#allocation2 + $0x8] sm:$0xff]
    %v319 = vld [vmem:[#allocation2 + $0x10] sm:$0xff]
    %v320 = vld [vmem:[#allocation2 + $0x18] sm:$0xff]
    %v321 = vld [vmem:[#allocation2 + $0x20] sm:$0xff]
    %v322 = vld [vmem:[#allocation2 + $0x28] sm:$0xff]
    %v323 = vld [vmem:[#allocation2 + $0x30] sm:$0xff]
    %v324 = vld [vmem:[#allocation2 + $0x38] sm:$0xff]
    %v325 = vld [vmem:[#allocation2 + $0x40] sm:$0xff]
    %v326 = vld [vmem:[#allocation2 + $0x48] sm:$0xff]
    %v327 = vld [vmem:[#allocation2 + $0x50] sm:$0xff]
    %v328 = vld [vmem:[#allocation2 + $0x58] sm:$0xff]
    %v329 = vld [vmem:[#allocation2 + $0x60] sm:$0xff]
    %v330 = vld [vmem:[#allocation2 + $0x68] sm:$0xff]
    %v331 = vld [vmem:[#allocation2 + $0x70] sm:$0xff]
    %v332 = vld [vmem:[#allocation2 + $0x78] sm:$0xff]
    %v333 = vld [vmem:[%s2] sm:$0x1]
    %v335 = vlaneseq
    %v336 = vshrl.u32 %v335, 7
    %v337 = vsub.s32 0, %v336
    %v338 = vrot.slane %v333, %v337
    %v340 = vadd.f32 %v317, %v338
    %v341 = vadd.f32 %v318, %v338
    %v342 = vadd.f32 %v319, %v338
    %v343 = vadd.f32 %v320, %v338
    %v344 = vadd.f32 %v321, %v338
    %v345 = vadd.f32 %v322, %v338
    %v346 = vadd.f32 %v323, %v338
    %v347 = vadd.f32 %v324, %v338
    %v348 = vadd.f32 %v325, %v338
    %v349 = vadd.f32 %v326, %v338
    %v350 = vadd.f32 %v327, %v338
    %v351 = vadd.f32 %v328, %v338
    %v352 = vadd.f32 %v329, %v338
    %v353 = vadd.f32 %v330, %v338
    %v354 = vadd.f32 %v331, %v338
    %v355 = vadd.f32 %v332, %v338
    %vm356 = vcmp.ge.f32.partialorder %v340, 0.0
    %vm357 = vcmp.ge.f32.partialorder %v341, 0.0
    %vm358 = vcmp.ge.f32.partialorder %v342, 0.0
    %vm359 = vcmp.ge.f32.partialorder %v343, 0.0
    %vm360 = vcmp.ge.f32.partialorder %v344, 0.0
    %vm361 = vcmp.ge.f32.partialorder %v345, 0.0
    %vm362 = vcmp.ge.f32.partialorder %v346, 0.0
    %vm363 = vcmp.ge.f32.partialorder %v347, 0.0
    %vm364 = vcmp.ge.f32.partialorder %v348, 0.0
    %vm365 = vcmp.ge.f32.partialorder %v349, 0.0
    %vm366 = vcmp.ge.f32.partialorder %v350, 0.0
    %vm367 = vcmp.ge.f32.partialorder %v351, 0.0
    %vm368 = vcmp.ge.f32.partialorder %v352, 0.0
    %vm369 = vcmp.ge.f32.partialorder %v353, 0.0
    %vm370 = vcmp.ge.f32.partialorder %v354, 0.0
    %vm371 = vcmp.ge.f32.partialorder %v355, 0.0
    %v372 = vmul.f32 %v340, 0.2
    %v373 = vmul.f32 %v341, 0.2
    %v374 = vmul.f32 %v342, 0.2
    %v375 = vmul.f32 %v343, 0.2
    %v376 = vmul.f32 %v344, 0.2
    %v377 = vmul.f32 %v345, 0.2
    %v378 = vmul.f32 %v346, 0.2
    %v379 = vmul.f32 %v347, 0.2
    %v380 = vmul.f32 %v348, 0.2
    %v381 = vmul.f32 %v349, 0.2
    %v382 = vmul.f32 %v350, 0.2
    %v383 = vmul.f32 %v351, 0.2
    %v384 = vmul.f32 %v352, 0.2
    %v385 = vmul.f32 %v353, 0.2
    %v386 = vmul.f32 %v354, 0.2
    %v387 = vmul.f32 %v355, 0.2
    %v388 = vsel %vm356, %v340, %v372
    %v389 = vsel %vm357, %v341, %v373
    %v390 = vsel %vm358, %v342, %v374
    %v391 = vsel %vm359, %v343, %v375
    %v392 = vsel %vm360, %v344, %v376
    %v393 = vsel %vm361, %v345, %v377
    %v394 = vsel %vm362, %v346, %v378
    %v395 = vsel %vm363, %v347, %v379
    %v396 = vsel %vm364, %v348, %v380
    %v397 = vsel %vm365, %v349, %v381
    %v398 = vsel %vm366, %v350, %v382
    %v399 = vsel %vm367, %v351, %v383
    %v400 = vsel %vm368, %v352, %v384
    %v401 = vsel %vm369, %v353, %v385
    %v402 = vsel %vm370, %v354, %v386
    %v403 = vsel %vm371, %v355, %v387
    %v404 = vld [vmem:[%s3] sm:$0xf]
    %v405 = vld [vmem:[%s3 + $0x4] sm:$0xf]
    %v406 = vld [vmem:[%s3 + $0x8] sm:$0xf]
    %v407 = vld [vmem:[%s3 + $0xc] sm:$0xf]
    %v408 = vld [vmem:[%s3 + $0x10] sm:$0xf]
    %v409 = vld [vmem:[%s3 + $0x14] sm:$0xf]
    %v410 = vld [vmem:[%s3 + $0x18] sm:$0xf]
    %v411 = vld [vmem:[%s3 + $0x1c] sm:$0xf]
    %v412 = vld [vmem:[%s3 + $0x20] sm:$0xf]
    %v413 = vld [vmem:[%s3 + $0x24] sm:$0xf]
    %v414 = vld [vmem:[%s3 + $0x28] sm:$0xf]
    %v415 = vld [vmem:[%s3 + $0x2c] sm:$0xf]
    %v416 = vld [vmem:[%s3 + $0x30] sm:$0xf]
    %v417 = vld [vmem:[%s3 + $0x34] sm:$0xf]
    %v418 = vld [vmem:[%s3 + $0x38] sm:$0xf]
    %v419 = vld [vmem:[%s3 + $0x3c] sm:$0xf]
    %v420 = vld [vmem:[%s4] sm:$0xf]
    %v421 = vld [vmem:[%s4 + $0x4] sm:$0xf]
    %v422 = vld [vmem:[%s4 + $0x8] sm:$0xf]
    %v423 = vld [vmem:[%s4 + $0xc] sm:$0xf]
    %v424 = vld [vmem:[%s4 + $0x10] sm:$0xf]
    %v425 = vld [vmem:[%s4 + $0x14] sm:$0xf]
    %v426 = vld [vmem:[%s4 + $0x18] sm:$0xf]
    %v427 = vld [vmem:[%s4 + $0x1c] sm:$0xf]
    %v428 = vld [vmem:[%s4 + $0x20] sm:$0xf]
    %v429 = vld [vmem:[%s4 + $0x24] sm:$0xf]
    %v430 = vld [vmem:[%s4 + $0x28] sm:$0xf]
    %v431 = vld [vmem:[%s4 + $0x2c] sm:$0xf]
    %v432 = vld [vmem:[%s4 + $0x30] sm:$0xf]
    %v433 = vld [vmem:[%s4 + $0x34] sm:$0xf]
    %v434 = vld [vmem:[%s4 + $0x38] sm:$0xf]
    %v435 = vld [vmem:[%s4 + $0x3c] sm:$0xf]
    %v452 = vunpack.c.l.b16 %v404
    %v453 = vunpack.c.l.b16 %v405
    %v454 = vunpack.c.l.b16 %v406
    %v455 = vunpack.c.l.b16 %v407
    %v456 = vunpack.c.l.b16 %v408
    %v457 = vunpack.c.l.b16 %v409
    %v458 = vunpack.c.l.b16 %v410
    %v459 = vunpack.c.l.b16 %v411
    %v460 = vunpack.c.l.b16 %v412
    %v461 = vunpack.c.l.b16 %v413
    %v462 = vunpack.c.l.b16 %v414
    %v463 = vunpack.c.l.b16 %v415
    %v464 = vunpack.c.l.b16 %v416
    %v465 = vunpack.c.l.b16 %v417
    %v466 = vunpack.c.l.b16 %v418
    %v467 = vunpack.c.l.b16 %v419
    %v468 = vpack.c.b16 %v453, %v452
    %v469 = vpack.c.b16 %v455, %v454
    %v470 = vpack.c.b16 %v457, %v456
    %v471 = vpack.c.b16 %v459, %v458
    %v472 = vpack.c.b16 %v461, %v460
    %v473 = vpack.c.b16 %v463, %v462
    %v474 = vpack.c.b16 %v465, %v464
    %v475 = vpack.c.b16 %v467, %v466
    %v500 = vunpack.c.l.b16 %v420
    %v501 = vunpack.c.l.b16 %v421
    %v502 = vunpack.c.l.b16 %v422
    %v503 = vunpack.c.l.b16 %v423
    %v504 = vunpack.c.l.b16 %v424
    %v505 = vunpack.c.l.b16 %v425
    %v506 = vunpack.c.l.b16 %v426
    %v507 = vunpack.c.l.b16 %v427
    %v508 = vunpack.c.l.b16 %v428
    %v509 = vunpack.c.l.b16 %v429
    %v510 = vunpack.c.l.b16 %v430
    %v511 = vunpack.c.l.b16 %v431
    %v512 = vunpack.c.l.b16 %v432
    %v513 = vunpack.c.l.b16 %v433
    %v514 = vunpack.c.l.b16 %v434
    %v515 = vunpack.c.l.b16 %v435
    %v516 = vpack.c.b16 %v501, %v500
    %v517 = vpack.c.b16 %v503, %v502
    %v518 = vpack.c.b16 %v505, %v504
    %v519 = vpack.c.b16 %v507, %v506
    %v520 = vpack.c.b16 %v509, %v508
    %v521 = vpack.c.b16 %v511, %v510
    %v522 = vpack.c.b16 %v513, %v512
    %v523 = vpack.c.b16 %v515, %v514
    %532 = vmatprep.subr.bf16.mxu0 0
    %533 = vmatpush1.bf16.msra.mxu0 %v516
    %534 = vmatprep.subr.bf16.mxu0 0
    %535 = vmatpush1.bf16.msra.mxu0 %v517
    %536 = vmatprep.subr.bf16.mxu0 0
    %537 = vmatpush1.bf16.msra.mxu0 %v518
    %538 = vmatprep.subr.bf16.mxu0 0
    %539 = vmatpush1.bf16.msra.mxu0 %v519
    %540 = vmatprep.subr.bf16.mxu0 0
    %541 = vmatpush1.bf16.msra.mxu0 %v520
    %542 = vmatprep.subr.bf16.mxu0 0
    %543 = vmatpush1.bf16.msra.mxu0 %v521
    %544 = vmatprep.subr.bf16.mxu0 0
    %545 = vmatpush1.bf16.msra.mxu0 %v522
    %546 = vmatprep.subr.bf16.mxu0 0
    %547 = vmatpush1.bf16.msra.mxu0 %v523
    %548 = vmatprep.subr.bf16.mxu0 0
    %549 = vmatpush1.bf16.msra.mxu0 0
    %550 = vmatprep.subr.bf16.mxu0 0
    %551 = vmatpush1.bf16.msra.mxu0 0
    %552 = vmatprep.subr.bf16.mxu0 0
    %553 = vmatpush1.bf16.msra.mxu0 0
    %554 = vmatprep.subr.bf16.mxu0 0
    %555 = vmatpush1.bf16.msra.mxu0 0
    %556 = vmatprep.subr.bf16.mxu0 0
    %557 = vmatpush1.bf16.msra.mxu0 0
    %558 = vmatprep.subr.bf16.mxu0 0
    %559 = vmatpush1.bf16.msra.mxu0 0
    %560 = vmatprep.subr.bf16.mxu0 0
    %561 = vmatpush1.bf16.msra.mxu0 0
    %562 = vmatprep.subr.bf16.mxu0 0
    %563 = vmatpush1.bf16.msra.mxu0 0
    %564 = vmatprep.mubr.bf16.mxu0 0
    %565 = vmatmul.mubr.bf16.gmra.mrb[0].mxu0 %v468
    %v566 = vpop.f32.mrb[0].mxu0
    %v567 = vadd.f32 0.0, %v566
    %v568 = vpop.f32.mrb[0].mxu0
    %v569 = vpop.f32.mrb[0].mxu0
    %v570 = vadd.f32 0.0, %v569
    %v571 = vpop.f32.mrb[0].mxu0
    %572 = vmatprep.mubr.bf16.mxu0 0
    %573 = vmatmul.mubr.bf16.gmra.mrb[0].mxu0 %v469
    %v574 = vpop.f32.mrb[0].mxu0
    %v575 = vadd.f32 0.0, %v574
    %v576 = vpop.f32.mrb[0].mxu0
    %v577 = vpop.f32.mrb[0].mxu0
    %v578 = vadd.f32 0.0, %v577
    %v579 = vpop.f32.mrb[0].mxu0
    %580 = vmatprep.mubr.bf16.mxu0 0
    %581 = vmatmul.mubr.bf16.gmra.mrb[0].mxu0 %v470
    %v582 = vpop.f32.mrb[0].mxu0
    %v583 = vadd.f32 0.0, %v582
    %v584 = vpop.f32.mrb[0].mxu0
    %v585 = vpop.f32.mrb[0].mxu0
    %v586 = vadd.f32 0.0, %v585
    %v587 = vpop.f32.mrb[0].mxu0
    %588 = vmatprep.mubr.bf16.mxu0 0
    %589 = vmatmul.mubr.bf16.gmra.mrb[0].mxu0 %v471
    %v590 = vpop.f32.mrb[0].mxu0
    %v591 = vadd.f32 0.0, %v590
    %v592 = vpop.f32.mrb[0].mxu0
    %v593 = vpop.f32.mrb[0].mxu0
    %v594 = vadd.f32 0.0, %v593
    %v595 = vpop.f32.mrb[0].mxu0
    %596 = vmatprep.mubr.bf16.mxu0 0
    %597 = vmatmul.mubr.bf16.gmra.mrb[0].mxu0 %v472
    %v598 = vpop.f32.mrb[0].mxu0
    %v599 = vadd.f32 0.0, %v598
    %v600 = vpop.f32.mrb[0].mxu0
    %v601 = vpop.f32.mrb[0].mxu0
    %v602 = vadd.f32 0.0, %v601
    %v603 = vpop.f32.mrb[0].mxu0
    %604 = vmatprep.mubr.bf16.mxu0 0
    %605 = vmatmul.mubr.bf16.gmra.mrb[0].mxu0 %v473
    %v606 = vpop.f32.mrb[0].mxu0
    %v607 = vadd.f32 0.0, %v606
    %v608 = vpop.f32.mrb[0].mxu0
    %v609 = vpop.f32.mrb[0].mxu0
    %v610 = vadd.f32 0.0, %v609
    %v611 = vpop.f32.mrb[0].mxu0
    %612 = vmatprep.mubr.bf16.mxu0 0
    %613 = vmatmul.mubr.bf16.gmra.mrb[0].mxu0 %v474
    %v614 = vpop.f32.mrb[0].mxu0
    %v615 = vadd.f32 0.0, %v614
    %v616 = vpop.f32.mrb[0].mxu0
    %v617 = vpop.f32.mrb[0].mxu0
    %v618 = vadd.f32 0.0, %v617
    %v619 = vpop.f32.mrb[0].mxu0
    %620 = vmatprep.mubr.bf16.mxu0 0
    %621 = vmatmul.mubr.bf16.gmra.mrb[0].mxu0 %v475
    %v622 = vpop.f32.mrb[0].mxu0
    %v623 = vadd.f32 0.0, %v622
    %v624 = vpop.f32.mrb[0].mxu0
    %v625 = vpop.f32.mrb[0].mxu0
    %v626 = vadd.f32 0.0, %v625
    %v627 = vpop.f32.mrb[0].mxu0
    %628 = vdwg.mxu0
    %v629 = vadd.f32 %v388, %v567
    %v630 = vadd.f32 %v389, %v570
    %v631 = vadd.f32 %v390, %v575
    %v632 = vadd.f32 %v391, %v578
    %v633 = vadd.f32 %v392, %v583
    %v634 = vadd.f32 %v393, %v586
    %v635 = vadd.f32 %v394, %v591
    %v636 = vadd.f32 %v395, %v594
    %v637 = vadd.f32 %v396, %v599
    %v638 = vadd.f32 %v397, %v602
    %v639 = vadd.f32 %v398, %v607
    %v640 = vadd.f32 %v399, %v610
    %v641 = vadd.f32 %v400, %v615
    %v642 = vadd.f32 %v401, %v618
    %v643 = vadd.f32 %v402, %v623
    %v644 = vadd.f32 %v403, %v626
    %645 = vst [vmem:[%s5] sm:$0xff] %v629
    %646 = vst [vmem:[%s5 + $0x8] sm:$0xff] %v630
    %647 = vst [vmem:[%s5 + $0x10] sm:$0xff] %v631
    %648 = vst [vmem:[%s5 + $0x18] sm:$0xff] %v632
    %649 = vst [vmem:[%s5 + $0x20] sm:$0xff] %v633
    %650 = vst [vmem:[%s5 + $0x28] sm:$0xff] %v634
    %651 = vst [vmem:[%s5 + $0x30] sm:$0xff] %v635
    %652 = vst [vmem:[%s5 + $0x38] sm:$0xff] %v636
    %653 = vst [vmem:[%s5 + $0x40] sm:$0xff] %v637
    %654 = vst [vmem:[%s5 + $0x48] sm:$0xff] %v638
    %655 = vst [vmem:[%s5 + $0x50] sm:$0xff] %v639
    %656 = vst [vmem:[%s5 + $0x58] sm:$0xff] %v640
    %657 = vst [vmem:[%s5 + $0x60] sm:$0xff] %v641
    %658 = vst [vmem:[%s5 + $0x68] sm:$0xff] %v642
    %659 = vst [vmem:[%s5 + $0x70] sm:$0xff] %v643
    %660 = vst [vmem:[%s5 + $0x78] sm:$0xff] %v644
  $region29: #{style_block_forward.7} parent=0 // pred_fallthru
    _
  // Predicated region
  $region30: #{style_block_forward.7} parent=0 // pred_check
    _
  $region31: #{style_block_forward.7} parent=0 // pred_check_branch
    %662 = sbr.rel (0) target = $region33
  $region32: #{style_block_forward.7} parent=0 // pred_region
    _
  $region33: #{style_block_forward.7} parent=0 // pred_fallthru
    _
  // Predicated region
  $region34: #{style_block_forward.7} parent=0 // pred_check
    _
  $region35: #{style_block_forward.7} parent=0 // pred_check_branch
    %664 = sbr.rel (0) target = $region37
  $region36: #{style_block_forward.7} parent=0 // pred_region
    _
  $region37: #{style_block_forward.7} parent=0 // pred_fallthru
    _

</llo_original>
